<compile_context>
chip_gen: v7x
topology: tpu7x:2x2x1
jax: 0.10.0
libtpu: 0.0.40
codegen_flags: <defaults>
</compile_context>

<pallas_src>
import functools
import math

import jax
import jax.numpy as jnp
import numpy as np
from jax.experimental import pallas as pl
from jax.experimental.pallas import tpu as pltpu

_INV_SQRT2 = 1.0 / math.sqrt(2.0)
_HI = jax.lax.Precision.HIGHEST          # used only by the pure-JAX reference
_MM_PRECISION = jax.lax.Precision.DEFAULT  # in-kernel matmul precision


def _erf(x):
    # Abramowitz & Stegun 7.1.26, |err| < 1.5e-7 (float32-exact) — matches
    # torch's exact erf-based GELU.  All f32 elementwise (v5e-safe).
    p = 0.3275911
    a1, a2, a3, a4, a5 = (0.254829592, -0.284496736, 1.421413741,
                          -1.453152027, 1.061405429)
    ax = jnp.abs(x)
    t = 1.0 / (1.0 + p * ax)
    poly = ((((a5 * t + a4) * t + a3) * t + a2) * t + a1) * t
    y = 1.0 - poly * jnp.exp(-ax * ax)
    return jnp.where(x >= 0.0, y, -y)


def _gelu(x):
    return 0.5 * x * (1.0 + _erf(x * _INV_SQRT2))


# ------------------------------ Pallas kernel ------------------------------

def _fused_mlp_kernel(x_ref, *refs, num_layers):
    """Entire ResNet1D forward: L chained matmuls on a VMEM-resident activation.

    x_ref : (BT, D_in0)              flattened (channel*spatial) per batch row
    refs  : A_0..A_{L-1}  (D_l_in, D_l_out)   fused per-layer operators
            b_0..b_{L-1}  (1, D_l_out)        tiled biases
            o_ref        (BT, D_out)
    """
    a_refs = refs[:num_layers]
    b_refs = refs[num_layers:2 * num_layers]
    o_ref = refs[2 * num_layers]

    h = x_ref[...]                                        # (BT, D_in0)
    for l in range(num_layers):                           # unrolled (static L)
        h = jnp.dot(h, a_refs[l][...],
                    preferred_element_type=jnp.float32,
                    precision=_MM_PRECISION)              # MXU
        h = h + b_refs[l][...]
        if l < num_layers - 1:                            # last conv: no act
            h = _gelu(h)
    o_ref[...] = h


def fused_forward(x_flat, layer_mats, layer_biases):
    """One pallas_call for the whole network. x_flat: (B, insize*N) f32."""
    B, d_in = x_flat.shape
    d_out = layer_mats[-1].shape[1]
    num_layers = len(layer_mats)

    # Batch tile: fold up to 8 batch rows (one sublane tile) into the matmul
    # row dimension; the grid axis over batch tiles is data-parallel.
    bt = B if B <= 8 else 8
    pad = (-B) % bt
    if pad:
        x_flat = jnp.pad(x_flat, ((0, pad), (0, 0)))
    b_padded = B + pad
    grid = (b_padded // bt,)

    in_specs = [pl.BlockSpec((bt, d_in), lambda i: (i, 0))]
    for a in layer_mats:                       # weights: full block, resident
        in_specs.append(pl.BlockSpec(a.shape, lambda i: (0, 0)))
    for b in layer_biases:
        in_specs.append(pl.BlockSpec(b.shape, lambda i: (0, 0)))

    out = pl.pallas_call(
        functools.partial(_fused_mlp_kernel, num_layers=num_layers),
        out_shape=jax.ShapeDtypeStruct((b_padded, d_out), jnp.float32),
        grid=grid,
        in_specs=in_specs,
        out_specs=pl.BlockSpec((bt, d_out), lambda i: (i, 0)),
        compiler_params=pltpu.CompilerParams(
            dimension_semantics=("parallel",),
            vmem_limit_bytes=32 * 1024 * 1024),
    )(x_flat, *layer_mats, *layer_biases)
    return out[:B]


# ----------------------- host-side operator building -----------------------

def build_dft_mats(N, modes):
    """Truncated rfft/irfft as dense matrices (float64, host side)."""
    n = np.arange(N)[:, None].astype(np.float64)
    k = np.arange(modes)[None, :].astype(np.float64)
    ang = 2.0 * np.pi * n * k / N                  # (N, M)
    fc = np.cos(ang)                               # Re(rfft) columns
    fs = -np.sin(ang)                              # Im(rfft) columns
    ck = np.full((modes,), 2.0)
    ck[0] = 1.0
    if N % 2 == 0 and modes > N // 2:
        ck[N // 2] = 1.0
    gc = (ck[None, :] * np.cos(ang) / N).T         # (M, N)
    gs = (-(ck[None, :]) * np.sin(ang) / N).T      # (M, N)
    return fc, fs, gc, gs


def _spectral_operator(wr, wi, fc, fs, gc, gs):
    """Fused real operator of the truncated spectral conv: (Ci*N, Co*N)."""
    wr = np.asarray(wr, np.float64)                # (Ci, Co, M)
    wi = np.asarray(wi, np.float64)
    K = (np.einsum("nk,iok,km->inom", fc, wr, gc)
         + np.einsum("nk,iok,km->inom", fc, wi, gs)
         + np.einsum("nk,iok,km->inom", fs, wr, gs)
         - np.einsum("nk,iok,km->inom", fs, wi, gc))
    ci, N, co, _ = K.shape
    return K.reshape(ci * N, co * N)


def _conv_operator(w, N):
    """1x1 Conv1d as an operator on the flattened (c*N+n) axis: kron(W.T, I_N)."""
    return np.kron(np.asarray(w, np.float64).T, np.eye(N))


def _tile_bias(b, N):
    return np.repeat(np.asarray(b, np.float64).reshape(-1), N)[None, :]


def build_fused_operators(params, cfg, N):
    """Per-layer (A, b) so the whole forward is h -> act(h @ A + b) chained."""
    fc, fs, gc, gs = build_dft_mats(N, cfg["modes"])
    mats, biases = [], []

    def add_conv(w, b):
        mats.append(_conv_operator(w, N))
        biases.append(_tile_bias(b, N))

    add_conv(params["in1_w"], params["in1_b"])
    add_conv(params["in2_w"], params["in2_b"])
    for blk in params["blocks"]:
        mats.append(_spectral_operator(blk["w1r"], blk["w1i"], fc, fs, gc, gs)
                    + _conv_operator(blk["c1_w"], N))
        biases.append(_tile_bias(blk["c1_b"], N))
        mats.append(_spectral_operator(blk["w2r"], blk["w2i"], fc, fs, gc, gs)
                    + _conv_operator(blk["c2_w"], N))
        biases.append(_tile_bias(blk["c2_b"], N))
    add_conv(params["out1_w"], params["out1_b"])
    add_conv(params["out2_w"], params["out2_b"])

    mats = [jnp.asarray(m, jnp.float32) for m in mats]
    biases = [jnp.asarray(b, jnp.float32) for b in biases]
    return mats, biases


# ----------------------------- params / forward ----------------------------

def init_params(key, cfg):
    insize = cfg["time_history"] * cfg["n_in"]
    outsize = cfg["time_future"] * cfg["n_out"]
    hc = cfg["hidden"]
    modes = cfg["modes"]
    state = {"key": key}

    def next_key():
        state["key"], sub = jax.random.split(state["key"])
        return sub

    def conv1x1(cout, cin):
        bound = 1.0 / math.sqrt(cin)
        w = jax.random.uniform(next_key(), (cout, cin), jnp.float32, -bound, bound)
        b = jax.random.uniform(next_key(), (cout, 1), jnp.float32, -bound, bound)
        return w, b

    def spectral_w(cin, cout):
        scale = 1.0 / (cin * cout)
        wr = scale * jax.random.uniform(next_key(), (cin, cout, modes), jnp.float32)
        wi = scale * jax.random.uniform(next_key(), (cin, cout, modes), jnp.float32)
        return wr, wi

    p = {}
    p["in1_w"], p["in1_b"] = conv1x1(hc, insize)
    p["in2_w"], p["in2_b"] = conv1x1(hc, hc)
    blocks = []
    for nb in cfg["num_blocks"]:
        for _ in range(nb):                        # block.expansion == 1
            blk = {}
            blk["w1r"], blk["w1i"] = spectral_w(hc, hc)
            blk["c1_w"], blk["c1_b"] = conv1x1(hc, hc)
            blk["w2r"], blk["w2i"] = spectral_w(hc, hc)
            blk["c2_w"], blk["c2_b"] = conv1x1(hc, hc)
            blocks.append(blk)
    p["blocks"] = blocks
    p["out1_w"], p["out1_b"] = conv1x1(hc, hc)
    p["out2_w"], p["out2_b"] = conv1x1(outsize, hc)
    return p


def pallas_forward(x, mats, biases, cfg):
    B, N = x.shape[0], x.shape[-1]
    x_flat = x.reshape(B, -1)                      # (B, insize*N), index c*N+n
    out = fused_forward(x_flat, mats, biases)      # (B, outsize*N)
    return out.reshape(B, cfg["time_future"], cfg["n_out"], N)


# Pure-JAX reference (real FFTs + complex einsum, f32-accurate) for validation.
def reference_forward(x, params, cfg):
    B, N = x.shape[0], x.shape[-1]
    modes = cfg["modes"]
    gelu = lambda v: jax.nn.gelu(v, approximate=False)

    def pconv(h, w, b):
        return jnp.einsum("oi,bin->bon", w, h, precision=_HI) + b[None]

    def spectral(h, wr, wi):
        xf = jnp.fft.rfft(h, axis=-1)
        w = (wr + 1j * wi).astype(jnp.complex64)
        of = jnp.einsum("bix,iox->box", xf[..., :modes], w, precision=_HI)
        full = jnp.zeros((h.shape[0], wr.shape[1], N // 2 + 1), jnp.complex64)
        full = full.at[..., :modes].set(of)
        return jnp.fft.irfft(full, n=N, axis=-1)

    h = x.reshape(B, -1, N)
    h = gelu(pconv(h, params["in1_w"], params["in1_b"]))
    h = gelu(pconv(h, params["in2_w"], params["in2_b"]))
    for blk in params["blocks"]:
        a = gelu(spectral(h, blk["w1r"], blk["w1i"]) + pconv(h, blk["c1_w"], blk["c1_b"]))
        h = gelu(spectral(a, blk["w2r"], blk["w2i"]) + pconv(a, blk["c2_w"], blk["c2_b"]))
    h = gelu(pconv(h, params["out1_w"], params["out1_b"]))
    h = pconv(h, params["out2_w"], params["out2_b"])
    return h.reshape(B, cfg["time_future"], cfg["n_out"], N)


if __name__ == "__main__":
    cfg = dict(n_in=1, n_out=1, time_history=4, time_future=4,
               hidden=32, num_blocks=[1, 1], modes=4)
    B, N = 2, 16

    key = jax.random.PRNGKey(0)
    kx, kp = jax.random.split(key)
    # input: (batch, time_history, n_input_scalar_components, spatial)
    x = jax.random.normal(kx, (B, cfg["time_history"], cfg["n_in"], N), jnp.float32)
    params = init_params(kp, cfg)
    mats, biases = build_fused_operators(params, cfg, N)

    out = pallas_forward(x, mats, biases, cfg)
    out = jax.block_until_ready(out)
    assert out.shape == (B, cfg["time_future"], cfg["n_out"], N), out.shape

    ref = reference_forward(x, params, cfg)
    max_err = float(jnp.max(jnp.abs(out - ref)))
    # Tolerance accounts for DEFAULT matmul precision (single-pass bf16 MXU);
    # set _MM_PRECISION = HIGHEST to recover <5e-3 vs the f32 fft reference.
    assert max_err < 2e-2, f"Pallas vs reference mismatch: max abs err {max_err}"

    print("KERNEL_OK")
</pallas_src>

<mosaic_0001>
module attributes {stable_mosaic.version = 11 : i64} {
  func.func @_fused_mlp_kernel(%arg0: i32, %arg1: memref<2x64xf32, #tpu.memory_space<vmem>>, %arg2: memref<64x512xf32, #tpu.memory_space<vmem>>, %arg3: memref<512x512xf32, #tpu.memory_space<vmem>>, %arg4: memref<512x512xf32, #tpu.memory_space<vmem>>, %arg5: memref<512x512xf32, #tpu.memory_space<vmem>>, %arg6: memref<512x512xf32, #tpu.memory_space<vmem>>, %arg7: memref<512x512xf32, #tpu.memory_space<vmem>>, %arg8: memref<512x512xf32, #tpu.memory_space<vmem>>, %arg9: memref<512x64xf32, #tpu.memory_space<vmem>>, %arg10: memref<1x512xf32, #tpu.memory_space<vmem>>, %arg11: memref<1x512xf32, #tpu.memory_space<vmem>>, %arg12: memref<1x512xf32, #tpu.memory_space<vmem>>, %arg13: memref<1x512xf32, #tpu.memory_space<vmem>>, %arg14: memref<1x512xf32, #tpu.memory_space<vmem>>, %arg15: memref<1x512xf32, #tpu.memory_space<vmem>>, %arg16: memref<1x512xf32, #tpu.memory_space<vmem>>, %arg17: memref<1x64xf32, #tpu.memory_space<vmem>>, %arg18: memref<2x64xf32, #tpu.memory_space<vmem>>) attributes {dimension_semantics = [#tpu.dimension_semantics<parallel>], iteration_bounds = array<i64: 1>, scalar_prefetch = 0 : i64, scratch_operands = 0 : i64, tpu.core_type = #tpu.core_type<tc>, window_params = [{transform_indices = @transform_0, window_bounds = array<i64: 2, 64>}, {pipeline_mode = #tpu.pipeline_mode<synchronous>, transform_indices = @transform_1, window_bounds = array<i64: 64, 512>}, {pipeline_mode = #tpu.pipeline_mode<synchronous>, transform_indices = @transform_2, window_bounds = array<i64: 512, 512>}, {pipeline_mode = #tpu.pipeline_mode<synchronous>, transform_indices = @transform_3, window_bounds = array<i64: 512, 512>}, {pipeline_mode = #tpu.pipeline_mode<synchronous>, transform_indices = @transform_4, window_bounds = array<i64: 512, 512>}, {pipeline_mode = #tpu.pipeline_mode<synchronous>, transform_indices = @transform_5, window_bounds = array<i64: 512, 512>}, {pipeline_mode = #tpu.pipeline_mode<synchronous>, transform_indices = @transform_6, window_bounds = array<i64: 512, 512>}, {pipeline_mode = #tpu.pipeline_mode<synchronous>, transform_indices = @transform_7, window_bounds = array<i64: 512, 512>}, {pipeline_mode = #tpu.pipeline_mode<synchronous>, transform_indices = @transform_8, window_bounds = array<i64: 512, 64>}, {pipeline_mode = #tpu.pipeline_mode<synchronous>, transform_indices = @transform_9, window_bounds = array<i64: 1, 512>}, {pipeline_mode = #tpu.pipeline_mode<synchronous>, transform_indices = @transform_10, window_bounds = array<i64: 1, 512>}, {pipeline_mode = #tpu.pipeline_mode<synchronous>, transform_indices = @transform_11, window_bounds = array<i64: 1, 512>}, {pipeline_mode = #tpu.pipeline_mode<synchronous>, transform_indices = @transform_12, window_bounds = array<i64: 1, 512>}, {pipeline_mode = #tpu.pipeline_mode<synchronous>, transform_indices = @transform_13, window_bounds = array<i64: 1, 512>}, {pipeline_mode = #tpu.pipeline_mode<synchronous>, transform_indices = @transform_14, window_bounds = array<i64: 1, 512>}, {pipeline_mode = #tpu.pipeline_mode<synchronous>, transform_indices = @transform_15, window_bounds = array<i64: 1, 512>}, {pipeline_mode = #tpu.pipeline_mode<synchronous>, transform_indices = @transform_16, window_bounds = array<i64: 1, 64>}, {transform_indices = @transform_17, window_bounds = array<i64: 2, 64>}]} {
    %c0 = arith.constant 0 : index
    %c0_0 = arith.constant 0 : index
    %0 = vector.load %arg1[%c0, %c0_0] : memref<2x64xf32, #tpu.memory_space<vmem>>, vector<2x64xf32>
    %c0_1 = arith.constant 0 : index
    %c0_2 = arith.constant 0 : index
    %1 = vector.load %arg2[%c0_1, %c0_2] : memref<64x512xf32, #tpu.memory_space<vmem>>, vector<64x512xf32>
    %cst = arith.constant dense<0.000000e+00> : vector<2x512xf32>
    %2 = tpu.matmul %0, %1, %cst {dimension_numbers = #tpu.dot_dimension_numbers<[1], [0], [0], [1], [0, 0, 1, 1], [], []>} : vector<2x64xf32>, vector<64x512xf32>, vector<2x512xf32> -> vector<2x512xf32>
    %c0_3 = arith.constant 0 : index
    %c0_4 = arith.constant 0 : index
    %3 = vector.load %arg10[%c0_3, %c0_4] : memref<1x512xf32, #tpu.memory_space<vmem>>, vector<1x512xf32>
    %4 = vector.broadcast %3 : vector<1x512xf32> to vector<2x512xf32>
    %5 = arith.addf %2, %4 : vector<2x512xf32>
    %cst_5 = arith.constant 5.000000e-01 : f32
    %6 = vector.broadcast %cst_5 : f32 to vector<2x512xf32>
    %7 = arith.mulf %6, %5 : vector<2x512xf32>
    %cst_6 = arith.constant 0.707106769 : f32
    %8 = vector.broadcast %cst_6 : f32 to vector<2x512xf32>
    %9 = arith.mulf %5, %8 : vector<2x512xf32>
    %10 = math.absf %9 : vector<2x512xf32>
    %cst_7 = arith.constant 0.327591091 : f32
    %11 = vector.broadcast %cst_7 : f32 to vector<2x512xf32>
    %12 = arith.mulf %11, %10 : vector<2x512xf32>
    %cst_8 = arith.constant 1.000000e+00 : f32
    %13 = vector.broadcast %cst_8 : f32 to vector<2x512xf32>
    %14 = arith.addf %13, %12 : vector<2x512xf32>
    %cst_9 = arith.constant 1.000000e+00 : f32
    %15 = vector.broadcast %cst_9 : f32 to vector<2x512xf32>
    %16 = arith.divf %15, %14 : vector<2x512xf32>
    %cst_10 = arith.constant 1.06140542 : f32
    %17 = vector.broadcast %cst_10 : f32 to vector<2x512xf32>
    %18 = arith.mulf %17, %16 : vector<2x512xf32>
    %cst_11 = arith.constant -1.45315206 : f32
    %19 = vector.broadcast %cst_11 : f32 to vector<2x512xf32>
    %20 = arith.addf %18, %19 : vector<2x512xf32>
    %21 = arith.mulf %20, %16 : vector<2x512xf32>
    %cst_12 = arith.constant 1.42141378 : f32
    %22 = vector.broadcast %cst_12 : f32 to vector<2x512xf32>
    %23 = arith.addf %21, %22 : vector<2x512xf32>
    %24 = arith.mulf %23, %16 : vector<2x512xf32>
    %cst_13 = arith.constant -0.284496725 : f32
    %25 = vector.broadcast %cst_13 : f32 to vector<2x512xf32>
    %26 = arith.addf %24, %25 : vector<2x512xf32>
    %27 = arith.mulf %26, %16 : vector<2x512xf32>
    %cst_14 = arith.constant 0.254829586 : f32
    %28 = vector.broadcast %cst_14 : f32 to vector<2x512xf32>
    %29 = arith.addf %27, %28 : vector<2x512xf32>
    %30 = arith.mulf %29, %16 : vector<2x512xf32>
    %cst_15 = arith.constant 0.000000e+00 : f32
    %31 = vector.broadcast %cst_15 : f32 to vector<2x512xf32>
    %32 = arith.subf %31, %10 : vector<2x512xf32>
    %33 = arith.mulf %32, %10 : vector<2x512xf32>
    %34 = math.exp %33 : vector<2x512xf32>
    %35 = arith.mulf %30, %34 : vector<2x512xf32>
    %cst_16 = arith.constant 1.000000e+00 : f32
    %36 = vector.broadcast %cst_16 : f32 to vector<2x512xf32>
    %37 = arith.subf %36, %35 : vector<2x512xf32>
    %cst_17 = arith.constant 0.000000e+00 : f32
    %38 = vector.broadcast %cst_17 : f32 to vector<2x512xf32>
    %39 = arith.cmpf oge, %9, %38 : vector<2x512xf32>
    %cst_18 = arith.constant 0.000000e+00 : f32
    %40 = vector.broadcast %cst_18 : f32 to vector<2x512xf32>
    %41 = arith.subf %40, %37 : vector<2x512xf32>
    %42 = arith.select %39, %37, %41 : vector<2x512xi1>, vector<2x512xf32>
    %cst_19 = arith.constant 1.000000e+00 : f32
    %43 = vector.broadcast %cst_19 : f32 to vector<2x512xf32>
    %44 = arith.addf %43, %42 : vector<2x512xf32>
    %45 = arith.mulf %7, %44 : vector<2x512xf32>
    %c0_20 = arith.constant 0 : index
    %c0_21 = arith.constant 0 : index
    %46 = vector.load %arg3[%c0_20, %c0_21] : memref<512x512xf32, #tpu.memory_space<vmem>>, vector<512x512xf32>
    %cst_22 = arith.constant dense<0.000000e+00> : vector<2x512xf32>
    %47 = tpu.matmul %45, %46, %cst_22 {dimension_numbers = #tpu.dot_dimension_numbers<[1], [0], [0], [1], [0, 0, 1, 1], [], []>} : vector<2x512xf32>, vector<512x512xf32>, vector<2x512xf32> -> vector<2x512xf32>
    %c0_23 = arith.constant 0 : index
    %c0_24 = arith.constant 0 : index
    %48 = vector.load %arg11[%c0_23, %c0_24] : memref<1x512xf32, #tpu.memory_space<vmem>>, vector<1x512xf32>
    %49 = vector.broadcast %48 : vector<1x512xf32> to vector<2x512xf32>
    %50 = arith.addf %47, %49 : vector<2x512xf32>
    %cst_25 = arith.constant 5.000000e-01 : f32
    %51 = vector.broadcast %cst_25 : f32 to vector<2x512xf32>
    %52 = arith.mulf %51, %50 : vector<2x512xf32>
    %cst_26 = arith.constant 0.707106769 : f32
    %53 = vector.broadcast %cst_26 : f32 to vector<2x512xf32>
    %54 = arith.mulf %50, %53 : vector<2x512xf32>
    %55 = math.absf %54 : vector<2x512xf32>
    %cst_27 = arith.constant 0.327591091 : f32
    %56 = vector.broadcast %cst_27 : f32 to vector<2x512xf32>
    %57 = arith.mulf %56, %55 : vector<2x512xf32>
    %cst_28 = arith.constant 1.000000e+00 : f32
    %58 = vector.broadcast %cst_28 : f32 to vector<2x512xf32>
    %59 = arith.addf %58, %57 : vector<2x512xf32>
    %cst_29 = arith.constant 1.000000e+00 : f32
    %60 = vector.broadcast %cst_29 : f32 to vector<2x512xf32>
    %61 = arith.divf %60, %59 : vector<2x512xf32>
    %cst_30 = arith.constant 1.06140542 : f32
    %62 = vector.broadcast %cst_30 : f32 to vector<2x512xf32>
    %63 = arith.mulf %62, %61 : vector<2x512xf32>
    %cst_31 = arith.constant -1.45315206 : f32
    %64 = vector.broadcast %cst_31 : f32 to vector<2x512xf32>
    %65 = arith.addf %63, %64 : vector<2x512xf32>
    %66 = arith.mulf %65, %61 : vector<2x512xf32>
    %cst_32 = arith.constant 1.42141378 : f32
    %67 = vector.broadcast %cst_32 : f32 to vector<2x512xf32>
    %68 = arith.addf %66, %67 : vector<2x512xf32>
    %69 = arith.mulf %68, %61 : vector<2x512xf32>
    %cst_33 = arith.constant -0.284496725 : f32
    %70 = vector.broadcast %cst_33 : f32 to vector<2x512xf32>
    %71 = arith.addf %69, %70 : vector<2x512xf32>
    %72 = arith.mulf %71, %61 : vector<2x512xf32>
    %cst_34 = arith.constant 0.254829586 : f32
    %73 = vector.broadcast %cst_34 : f32 to vector<2x512xf32>
    %74 = arith.addf %72, %73 : vector<2x512xf32>
    %75 = arith.mulf %74, %61 : vector<2x512xf32>
    %cst_35 = arith.constant 0.000000e+00 : f32
    %76 = vector.broadcast %cst_35 : f32 to vector<2x512xf32>
    %77 = arith.subf %76, %55 : vector<2x512xf32>
    %78 = arith.mulf %77, %55 : vector<2x512xf32>
    %79 = math.exp %78 : vector<2x512xf32>
    %80 = arith.mulf %75, %79 : vector<2x512xf32>
    %cst_36 = arith.constant 1.000000e+00 : f32
    %81 = vector.broadcast %cst_36 : f32 to vector<2x512xf32>
    %82 = arith.subf %81, %80 : vector<2x512xf32>
    %cst_37 = arith.constant 0.000000e+00 : f32
    %83 = vector.broadcast %cst_37 : f32 to vector<2x512xf32>
    %84 = arith.cmpf oge, %54, %83 : vector<2x512xf32>
    %cst_38 = arith.constant 0.000000e+00 : f32
    %85 = vector.broadcast %cst_38 : f32 to vector<2x512xf32>
    %86 = arith.subf %85, %82 : vector<2x512xf32>
    %87 = arith.select %84, %82, %86 : vector<2x512xi1>, vector<2x512xf32>
    %cst_39 = arith.constant 1.000000e+00 : f32
    %88 = vector.broadcast %cst_39 : f32 to vector<2x512xf32>
    %89 = arith.addf %88, %87 : vector<2x512xf32>
    %90 = arith.mulf %52, %89 : vector<2x512xf32>
    %c0_40 = arith.constant 0 : index
    %c0_41 = arith.constant 0 : index
    %91 = vector.load %arg4[%c0_40, %c0_41] : memref<512x512xf32, #tpu.memory_space<vmem>>, vector<512x512xf32>
    %cst_42 = arith.constant dense<0.000000e+00> : vector<2x512xf32>
    %92 = tpu.matmul %90, %91, %cst_42 {dimension_numbers = #tpu.dot_dimension_numbers<[1], [0], [0], [1], [0, 0, 1, 1], [], []>} : vector<2x512xf32>, vector<512x512xf32>, vector<2x512xf32> -> vector<2x512xf32>
    %c0_43 = arith.constant 0 : index
    %c0_44 = arith.constant 0 : index
    %93 = vector.load %arg12[%c0_43, %c0_44] : memref<1x512xf32, #tpu.memory_space<vmem>>, vector<1x512xf32>
    %94 = vector.broadcast %93 : vector<1x512xf32> to vector<2x512xf32>
    %95 = arith.addf %92, %94 : vector<2x512xf32>
    %cst_45 = arith.constant 5.000000e-01 : f32
    %96 = vector.broadcast %cst_45 : f32 to vector<2x512xf32>
    %97 = arith.mulf %96, %95 : vector<2x512xf32>
    %cst_46 = arith.constant 0.707106769 : f32
    %98 = vector.broadcast %cst_46 : f32 to vector<2x512xf32>
    %99 = arith.mulf %95, %98 : vector<2x512xf32>
    %100 = math.absf %99 : vector<2x512xf32>
    %cst_47 = arith.constant 0.327591091 : f32
    %101 = vector.broadcast %cst_47 : f32 to vector<2x512xf32>
    %102 = arith.mulf %101, %100 : vector<2x512xf32>
    %cst_48 = arith.constant 1.000000e+00 : f32
    %103 = vector.broadcast %cst_48 : f32 to vector<2x512xf32>
    %104 = arith.addf %103, %102 : vector<2x512xf32>
    %cst_49 = arith.constant 1.000000e+00 : f32
    %105 = vector.broadcast %cst_49 : f32 to vector<2x512xf32>
    %106 = arith.divf %105, %104 : vector<2x512xf32>
    %cst_50 = arith.constant 1.06140542 : f32
    %107 = vector.broadcast %cst_50 : f32 to vector<2x512xf32>
    %108 = arith.mulf %107, %106 : vector<2x512xf32>
    %cst_51 = arith.constant -1.45315206 : f32
    %109 = vector.broadcast %cst_51 : f32 to vector<2x512xf32>
    %110 = arith.addf %108, %109 : vector<2x512xf32>
    %111 = arith.mulf %110, %106 : vector<2x512xf32>
    %cst_52 = arith.constant 1.42141378 : f32
    %112 = vector.broadcast %cst_52 : f32 to vector<2x512xf32>
    %113 = arith.addf %111, %112 : vector<2x512xf32>
    %114 = arith.mulf %113, %106 : vector<2x512xf32>
    %cst_53 = arith.constant -0.284496725 : f32
    %115 = vector.broadcast %cst_53 : f32 to vector<2x512xf32>
    %116 = arith.addf %114, %115 : vector<2x512xf32>
    %117 = arith.mulf %116, %106 : vector<2x512xf32>
    %cst_54 = arith.constant 0.254829586 : f32
    %118 = vector.broadcast %cst_54 : f32 to vector<2x512xf32>
    %119 = arith.addf %117, %118 : vector<2x512xf32>
    %120 = arith.mulf %119, %106 : vector<2x512xf32>
    %cst_55 = arith.constant 0.000000e+00 : f32
    %121 = vector.broadcast %cst_55 : f32 to vector<2x512xf32>
    %122 = arith.subf %121, %100 : vector<2x512xf32>
    %123 = arith.mulf %122, %100 : vector<2x512xf32>
    %124 = math.exp %123 : vector<2x512xf32>
    %125 = arith.mulf %120, %124 : vector<2x512xf32>
    %cst_56 = arith.constant 1.000000e+00 : f32
    %126 = vector.broadcast %cst_56 : f32 to vector<2x512xf32>
    %127 = arith.subf %126, %125 : vector<2x512xf32>
    %cst_57 = arith.constant 0.000000e+00 : f32
    %128 = vector.broadcast %cst_57 : f32 to vector<2x512xf32>
    %129 = arith.cmpf oge, %99, %128 : vector<2x512xf32>
    %cst_58 = arith.constant 0.000000e+00 : f32
    %130 = vector.broadcast %cst_58 : f32 to vector<2x512xf32>
    %131 = arith.subf %130, %127 : vector<2x512xf32>
    %132 = arith.select %129, %127, %131 : vector<2x512xi1>, vector<2x512xf32>
    %cst_59 = arith.constant 1.000000e+00 : f32
    %133 = vector.broadcast %cst_59 : f32 to vector<2x512xf32>
    %134 = arith.addf %133, %132 : vector<2x512xf32>
    %135 = arith.mulf %97, %134 : vector<2x512xf32>
    %c0_60 = arith.constant 0 : index
    %c0_61 = arith.constant 0 : index
    %136 = vector.load %arg5[%c0_60, %c0_61] : memref<512x512xf32, #tpu.memory_space<vmem>>, vector<512x512xf32>
    %cst_62 = arith.constant dense<0.000000e+00> : vector<2x512xf32>
    %137 = tpu.matmul %135, %136, %cst_62 {dimension_numbers = #tpu.dot_dimension_numbers<[1], [0], [0], [1], [0, 0, 1, 1], [], []>} : vector<2x512xf32>, vector<512x512xf32>, vector<2x512xf32> -> vector<2x512xf32>
    %c0_63 = arith.constant 0 : index
    %c0_64 = arith.constant 0 : index
    %138 = vector.load %arg13[%c0_63, %c0_64] : memref<1x512xf32, #tpu.memory_space<vmem>>, vector<1x512xf32>
    %139 = vector.broadcast %138 : vector<1x512xf32> to vector<2x512xf32>
    %140 = arith.addf %137, %139 : vector<2x512xf32>
    %cst_65 = arith.constant 5.000000e-01 : f32
    %141 = vector.broadcast %cst_65 : f32 to vector<2x512xf32>
    %142 = arith.mulf %141, %140 : vector<2x512xf32>
    %cst_66 = arith.constant 0.707106769 : f32
    %143 = vector.broadcast %cst_66 : f32 to vector<2x512xf32>
    %144 = arith.mulf %140, %143 : vector<2x512xf32>
    %145 = math.absf %144 : vector<2x512xf32>
    %cst_67 = arith.constant 0.327591091 : f32
    %146 = vector.broadcast %cst_67 : f32 to vector<2x512xf32>
    %147 = arith.mulf %146, %145 : vector<2x512xf32>
    %cst_68 = arith.constant 1.000000e+00 : f32
    %148 = vector.broadcast %cst_68 : f32 to vector<2x512xf32>
    %149 = arith.addf %148, %147 : vector<2x512xf32>
    %cst_69 = arith.constant 1.000000e+00 : f32
    %150 = vector.broadcast %cst_69 : f32 to vector<2x512xf32>
    %151 = arith.divf %150, %149 : vector<2x512xf32>
    %cst_70 = arith.constant 1.06140542 : f32
    %152 = vector.broadcast %cst_70 : f32 to vector<2x512xf32>
    %153 = arith.mulf %152, %151 : vector<2x512xf32>
    %cst_71 = arith.constant -1.45315206 : f32
    %154 = vector.broadcast %cst_71 : f32 to vector<2x512xf32>
    %155 = arith.addf %153, %154 : vector<2x512xf32>
    %156 = arith.mulf %155, %151 : vector<2x512xf32>
    %cst_72 = arith.constant 1.42141378 : f32
    %157 = vector.broadcast %cst_72 : f32 to vector<2x512xf32>
    %158 = arith.addf %156, %157 : vector<2x512xf32>
    %159 = arith.mulf %158, %151 : vector<2x512xf32>
    %cst_73 = arith.constant -0.284496725 : f32
    %160 = vector.broadcast %cst_73 : f32 to vector<2x512xf32>
    %161 = arith.addf %159, %160 : vector<2x512xf32>
    %162 = arith.mulf %161, %151 : vector<2x512xf32>
    %cst_74 = arith.constant 0.254829586 : f32
    %163 = vector.broadcast %cst_74 : f32 to vector<2x512xf32>
    %164 = arith.addf %162, %163 : vector<2x512xf32>
    %165 = arith.mulf %164, %151 : vector<2x512xf32>
    %cst_75 = arith.constant 0.000000e+00 : f32
    %166 = vector.broadcast %cst_75 : f32 to vector<2x512xf32>
    %167 = arith.subf %166, %145 : vector<2x512xf32>
    %168 = arith.mulf %167, %145 : vector<2x512xf32>
    %169 = math.exp %168 : vector<2x512xf32>
    %170 = arith.mulf %165, %169 : vector<2x512xf32>
    %cst_76 = arith.constant 1.000000e+00 : f32
    %171 = vector.broadcast %cst_76 : f32 to vector<2x512xf32>
    %172 = arith.subf %171, %170 : vector<2x512xf32>
    %cst_77 = arith.constant 0.000000e+00 : f32
    %173 = vector.broadcast %cst_77 : f32 to vector<2x512xf32>
    %174 = arith.cmpf oge, %144, %173 : vector<2x512xf32>
    %cst_78 = arith.constant 0.000000e+00 : f32
    %175 = vector.broadcast %cst_78 : f32 to vector<2x512xf32>
    %176 = arith.subf %175, %172 : vector<2x512xf32>
    %177 = arith.select %174, %172, %176 : vector<2x512xi1>, vector<2x512xf32>
    %cst_79 = arith.constant 1.000000e+00 : f32
    %178 = vector.broadcast %cst_79 : f32 to vector<2x512xf32>
    %179 = arith.addf %178, %177 : vector<2x512xf32>
    %180 = arith.mulf %142, %179 : vector<2x512xf32>
    %c0_80 = arith.constant 0 : index
    %c0_81 = arith.constant 0 : index
    %181 = vector.load %arg6[%c0_80, %c0_81] : memref<512x512xf32, #tpu.memory_space<vmem>>, vector<512x512xf32>
    %cst_82 = arith.constant dense<0.000000e+00> : vector<2x512xf32>
    %182 = tpu.matmul %180, %181, %cst_82 {dimension_numbers = #tpu.dot_dimension_numbers<[1], [0], [0], [1], [0, 0, 1, 1], [], []>} : vector<2x512xf32>, vector<512x512xf32>, vector<2x512xf32> -> vector<2x512xf32>
    %c0_83 = arith.constant 0 : index
    %c0_84 = arith.constant 0 : index
    %183 = vector.load %arg14[%c0_83, %c0_84] : memref<1x512xf32, #tpu.memory_space<vmem>>, vector<1x512xf32>
    %184 = vector.broadcast %183 : vector<1x512xf32> to vector<2x512xf32>
    %185 = arith.addf %182, %184 : vector<2x512xf32>
    %cst_85 = arith.constant 5.000000e-01 : f32
    %186 = vector.broadcast %cst_85 : f32 to vector<2x512xf32>
    %187 = arith.mulf %186, %185 : vector<2x512xf32>
    %cst_86 = arith.constant 0.707106769 : f32
    %188 = vector.broadcast %cst_86 : f32 to vector<2x512xf32>
    %189 = arith.mulf %185, %188 : vector<2x512xf32>
    %190 = math.absf %189 : vector<2x512xf32>
    %cst_87 = arith.constant 0.327591091 : f32
    %191 = vector.broadcast %cst_87 : f32 to vector<2x512xf32>
    %192 = arith.mulf %191, %190 : vector<2x512xf32>
    %cst_88 = arith.constant 1.000000e+00 : f32
    %193 = vector.broadcast %cst_88 : f32 to vector<2x512xf32>
    %194 = arith.addf %193, %192 : vector<2x512xf32>
    %cst_89 = arith.constant 1.000000e+00 : f32
    %195 = vector.broadcast %cst_89 : f32 to vector<2x512xf32>
    %196 = arith.divf %195, %194 : vector<2x512xf32>
    %cst_90 = arith.constant 1.06140542 : f32
    %197 = vector.broadcast %cst_90 : f32 to vector<2x512xf32>
    %198 = arith.mulf %197, %196 : vector<2x512xf32>
    %cst_91 = arith.constant -1.45315206 : f32
    %199 = vector.broadcast %cst_91 : f32 to vector<2x512xf32>
    %200 = arith.addf %198, %199 : vector<2x512xf32>
    %201 = arith.mulf %200, %196 : vector<2x512xf32>
    %cst_92 = arith.constant 1.42141378 : f32
    %202 = vector.broadcast %cst_92 : f32 to vector<2x512xf32>
    %203 = arith.addf %201, %202 : vector<2x512xf32>
    %204 = arith.mulf %203, %196 : vector<2x512xf32>
    %cst_93 = arith.constant -0.284496725 : f32
    %205 = vector.broadcast %cst_93 : f32 to vector<2x512xf32>
    %206 = arith.addf %204, %205 : vector<2x512xf32>
    %207 = arith.mulf %206, %196 : vector<2x512xf32>
    %cst_94 = arith.constant 0.254829586 : f32
    %208 = vector.broadcast %cst_94 : f32 to vector<2x512xf32>
    %209 = arith.addf %207, %208 : vector<2x512xf32>
    %210 = arith.mulf %209, %196 : vector<2x512xf32>
    %cst_95 = arith.constant 0.000000e+00 : f32
    %211 = vector.broadcast %cst_95 : f32 to vector<2x512xf32>
    %212 = arith.subf %211, %190 : vector<2x512xf32>
    %213 = arith.mulf %212, %190 : vector<2x512xf32>
    %214 = math.exp %213 : vector<2x512xf32>
    %215 = arith.mulf %210, %214 : vector<2x512xf32>
    %cst_96 = arith.constant 1.000000e+00 : f32
    %216 = vector.broadcast %cst_96 : f32 to vector<2x512xf32>
    %217 = arith.subf %216, %215 : vector<2x512xf32>
    %cst_97 = arith.constant 0.000000e+00 : f32
    %218 = vector.broadcast %cst_97 : f32 to vector<2x512xf32>
    %219 = arith.cmpf oge, %189, %218 : vector<2x512xf32>
    %cst_98 = arith.constant 0.000000e+00 : f32
    %220 = vector.broadcast %cst_98 : f32 to vector<2x512xf32>
    %221 = arith.subf %220, %217 : vector<2x512xf32>
    %222 = arith.select %219, %217, %221 : vector<2x512xi1>, vector<2x512xf32>
    %cst_99 = arith.constant 1.000000e+00 : f32
    %223 = vector.broadcast %cst_99 : f32 to vector<2x512xf32>
    %224 = arith.addf %223, %222 : vector<2x512xf32>
    %225 = arith.mulf %187, %224 : vector<2x512xf32>
    %c0_100 = arith.constant 0 : index
    %c0_101 = arith.constant 0 : index
    %226 = vector.load %arg7[%c0_100, %c0_101] : memref<512x512xf32, #tpu.memory_space<vmem>>, vector<512x512xf32>
    %cst_102 = arith.constant dense<0.000000e+00> : vector<2x512xf32>
    %227 = tpu.matmul %225, %226, %cst_102 {dimension_numbers = #tpu.dot_dimension_numbers<[1], [0], [0], [1], [0, 0, 1, 1], [], []>} : vector<2x512xf32>, vector<512x512xf32>, vector<2x512xf32> -> vector<2x512xf32>
    %c0_103 = arith.constant 0 : index
    %c0_104 = arith.constant 0 : index
    %228 = vector.load %arg15[%c0_103, %c0_104] : memref<1x512xf32, #tpu.memory_space<vmem>>, vector<1x512xf32>
    %229 = vector.broadcast %228 : vector<1x512xf32> to vector<2x512xf32>
    %230 = arith.addf %227, %229 : vector<2x512xf32>
    %cst_105 = arith.constant 5.000000e-01 : f32
    %231 = vector.broadcast %cst_105 : f32 to vector<2x512xf32>
    %232 = arith.mulf %231, %230 : vector<2x512xf32>
    %cst_106 = arith.constant 0.707106769 : f32
    %233 = vector.broadcast %cst_106 : f32 to vector<2x512xf32>
    %234 = arith.mulf %230, %233 : vector<2x512xf32>
    %235 = math.absf %234 : vector<2x512xf32>
    %cst_107 = arith.constant 0.327591091 : f32
    %236 = vector.broadcast %cst_107 : f32 to vector<2x512xf32>
    %237 = arith.mulf %236, %235 : vector<2x512xf32>
    %cst_108 = arith.constant 1.000000e+00 : f32
    %238 = vector.broadcast %cst_108 : f32 to vector<2x512xf32>
    %239 = arith.addf %238, %237 : vector<2x512xf32>
    %cst_109 = arith.constant 1.000000e+00 : f32
    %240 = vector.broadcast %cst_109 : f32 to vector<2x512xf32>
    %241 = arith.divf %240, %239 : vector<2x512xf32>
    %cst_110 = arith.constant 1.06140542 : f32
    %242 = vector.broadcast %cst_110 : f32 to vector<2x512xf32>
    %243 = arith.mulf %242, %241 : vector<2x512xf32>
    %cst_111 = arith.constant -1.45315206 : f32
    %244 = vector.broadcast %cst_111 : f32 to vector<2x512xf32>
    %245 = arith.addf %243, %244 : vector<2x512xf32>
    %246 = arith.mulf %245, %241 : vector<2x512xf32>
    %cst_112 = arith.constant 1.42141378 : f32
    %247 = vector.broadcast %cst_112 : f32 to vector<2x512xf32>
    %248 = arith.addf %246, %247 : vector<2x512xf32>
    %249 = arith.mulf %248, %241 : vector<2x512xf32>
    %cst_113 = arith.constant -0.284496725 : f32
    %250 = vector.broadcast %cst_113 : f32 to vector<2x512xf32>
    %251 = arith.addf %249, %250 : vector<2x512xf32>
    %252 = arith.mulf %251, %241 : vector<2x512xf32>
    %cst_114 = arith.constant 0.254829586 : f32
    %253 = vector.broadcast %cst_114 : f32 to vector<2x512xf32>
    %254 = arith.addf %252, %253 : vector<2x512xf32>
    %255 = arith.mulf %254, %241 : vector<2x512xf32>
    %cst_115 = arith.constant 0.000000e+00 : f32
    %256 = vector.broadcast %cst_115 : f32 to vector<2x512xf32>
    %257 = arith.subf %256, %235 : vector<2x512xf32>
    %258 = arith.mulf %257, %235 : vector<2x512xf32>
    %259 = math.exp %258 : vector<2x512xf32>
    %260 = arith.mulf %255, %259 : vector<2x512xf32>
    %cst_116 = arith.constant 1.000000e+00 : f32
    %261 = vector.broadcast %cst_116 : f32 to vector<2x512xf32>
    %262 = arith.subf %261, %260 : vector<2x512xf32>
    %cst_117 = arith.constant 0.000000e+00 : f32
    %263 = vector.broadcast %cst_117 : f32 to vector<2x512xf32>
    %264 = arith.cmpf oge, %234, %263 : vector<2x512xf32>
    %cst_118 = arith.constant 0.000000e+00 : f32
    %265 = vector.broadcast %cst_118 : f32 to vector<2x512xf32>
    %266 = arith.subf %265, %262 : vector<2x512xf32>
    %267 = arith.select %264, %262, %266 : vector<2x512xi1>, vector<2x512xf32>
    %cst_119 = arith.constant 1.000000e+00 : f32
    %268 = vector.broadcast %cst_119 : f32 to vector<2x512xf32>
    %269 = arith.addf %268, %267 : vector<2x512xf32>
    %270 = arith.mulf %232, %269 : vector<2x512xf32>
    %c0_120 = arith.constant 0 : index
    %c0_121 = arith.constant 0 : index
    %271 = vector.load %arg8[%c0_120, %c0_121] : memref<512x512xf32, #tpu.memory_space<vmem>>, vector<512x512xf32>
    %cst_122 = arith.constant dense<0.000000e+00> : vector<2x512xf32>
    %272 = tpu.matmul %270, %271, %cst_122 {dimension_numbers = #tpu.dot_dimension_numbers<[1], [0], [0], [1], [0, 0, 1, 1], [], []>} : vector<2x512xf32>, vector<512x512xf32>, vector<2x512xf32> -> vector<2x512xf32>
    %c0_123 = arith.constant 0 : index
    %c0_124 = arith.constant 0 : index
    %273 = vector.load %arg16[%c0_123, %c0_124] : memref<1x512xf32, #tpu.memory_space<vmem>>, vector<1x512xf32>
    %274 = vector.broadcast %273 : vector<1x512xf32> to vector<2x512xf32>
    %275 = arith.addf %272, %274 : vector<2x512xf32>
    %cst_125 = arith.constant 5.000000e-01 : f32
    %276 = vector.broadcast %cst_125 : f32 to vector<2x512xf32>
    %277 = arith.mulf %276, %275 : vector<2x512xf32>
    %cst_126 = arith.constant 0.707106769 : f32
    %278 = vector.broadcast %cst_126 : f32 to vector<2x512xf32>
    %279 = arith.mulf %275, %278 : vector<2x512xf32>
    %280 = math.absf %279 : vector<2x512xf32>
    %cst_127 = arith.constant 0.327591091 : f32
    %281 = vector.broadcast %cst_127 : f32 to vector<2x512xf32>
    %282 = arith.mulf %281, %280 : vector<2x512xf32>
    %cst_128 = arith.constant 1.000000e+00 : f32
    %283 = vector.broadcast %cst_128 : f32 to vector<2x512xf32>
    %284 = arith.addf %283, %282 : vector<2x512xf32>
    %cst_129 = arith.constant 1.000000e+00 : f32
    %285 = vector.broadcast %cst_129 : f32 to vector<2x512xf32>
    %286 = arith.divf %285, %284 : vector<2x512xf32>
    %cst_130 = arith.constant 1.06140542 : f32
    %287 = vector.broadcast %cst_130 : f32 to vector<2x512xf32>
    %288 = arith.mulf %287, %286 : vector<2x512xf32>
    %cst_131 = arith.constant -1.45315206 : f32
    %289 = vector.broadcast %cst_131 : f32 to vector<2x512xf32>
    %290 = arith.addf %288, %289 : vector<2x512xf32>
    %291 = arith.mulf %290, %286 : vector<2x512xf32>
    %cst_132 = arith.constant 1.42141378 : f32
    %292 = vector.broadcast %cst_132 : f32 to vector<2x512xf32>
    %293 = arith.addf %291, %292 : vector<2x512xf32>
    %294 = arith.mulf %293, %286 : vector<2x512xf32>
    %cst_133 = arith.constant -0.284496725 : f32
    %295 = vector.broadcast %cst_133 : f32 to vector<2x512xf32>
    %296 = arith.addf %294, %295 : vector<2x512xf32>
    %297 = arith.mulf %296, %286 : vector<2x512xf32>
    %cst_134 = arith.constant 0.254829586 : f32
    %298 = vector.broadcast %cst_134 : f32 to vector<2x512xf32>
    %299 = arith.addf %297, %298 : vector<2x512xf32>
    %300 = arith.mulf %299, %286 : vector<2x512xf32>
    %cst_135 = arith.constant 0.000000e+00 : f32
    %301 = vector.broadcast %cst_135 : f32 to vector<2x512xf32>
    %302 = arith.subf %301, %280 : vector<2x512xf32>
    %303 = arith.mulf %302, %280 : vector<2x512xf32>
    %304 = math.exp %303 : vector<2x512xf32>
    %305 = arith.mulf %300, %304 : vector<2x512xf32>
    %cst_136 = arith.constant 1.000000e+00 : f32
    %306 = vector.broadcast %cst_136 : f32 to vector<2x512xf32>
    %307 = arith.subf %306, %305 : vector<2x512xf32>
    %cst_137 = arith.constant 0.000000e+00 : f32
    %308 = vector.broadcast %cst_137 : f32 to vector<2x512xf32>
    %309 = arith.cmpf oge, %279, %308 : vector<2x512xf32>
    %cst_138 = arith.constant 0.000000e+00 : f32
    %310 = vector.broadcast %cst_138 : f32 to vector<2x512xf32>
    %311 = arith.subf %310, %307 : vector<2x512xf32>
    %312 = arith.select %309, %307, %311 : vector<2x512xi1>, vector<2x512xf32>
    %cst_139 = arith.constant 1.000000e+00 : f32
    %313 = vector.broadcast %cst_139 : f32 to vector<2x512xf32>
    %314 = arith.addf %313, %312 : vector<2x512xf32>
    %315 = arith.mulf %277, %314 : vector<2x512xf32>
    %c0_140 = arith.constant 0 : index
    %c0_141 = arith.constant 0 : index
    %316 = vector.load %arg9[%c0_140, %c0_141] : memref<512x64xf32, #tpu.memory_space<vmem>>, vector<512x64xf32>
    %cst_142 = arith.constant dense<0.000000e+00> : vector<2x64xf32>
    %317 = tpu.matmul %315, %316, %cst_142 {dimension_numbers = #tpu.dot_dimension_numbers<[1], [0], [0], [1], [0, 0, 1, 1], [], []>} : vector<2x512xf32>, vector<512x64xf32>, vector<2x64xf32> -> vector<2x64xf32>
    %c0_143 = arith.constant 0 : index
    %c0_144 = arith.constant 0 : index
    %318 = vector.load %arg17[%c0_143, %c0_144] : memref<1x64xf32, #tpu.memory_space<vmem>>, vector<1x64xf32>
    %319 = vector.broadcast %318 : vector<1x64xf32> to vector<2x64xf32>
    %320 = arith.addf %317, %319 : vector<2x64xf32>
    %c0_145 = arith.constant 0 : index
    %c0_146 = arith.constant 0 : index
    %321 = vector.load %arg18[%c0_145, %c0_146] : memref<2x64xf32, #tpu.memory_space<vmem>>, vector<2x64xf32>
    tpu.vector_store %arg18[%c0_145, %c0_146], %320 {strides = array<i32>} : memref<2x64xf32, #tpu.memory_space<vmem>>, vector<2x64xf32>,
    return
  }
  func.func @transform_0(%arg0: i32) -> (i32, i32) {
    %c0_i32 = arith.constant 0 : i32
    %c0_i32_0 = arith.constant 0 : i32
    return %arg0, %c0_i32 : i32, i32
  }
  func.func @transform_1(%arg0: i32) -> (i32, i32) {
    %c0_i32 = arith.constant 0 : i32
    %c0_i32_0 = arith.constant 0 : i32
    %c0_i32_1 = arith.constant 0 : i32
    return %c0_i32, %c0_i32_0 : i32, i32
  }
  func.func @transform_2(%arg0: i32) -> (i32, i32) {
    %c0_i32 = arith.constant 0 : i32
    %c0_i32_0 = arith.constant 0 : i32
    %c0_i32_1 = arith.constant 0 : i32
    return %c0_i32, %c0_i32_0 : i32, i32
  }
  func.func @transform_3(%arg0: i32) -> (i32, i32) {
    %c0_i32 = arith.constant 0 : i32
    %c0_i32_0 = arith.constant 0 : i32
    %c0_i32_1 = arith.constant 0 : i32
    return %c0_i32, %c0_i32_0 : i32, i32
  }
  func.func @transform_4(%arg0: i32) -> (i32, i32) {
    %c0_i32 = arith.constant 0 : i32
    %c0_i32_0 = arith.constant 0 : i32
    %c0_i32_1 = arith.constant 0 : i32
    return %c0_i32, %c0_i32_0 : i32, i32
  }
  func.func @transform_5(%arg0: i32) -> (i32, i32) {
    %c0_i32 = arith.constant 0 : i32
    %c0_i32_0 = arith.constant 0 : i32
    %c0_i32_1 = arith.constant 0 : i32
    return %c0_i32, %c0_i32_0 : i32, i32
  }
  func.func @transform_6(%arg0: i32) -> (i32, i32) {
    %c0_i32 = arith.constant 0 : i32
    %c0_i32_0 = arith.constant 0 : i32
    %c0_i32_1 = arith.constant 0 : i32
    return %c0_i32, %c0_i32_0 : i32, i32
  }
  func.func @transform_7(%arg0: i32) -> (i32, i32) {
    %c0_i32 = arith.constant 0 : i32
    %c0_i32_0 = arith.constant 0 : i32
    %c0_i32_1 = arith.constant 0 : i32
    return %c0_i32, %c0_i32_0 : i32, i32
  }
  func.func @transform_8(%arg0: i32) -> (i32, i32) {
    %c0_i32 = arith.constant 0 : i32
    %c0_i32_0 = arith.constant 0 : i32
    %c0_i32_1 = arith.constant 0 : i32
    return %c0_i32, %c0_i32_0 : i32, i32
  }
  func.func @transform_9(%arg0: i32) -> (i32, i32) {
    %c0_i32 = arith.constant 0 : i32
    %c0_i32_0 = arith.constant 0 : i32
    %c0_i32_1 = arith.constant 0 : i32
    return %c0_i32, %c0_i32_0 : i32, i32
  }
  func.func @transform_10(%arg0: i32) -> (i32, i32) {
    %c0_i32 = arith.constant 0 : i32
    %c0_i32_0 = arith.constant 0 : i32
    %c0_i32_1 = arith.constant 0 : i32
    return %c0_i32, %c0_i32_0 : i32, i32
  }
  func.func @transform_11(%arg0: i32) -> (i32, i32) {
    %c0_i32 = arith.constant 0 : i32
    %c0_i32_0 = arith.constant 0 : i32
    %c0_i32_1 = arith.constant 0 : i32
    return %c0_i32, %c0_i32_0 : i32, i32
  }
  func.func @transform_12(%arg0: i32) -> (i32, i32) {
    %c0_i32 = arith.constant 0 : i32
    %c0_i32_0 = arith.constant 0 : i32
    %c0_i32_1 = arith.constant 0 : i32
    return %c0_i32, %c0_i32_0 : i32, i32
  }
  func.func @transform_13(%arg0: i32) -> (i32, i32) {
    %c0_i32 = arith.constant 0 : i32
    %c0_i32_0 = arith.constant 0 : i32
    %c0_i32_1 = arith.constant 0 : i32
    return %c0_i32, %c0_i32_0 : i32, i32
  }
  func.func @transform_14(%arg0: i32) -> (i32, i32) {
    %c0_i32 = arith.constant 0 : i32
    %c0_i32_0 = arith.constant 0 : i32
    %c0_i32_1 = arith.constant 0 : i32
    return %c0_i32, %c0_i32_0 : i32, i32
  }
  func.func @transform_15(%arg0: i32) -> (i32, i32) {
    %c0_i32 = arith.constant 0 : i32
    %c0_i32_0 = arith.constant 0 : i32
    %c0_i32_1 = arith.constant 0 : i32
    return %c0_i32, %c0_i32_0 : i32, i32
  }
  func.func @transform_16(%arg0: i32) -> (i32, i32) {
    %c0_i32 = arith.constant 0 : i32
    %c0_i32_0 = arith.constant 0 : i32
    %c0_i32_1 = arith.constant 0 : i32
    return %c0_i32, %c0_i32_0 : i32, i32
  }
  func.func @transform_17(%arg0: i32) -> (i32, i32) {
    %c0_i32 = arith.constant 0 : i32
    %c0_i32_0 = arith.constant 0 : i32
    return %arg0, %c0_i32 : i32, i32
  }
}

</mosaic_0001>

<llo_original>
// kernel: tpu_custom_call.1
$region0: #{tpu_custom_call.1}
  #allocation0 [shape = 'u32[]', space=smem, size = 0x4, offset = 0x4, fixed_abs, tag = 'smem constant byte address 0x4 - core index']
  #allocation1 [shape = 'u32[144,128]{1,0:T(1,128)}', space=vmem, size = 0x12000, scoped, tag = 'internal scratch']
  %s0 = inlined_call_operand.vmem [shape: f32[2,64], index: 0, kind: input, shape index: {}]
  %s1 = inlined_call_operand.vmem [shape: f32[64,512], index: 1, kind: input, shape index: {}]
  %s2 = inlined_call_operand.hbm [shape: f32[512,512], index: 2, kind: input, shape index: {}]
  %s3 = inlined_call_operand.hbm [shape: f32[512,512], index: 3, kind: input, shape index: {}]
  %s4 = inlined_call_operand.hbm [shape: f32[512,512], index: 4, kind: input, shape index: {}]
  %s5 = inlined_call_operand.hbm [shape: f32[512,512], index: 5, kind: input, shape index: {}]
  %s6 = inlined_call_operand.hbm [shape: f32[512,512], index: 6, kind: input, shape index: {}]
  %s7 = inlined_call_operand.hbm [shape: f32[512,512], index: 7, kind: input, shape index: {}]
  %s8 = inlined_call_operand.vmem [shape: f32[512,64], index: 8, kind: input, shape index: {}]
  %s9 = inlined_call_operand.vmem [shape: f32[1,512], index: 9, kind: input, shape index: {}]
  %s10 = inlined_call_operand.vmem [shape: f32[1,512], index: 10, kind: input, shape index: {}]
  %s11 = inlined_call_operand.vmem [shape: f32[1,512], index: 11, kind: input, shape index: {}]
  %s12 = inlined_call_operand.vmem [shape: f32[1,512], index: 12, kind: input, shape index: {}]
  %s13 = inlined_call_operand.vmem [shape: f32[1,512], index: 13, kind: input, shape index: {}]
  %s14 = inlined_call_operand.vmem [shape: f32[1,512], index: 14, kind: input, shape index: {}]
  %s15 = inlined_call_operand.vmem [shape: f32[1,512], index: 15, kind: input, shape index: {}]
  %s16 = inlined_call_operand.vmem [shape: f32[1,64], index: 16, kind: input, shape index: {}]
  %s17 = inlined_call_operand.hbm [shape: f32[2,64], index: 17, kind: output, shape index: {}]
  %s18 = sld [smem:[#allocation0]]
  $region102: #{tpu_custom_call.1} parent=0
    _
  %s20 = ssub.s32 1, %s18
  %s21 = scalar_select 0, %s20, %s18
  $region1: #{tpu_custom_call.1} parent=0
    #allocation2 [shape = 'u8[1048576]{0}', space=vmem, size = 0x100000, scoped, tag = 'input window, operand 2, single buffered']
    #allocation3 [shape = 's32[1]{0}', space=sflag, size = 0x4, scoped, tag = 'scoped memory for tpu_custom_call.1']
    #allocation4 [shape = 's32[1]{0}', space=sflag, size = 0x4, scoped, tag = 'scoped memory for tpu_custom_call.1']
    #allocation5 [shape = 'u8[1048576]{0}', space=vmem, size = 0x100000, scoped, tag = 'input window, operand 3, single buffered']
    #allocation6 [shape = 's32[1]{0}', space=sflag, size = 0x4, scoped, tag = 'scoped memory for tpu_custom_call.1']
    #allocation7 [shape = 'u8[1048576]{0}', space=vmem, size = 0x100000, scoped, tag = 'input window, operand 4, single buffered']
    #allocation8 [shape = 'u8[1048576]{0}', space=vmem, size = 0x100000, scoped, tag = 'input window, operand 5, single buffered']
    #allocation9 [shape = 's32[1]{0}', space=sflag, size = 0x4, scoped, tag = 'scoped memory for tpu_custom_call.1']
    #allocation10 [shape = 'u8[1048576]{0}', space=vmem, size = 0x100000, scoped, tag = 'input window, operand 6, single buffered']
    #allocation11 [shape = 'u8[1048576]{0}', space=vmem, size = 0x100000, scoped, tag = 'input window, operand 7, single buffered']
    #allocation12 [shape = 's32[1]{0}', space=sflag, size = 0x4, scoped, tag = 'scoped memory for tpu_custom_call.1']
    #allocation13 [shape = 'u8[1024]{0}', space=vmem, size = 0x400, scoped, tag = 'output window, operand 0, single buffered']
    %22 = vsyncpa [#allocation3], 0
    %23 = vsyncpa [#allocation6], 0
    %24 = vsyncpa [#allocation9], 0
    %25 = vsyncpa [#allocation12], 0
    %26 = vsyncpa [#allocation4], 0
    // Predicated region
    $region2: #{tpu_custom_call.1} parent=1 // pred_check
      _
    $region3: #{tpu_custom_call.1} parent=1 // pred_check_branch
      %28 = sbr.rel (0) target = $region5
    $region4: #{tpu_custom_call.1} parent=1 // pred_region
      _
    $region5: #{tpu_custom_call.1} parent=1 // pred_fallthru
      _
    // Predicated region
    $region6: #{tpu_custom_call.1} parent=1 // pred_check
      _
    $region7: #{tpu_custom_call.1} parent=1 // pred_check_branch
      %30 = sbr.rel (0) target = $region9
    $region8: #{tpu_custom_call.1} parent=1 // pred_region
      _
    $region9: #{tpu_custom_call.1} parent=1 // pred_fallthru
      _
    // Predicated region
    $region10: #{tpu_custom_call.1} parent=1 // pred_check
      _
    $region11: #{tpu_custom_call.1} parent=1 // pred_check_branch
      %32 = sbr.rel (0) target = $region13
    $region12: #{tpu_custom_call.1} parent=1 // pred_region
      %s34 = ssub.s32 32768, 32768
      %35 = vsyncadd [#allocation3], %s34
      %s36 = sshll.u32 [#allocation2], 4
      %s37 = int_to_ptr.vmem [resolvable:$true] %s36
      %42 = dma.hbm_to_vmem [thread:$0]  %s2, 32768, %s37, [#allocation3], 512, 512, 32
    $region13: #{tpu_custom_call.1} parent=1 // pred_fallthru
      _
    // Predicated region
    $region14: #{tpu_custom_call.1} parent=1 // pred_check
      _
    $region15: #{tpu_custom_call.1} parent=1 // pred_check_branch
      %44 = sbr.rel (0) target = $region17
    $region16: #{tpu_custom_call.1} parent=1 // pred_region
      %s46 = ssub.s32 32768, 32768
      %47 = vsyncadd [#allocation6], %s46
      %s48 = sshll.u32 [#allocation5], 4
      %s49 = int_to_ptr.vmem [resolvable:$true] %s48
      %54 = dma.hbm_to_vmem [thread:$0]  %s3, 32768, %s49, [#allocation6], 512, 512, 32
    $region17: #{tpu_custom_call.1} parent=1 // pred_fallthru
      _
    // Predicated region
    $region18: #{tpu_custom_call.1} parent=1 // pred_check
      _
    $region19: #{tpu_custom_call.1} parent=1 // pred_check_branch
      %56 = sbr.rel (0) target = $region21
    $region20: #{tpu_custom_call.1} parent=1 // pred_region
      %s58 = ssub.s32 32768, 32768
      %59 = vsyncadd [#allocation6], %s58
      %s60 = sshll.u32 [#allocation7], 4
      %s61 = int_to_ptr.vmem [resolvable:$true] %s60
      %66 = dma.hbm_to_vmem [thread:$0]  %s4, 32768, %s61, [#allocation6], 512, 512, 32
    $region21: #{tpu_custom_call.1} parent=1 // pred_fallthru
      _
    // Predicated region
    $region22: #{tpu_custom_call.1} parent=1 // pred_check
      _
    $region23: #{tpu_custom_call.1} parent=1 // pred_check_branch
      %68 = sbr.rel (0) target = $region25
    $region24: #{tpu_custom_call.1} parent=1 // pred_region
      %s70 = ssub.s32 32768, 32768
      %71 = vsyncadd [#allocation9], %s70
      %s72 = sshll.u32 [#allocation8], 4
      %s73 = int_to_ptr.vmem [resolvable:$true] %s72
      %78 = dma.hbm_to_vmem [thread:$0]  %s5, 32768, %s73, [#allocation9], 512, 512, 32
    $region25: #{tpu_custom_call.1} parent=1 // pred_fallthru
      _
    // Predicated region
    $region26: #{tpu_custom_call.1} parent=1 // pred_check
      _
    $region27: #{tpu_custom_call.1} parent=1 // pred_check_branch
      %80 = sbr.rel (0) target = $region29
    $region28: #{tpu_custom_call.1} parent=1 // pred_region
      %s82 = ssub.s32 32768, 32768
      %83 = vsyncadd [#allocation9], %s82
      %s84 = sshll.u32 [#allocation10], 4
      %s85 = int_to_ptr.vmem [resolvable:$true] %s84
      %90 = dma.hbm_to_vmem [thread:$0]  %s6, 32768, %s85, [#allocation9], 512, 512, 32
    $region29: #{tpu_custom_call.1} parent=1 // pred_fallthru
      _
    // Predicated region
    $region30: #{tpu_custom_call.1} parent=1 // pred_check
      _
    $region31: #{tpu_custom_call.1} parent=1 // pred_check_branch
      %92 = sbr.rel (0) target = $region33
    $region32: #{tpu_custom_call.1} parent=1 // pred_region
      %s94 = ssub.s32 32768, 32768
      %95 = vsyncadd [#allocation12], %s94
      %s96 = sshll.u32 [#allocation11], 4
      %s97 = int_to_ptr.vmem [resolvable:$true] %s96
      %102 = dma.hbm_to_vmem [thread:$0]  %s7, 32768, %s97, [#allocation12], 512, 512, 32
    $region33: #{tpu_custom_call.1} parent=1 // pred_fallthru
      _
    // Predicated region
    $region34: #{tpu_custom_call.1} parent=1 // pred_check
      _
    $region35: #{tpu_custom_call.1} parent=1 // pred_check_branch
      %104 = sbr.rel (0) target = $region37
    $region36: #{tpu_custom_call.1} parent=1 // pred_region
      _
    $region37: #{tpu_custom_call.1} parent=1 // pred_fallthru
      _
    // Predicated region
    $region38: #{tpu_custom_call.1} parent=1 // pred_check
      _
    $region39: #{tpu_custom_call.1} parent=1 // pred_check_branch
      %106 = sbr.rel (0) target = $region41
    $region40: #{tpu_custom_call.1} parent=1 // pred_region
      _
    $region41: #{tpu_custom_call.1} parent=1 // pred_fallthru
      _
    // Predicated region
    $region42: #{tpu_custom_call.1} parent=1 // pred_check
      _
    $region43: #{tpu_custom_call.1} parent=1 // pred_check_branch
      %108 = sbr.rel (0) target = $region45
    $region44: #{tpu_custom_call.1} parent=1 // pred_region
      _
    $region45: #{tpu_custom_call.1} parent=1 // pred_fallthru
      _
    // Predicated region
    $region46: #{tpu_custom_call.1} parent=1 // pred_check
      _
    $region47: #{tpu_custom_call.1} parent=1 // pred_check_branch
      %110 = sbr.rel (0) target = $region49
    $region48: #{tpu_custom_call.1} parent=1 // pred_region
      _
    $region49: #{tpu_custom_call.1} parent=1 // pred_fallthru
      _
    // Predicated region
    $region50: #{tpu_custom_call.1} parent=1 // pred_check
      _
    $region51: #{tpu_custom_call.1} parent=1 // pred_check_branch
      %112 = sbr.rel (0) target = $region53
    $region52: #{tpu_custom_call.1} parent=1 // pred_region
      _
    $region53: #{tpu_custom_call.1} parent=1 // pred_fallthru
      _
    // Predicated region
    $region54: #{tpu_custom_call.1} parent=1 // pred_check
      _
    $region55: #{tpu_custom_call.1} parent=1 // pred_check_branch
      %114 = sbr.rel (0) target = $region57
    $region56: #{tpu_custom_call.1} parent=1 // pred_region
      _
    $region57: #{tpu_custom_call.1} parent=1 // pred_fallthru
      _
    // Predicated region
    $region58: #{tpu_custom_call.1} parent=1 // pred_check
      _
    $region59: #{tpu_custom_call.1} parent=1 // pred_check_branch
      %116 = sbr.rel (0) target = $region61
    $region60: #{tpu_custom_call.1} parent=1 // pred_region
      _
    $region61: #{tpu_custom_call.1} parent=1 // pred_fallthru
      _
    // Predicated region
    $region62: #{tpu_custom_call.1} parent=1 // pred_check
      _
    $region63: #{tpu_custom_call.1} parent=1 // pred_check_branch
      %118 = sbr.rel (0) target = $region65
    $region64: #{tpu_custom_call.1} parent=1 // pred_region
      _
    $region65: #{tpu_custom_call.1} parent=1 // pred_fallthru
      _
    // Predicated region
    $region66: #{tpu_custom_call.1} parent=1 // pred_check
      _
    $region67: #{tpu_custom_call.1} parent=1 // pred_check_branch
      %120 = sbr.rel (0) target = $region69
    $region68: #{tpu_custom_call.1} parent=1 // pred_region
      _
    $region69: #{tpu_custom_call.1} parent=1 // pred_fallthru
      _
    // Predicated region
    $region70: #{tpu_custom_call.1} parent=1 // pred_check
      _
    $region71: #{tpu_custom_call.1} parent=1 // pred_check_branch
      %122 = sbr.rel (0) target = $region73
    $region72: #{tpu_custom_call.1} parent=1 // pred_region
      %123 = dma.done [#allocation3], 32768
    $region73: #{tpu_custom_call.1} parent=1 // pred_fallthru
      _
    // Predicated region
    $region74: #{tpu_custom_call.1} parent=1 // pred_check
      _
    $region75: #{tpu_custom_call.1} parent=1 // pred_check_branch
      %125 = sbr.rel (0) target = $region77
    $region76: #{tpu_custom_call.1} parent=1 // pred_region
      %126 = dma.done [#allocation6], 32768
    $region77: #{tpu_custom_call.1} parent=1 // pred_fallthru
      _
    // Predicated region
    $region78: #{tpu_custom_call.1} parent=1 // pred_check
      _
    $region79: #{tpu_custom_call.1} parent=1 // pred_check_branch
      %128 = sbr.rel (0) target = $region81
    $region80: #{tpu_custom_call.1} parent=1 // pred_region
      %129 = dma.done [#allocation6], 32768
    $region81: #{tpu_custom_call.1} parent=1 // pred_fallthru
      _
    // Predicated region
    $region82: #{tpu_custom_call.1} parent=1 // pred_check
      _
    $region83: #{tpu_custom_call.1} parent=1 // pred_check_branch
      %131 = sbr.rel (0) target = $region85
    $region84: #{tpu_custom_call.1} parent=1 // pred_region
      %132 = dma.done [#allocation9], 32768
    $region85: #{tpu_custom_call.1} parent=1 // pred_fallthru
      _
    // Predicated region
    $region86: #{tpu_custom_call.1} parent=1 // pred_check
      _
    $region87: #{tpu_custom_call.1} parent=1 // pred_check_branch
      %134 = sbr.rel (0) target = $region89
    $region88: #{tpu_custom_call.1} parent=1 // pred_region
      %135 = dma.done [#allocation9], 32768
    $region89: #{tpu_custom_call.1} parent=1 // pred_fallthru
      _
    // Predicated region
    $region90: #{tpu_custom_call.1} parent=1 // pred_check
      _
    $region91: #{tpu_custom_call.1} parent=1 // pred_check_branch
      %137 = sbr.rel (0) target = $region93
    $region92: #{tpu_custom_call.1} parent=1 // pred_region
      %138 = dma.done [#allocation12], 32768
    $region93: #{tpu_custom_call.1} parent=1 // pred_fallthru
      _
    %v139 = vld [vmem:[%s0] sm:$0x3]
    %v140 = vld [vmem:[%s1] sm:$0xff]
    %v141 = vld [vmem:[%s1 + $0x8] sm:$0xff]
    %v142 = vld [vmem:[%s1 + $0x10] sm:$0xff]
    %v143 = vld [vmem:[%s1 + $0x18] sm:$0xff]
    %v144 = vld [vmem:[%s1 + $0x20] sm:$0xff]
    %v145 = vld [vmem:[%s1 + $0x28] sm:$0xff]
    %v146 = vld [vmem:[%s1 + $0x30] sm:$0xff]
    %v147 = vld [vmem:[%s1 + $0x38] sm:$0xff]
    %v148 = vld [vmem:[%s1 + $0x40] sm:$0xff]
    %v149 = vld [vmem:[%s1 + $0x48] sm:$0xff]
    %v150 = vld [vmem:[%s1 + $0x50] sm:$0xff]
    %v151 = vld [vmem:[%s1 + $0x58] sm:$0xff]
    %v152 = vld [vmem:[%s1 + $0x60] sm:$0xff]
    %v153 = vld [vmem:[%s1 + $0x68] sm:$0xff]
    %v154 = vld [vmem:[%s1 + $0x70] sm:$0xff]
    %v155 = vld [vmem:[%s1 + $0x78] sm:$0xff]
    %v156 = vld [vmem:[%s1 + $0x80] sm:$0xff]
    %v157 = vld [vmem:[%s1 + $0x88] sm:$0xff]
    %v158 = vld [vmem:[%s1 + $0x90] sm:$0xff]
    %v159 = vld [vmem:[%s1 + $0x98] sm:$0xff]
    %v160 = vld [vmem:[%s1 + $0xa0] sm:$0xff]
    %v161 = vld [vmem:[%s1 + $0xa8] sm:$0xff]
    %v162 = vld [vmem:[%s1 + $0xb0] sm:$0xff]
    %v163 = vld [vmem:[%s1 + $0xb8] sm:$0xff]
    %v164 = vld [vmem:[%s1 + $0xc0] sm:$0xff]
    %v165 = vld [vmem:[%s1 + $0xc8] sm:$0xff]
    %v166 = vld [vmem:[%s1 + $0xd0] sm:$0xff]
    %v167 = vld [vmem:[%s1 + $0xd8] sm:$0xff]
    %v168 = vld [vmem:[%s1 + $0xe0] sm:$0xff]
    %v169 = vld [vmem:[%s1 + $0xe8] sm:$0xff]
    %v170 = vld [vmem:[%s1 + $0xf0] sm:$0xff]
    %v171 = vld [vmem:[%s1 + $0xf8] sm:$0xff]
    %v172 = vld [vmem:[%s9] sm:$0xf]
    %v174 = vlaneseq
    %v175 = vshrl.u32 %v174, 7
    %v176 = vsub.s32 0, %v175
    %v177 = vrot.slane %v172, %v176
    %v178 = vlaneseq
    %v179 = vshrl.u32 %v178, 7
    %v180 = vsub.s32 1, %v179
    %v181 = vrot.slane %v172, %v180
    %v182 = vlaneseq
    %v183 = vshrl.u32 %v182, 7
    %v184 = vsub.s32 2, %v183
    %v185 = vrot.slane %v172, %v184
    %v186 = vlaneseq
    %v187 = vshrl.u32 %v186, 7
    %v188 = vsub.s32 3, %v187
    %v189 = vrot.slane %v172, %v188
    %vm194 = vcmask 523264
    %v196 = vsel %vm194, %v139, 0
    %198 = vmatprep.subr.mxu0 %v141
    %199 = vmatpush1.msra.mxu0 %v140
    %200 = vmatprep.subr.mxu0 %v145
    %201 = vmatpush1.msra.mxu0 %v144
    %202 = vmatprep.subr.mxu0 %v149
    %203 = vmatpush1.msra.mxu0 %v148
    %204 = vmatprep.subr.mxu0 %v153
    %205 = vmatpush1.msra.mxu0 %v152
    %206 = vmatprep.subr.mxu0 %v157
    %207 = vmatpush1.msra.mxu0 %v156
    %208 = vmatprep.subr.mxu0 %v161
    %209 = vmatpush1.msra.mxu0 %v160
    %210 = vmatprep.subr.mxu0 %v165
    %211 = vmatpush1.msra.mxu0 %v164
    %212 = vmatprep.subr.mxu0 %v169
    %213 = vmatpush1.msra.mxu0 %v168
    %214 = vmatprep.subr.mxu0 0.0
    %215 = vmatpush1.msra.mxu0 0.0
    %216 = vmatprep.subr.mxu0 0.0
    %217 = vmatpush1.msra.mxu0 0.0
    %218 = vmatprep.subr.mxu0 0.0
    %219 = vmatpush1.msra.mxu0 0.0
    %220 = vmatprep.subr.mxu0 0.0
    %221 = vmatpush1.msra.mxu0 0.0
    %222 = vmatprep.subr.mxu0 0.0
    %223 = vmatpush1.msra.mxu0 0.0
    %224 = vmatprep.subr.mxu0 0.0
    %225 = vmatpush1.msra.mxu0 0.0
    %226 = vmatprep.subr.mxu0 0.0
    %227 = vmatpush1.msra.mxu0 0.0
    %228 = vmatprep.subr.mxu0 0.0
    %229 = vmatpush1.msra.mxu0 0.0
    %230 = vmatprep.subr.mxu0 0.0
    %231 = vmatpush1.msra.mxu0 0.0
    %232 = vmatprep.subr.mxu0 0.0
    %233 = vmatpush1.msra.mxu0 0.0
    %234 = vmatprep.subr.mxu0 0.0
    %235 = vmatpush1.msra.mxu0 0.0
    %236 = vmatprep.subr.mxu0 0.0
    %237 = vmatpush1.msra.mxu0 0.0
    %238 = vmatprep.subr.mxu0 0.0
    %239 = vmatpush1.msra.mxu0 0.0
    %240 = vmatprep.subr.mxu0 0.0
    %241 = vmatpush1.msra.mxu0 0.0
    %242 = vmatprep.subr.mxu0 0.0
    %243 = vmatpush1.msra.mxu0 0.0
    %244 = vmatprep.subr.mxu0 0.0
    %245 = vmatpush1.msra.mxu0 0.0
    %246 = vmatprep.subr.mxu0 0.0
    %247 = vmatpush1.msra.mxu0 0.0
    %248 = vmatprep.subr.mxu0 0.0
    %249 = vmatpush1.msra.mxu0 0.0
    %250 = vmatprep.subr.mxu0 0.0
    %251 = vmatpush1.msra.mxu0 0.0
    %252 = vmatprep.subr.mxu0 0.0
    %253 = vmatpush1.msra.mxu0 0.0
    %254 = vmatprep.subr.mxu0 0.0
    %255 = vmatpush1.msra.mxu0 0.0
    %256 = vmatprep.subr.mxu0 0.0
    %257 = vmatpush1.msra.mxu0 0.0
    %258 = vmatprep.subr.mxu0 0.0
    %259 = vmatpush1.msra.mxu0 0.0
    %260 = vmatprep.subr.mxu0 0.0
    %261 = vmatpush1.msra.mxu0 0.0
    %262 = vmatprep.mubr.f32.mxu0 0.0
    %263 = vmatmul.mubr.f32.gmra.mrb[0].mxu0 %v196
    %v264 = vpop.f32.mrb[0].mxu0
    %v265 = vadd.f32 %v177, %v264
    %v266 = vpop.f32.mrb[0].mxu0
    %v267 = vadd.f32 %v181, %v266
    %268 = vdwg.mxu0
    %269 = vmatprep.subr.mxu0 %v143
    %270 = vmatpush1.msra.mxu0 %v142
    %271 = vmatprep.subr.mxu0 %v147
    %272 = vmatpush1.msra.mxu0 %v146
    %273 = vmatprep.subr.mxu0 %v151
    %274 = vmatpush1.msra.mxu0 %v150
    %275 = vmatprep.subr.mxu0 %v155
    %276 = vmatpush1.msra.mxu0 %v154
    %277 = vmatprep.subr.mxu0 %v159
    %278 = vmatpush1.msra.mxu0 %v158
    %279 = vmatprep.subr.mxu0 %v163
    %280 = vmatpush1.msra.mxu0 %v162
    %281 = vmatprep.subr.mxu0 %v167
    %282 = vmatpush1.msra.mxu0 %v166
    %283 = vmatprep.subr.mxu0 %v171
    %284 = vmatpush1.msra.mxu0 %v170
    %285 = vmatprep.subr.mxu0 0.0
    %286 = vmatpush1.msra.mxu0 0.0
    %287 = vmatprep.subr.mxu0 0.0
    %288 = vmatpush1.msra.mxu0 0.0
    %289 = vmatprep.subr.mxu0 0.0
    %290 = vmatpush1.msra.mxu0 0.0
    %291 = vmatprep.subr.mxu0 0.0
    %292 = vmatpush1.msra.mxu0 0.0
    %293 = vmatprep.subr.mxu0 0.0
    %294 = vmatpush1.msra.mxu0 0.0
    %295 = vmatprep.subr.mxu0 0.0
    %296 = vmatpush1.msra.mxu0 0.0
    %297 = vmatprep.subr.mxu0 0.0
    %298 = vmatpush1.msra.mxu0 0.0
    %299 = vmatprep.subr.mxu0 0.0
    %300 = vmatpush1.msra.mxu0 0.0
    %301 = vmatprep.subr.mxu0 0.0
    %302 = vmatpush1.msra.mxu0 0.0
    %303 = vmatprep.subr.mxu0 0.0
    %304 = vmatpush1.msra.mxu0 0.0
    %305 = vmatprep.subr.mxu0 0.0
    %306 = vmatpush1.msra.mxu0 0.0
    %307 = vmatprep.subr.mxu0 0.0
    %308 = vmatpush1.msra.mxu0 0.0
    %309 = vmatprep.subr.mxu0 0.0
    %310 = vmatpush1.msra.mxu0 0.0
    %311 = vmatprep.subr.mxu0 0.0
    %312 = vmatpush1.msra.mxu0 0.0
    %313 = vmatprep.subr.mxu0 0.0
    %314 = vmatpush1.msra.mxu0 0.0
    %315 = vmatprep.subr.mxu0 0.0
    %316 = vmatpush1.msra.mxu0 0.0
    %317 = vmatprep.subr.mxu0 0.0
    %318 = vmatpush1.msra.mxu0 0.0
    %319 = vmatprep.subr.mxu0 0.0
    %320 = vmatpush1.msra.mxu0 0.0
    %321 = vmatprep.subr.mxu0 0.0
    %322 = vmatpush1.msra.mxu0 0.0
    %323 = vmatprep.subr.mxu0 0.0
    %324 = vmatpush1.msra.mxu0 0.0
    %325 = vmatprep.subr.mxu0 0.0
    %326 = vmatpush1.msra.mxu0 0.0
    %327 = vmatprep.subr.mxu0 0.0
    %328 = vmatpush1.msra.mxu0 0.0
    %329 = vmatprep.subr.mxu0 0.0
    %330 = vmatpush1.msra.mxu0 0.0
    %331 = vmatprep.subr.mxu0 0.0
    %332 = vmatpush1.msra.mxu0 0.0
    %333 = vmatprep.mubr.f32.mxu0 0.0
    %334 = vmatmul.mubr.f32.gmra.mrb[0].mxu0 %v196
    %v335 = vpop.f32.mrb[0].mxu0
    %v336 = vadd.f32 %v185, %v335
    %v337 = vpop.f32.mrb[0].mxu0
    %v338 = vadd.f32 %v189, %v337
    %339 = vdwg.mxu0
    %v340 = vmul.f32 %v265, 0.5
    %v341 = vmul.f32 %v267, 0.5
    %v342 = vmul.f32 %v336, 0.5
    %v343 = vmul.f32 %v338, 0.5
    %v344 = vmul.f32 %v265, 0.70710677
    %v345 = vmul.f32 %v267, 0.70710677
    %v346 = vmul.f32 %v336, 0.70710677
    %v347 = vmul.f32 %v338, 0.70710677
    %v348 = vand.u32 2147483647, %v344
    %v349 = vand.u32 2147483647, %v345
    %v350 = vand.u32 2147483647, %v346
    %v351 = vand.u32 2147483647, %v347
    %v352 = vmul.f32 %v348, 0.3275911
    %v353 = vmul.f32 %v349, 0.3275911
    %v354 = vmul.f32 %v350, 0.3275911
    %v355 = vmul.f32 %v351, 0.3275911
    %v356 = vadd.f32 %v352, 1.0
    %v357 = vadd.f32 %v353, 1.0
    %v358 = vadd.f32 %v354, 1.0
    %v359 = vadd.f32 %v355, 1.0
    %v360 = vrcp.pop %v356
    %v361 = vmul.f32 1.0, %v360
    %v362 = vrcp.pop %v357
    %v363 = vmul.f32 1.0, %v362
    %v364 = vrcp.pop %v358
    %v365 = vmul.f32 1.0, %v364
    %v366 = vrcp.pop %v359
    %v367 = vmul.f32 1.0, %v366
    %v368 = vmul.f32 %v361, 1.0614054
    %v369 = vmul.f32 %v363, 1.0614054
    %v370 = vmul.f32 %v365, 1.0614054
    %v371 = vmul.f32 %v367, 1.0614054
    %v372 = vadd.f32 %v368, -1.4531521
    %v373 = vadd.f32 %v369, -1.4531521
    %v374 = vadd.f32 %v370, -1.4531521
    %v375 = vadd.f32 %v371, -1.4531521
    %v376 = vmul.f32 %v372, %v361
    %v377 = vmul.f32 %v373, %v363
    %v378 = vmul.f32 %v374, %v365
    %v379 = vmul.f32 %v375, %v367
    %v380 = vadd.f32 %v376, 1.4214138
    %v381 = vadd.f32 %v377, 1.4214138
    %v382 = vadd.f32 %v378, 1.4214138
    %v383 = vadd.f32 %v379, 1.4214138
    %v384 = vmul.f32 %v380, %v361
    %v385 = vmul.f32 %v381, %v363
    %v386 = vmul.f32 %v382, %v365
    %v387 = vmul.f32 %v383, %v367
    %v388 = vadd.f32 %v384, -0.28449672
    %v389 = vadd.f32 %v385, -0.28449672
    %v390 = vadd.f32 %v386, -0.28449672
    %v391 = vadd.f32 %v387, -0.28449672
    %v392 = vmul.f32 %v388, %v361
    %v393 = vmul.f32 %v389, %v363
    %v394 = vmul.f32 %v390, %v365
    %v395 = vmul.f32 %v391, %v367
    %v396 = vadd.f32 %v392, 0.2548296
    %v397 = vadd.f32 %v393, 0.2548296
    %v398 = vadd.f32 %v394, 0.2548296
    %v399 = vadd.f32 %v395, 0.2548296
    %v400 = vmul.f32 %v396, %v361
    %v401 = vmul.f32 %v397, %v363
    %v402 = vmul.f32 %v398, %v365
    %v403 = vmul.f32 %v399, %v367
    %v404 = vsub.f32 0.0, %v348
    %v405 = vsub.f32 0.0, %v349
    %v406 = vsub.f32 0.0, %v350
    %v407 = vsub.f32 0.0, %v351
    %v408 = vmul.f32 %v404, %v348
    %v409 = vmul.f32 %v405, %v349
    %v410 = vmul.f32 %v406, %v350
    %v411 = vmul.f32 %v407, %v351
    %v412 = vmul.f32 %v408, 1.442695
    %v413 = vpow.pop %v412
    %v414 = vmul.f32 %v409, 1.442695
    %v415 = vpow.pop %v414
    %v416 = vmul.f32 %v410, 1.442695
    %v417 = vpow.pop %v416
    %v418 = vmul.f32 %v411, 1.442695
    %v419 = vpow.pop %v418
    %v420 = vmul.f32 %v400, %v413
    %v421 = vmul.f32 %v401, %v415
    %v422 = vmul.f32 %v402, %v417
    %v423 = vmul.f32 %v403, %v419
    %v424 = vsub.f32 1.0, %v420
    %v425 = vsub.f32 1.0, %v421
    %v426 = vsub.f32 1.0, %v422
    %v427 = vsub.f32 1.0, %v423
    %vm428 = vcmp.ge.f32.partialorder %v344, 0.0
    %vm429 = vcmp.ge.f32.partialorder %v345, 0.0
    %vm430 = vcmp.ge.f32.partialorder %v346, 0.0
    %vm431 = vcmp.ge.f32.partialorder %v347, 0.0
    %v432 = vsub.f32 0.0, %v424
    %v433 = vsub.f32 0.0, %v425
    %v434 = vsub.f32 0.0, %v426
    %v435 = vsub.f32 0.0, %v427
    %v436 = vsel %vm428, %v424, %v432
    %v437 = vsel %vm429, %v425, %v433
    %v438 = vsel %vm430, %v426, %v434
    %v439 = vsel %vm431, %v427, %v435
    %v440 = vadd.f32 %v436, 1.0
    %v441 = vadd.f32 %v437, 1.0
    %v442 = vadd.f32 %v438, 1.0
    %v443 = vadd.f32 %v439, 1.0
    %v444 = vmul.f32 %v340, %v440
    %v445 = vmul.f32 %v341, %v441
    %v446 = vmul.f32 %v342, %v442
    %v447 = vmul.f32 %v343, %v443
    %v448 = vld [vmem:[#allocation2] sm:$0xff]
    %v449 = vld [vmem:[#allocation2 + $0x8] sm:$0xff]
    %v450 = vld [vmem:[#allocation2 + $0x10] sm:$0xff]
    %v451 = vld [vmem:[#allocation2 + $0x18] sm:$0xff]
    %v452 = vld [vmem:[#allocation2 + $0x20] sm:$0xff]
    %v453 = vld [vmem:[#allocation2 + $0x28] sm:$0xff]
    %v454 = vld [vmem:[#allocation2 + $0x30] sm:$0xff]
    %v455 = vld [vmem:[#allocation2 + $0x38] sm:$0xff]
    %v456 = vld [vmem:[#allocation2 + $0x40] sm:$0xff]
    %v457 = vld [vmem:[#allocation2 + $0x48] sm:$0xff]
    %v458 = vld [vmem:[#allocation2 + $0x50] sm:$0xff]
    %v459 = vld [vmem:[#allocation2 + $0x58] sm:$0xff]
    %v460 = vld [vmem:[#allocation2 + $0x60] sm:$0xff]
    %v461 = vld [vmem:[#allocation2 + $0x68] sm:$0xff]
    %v462 = vld [vmem:[#allocation2 + $0x70] sm:$0xff]
    %v463 = vld [vmem:[#allocation2 + $0x78] sm:$0xff]
    %v464 = vld [vmem:[#allocation2 + $0x80] sm:$0xff]
    %v465 = vld [vmem:[#allocation2 + $0x88] sm:$0xff]
    %v466 = vld [vmem:[#allocation2 + $0x90] sm:$0xff]
    %v467 = vld [vmem:[#allocation2 + $0x98] sm:$0xff]
    %v468 = vld [vmem:[#allocation2 + $0xa0] sm:$0xff]
    %v469 = vld [vmem:[#allocation2 + $0xa8] sm:$0xff]
    %v470 = vld [vmem:[#allocation2 + $0xb0] sm:$0xff]
    %v471 = vld [vmem:[#allocation2 + $0xb8] sm:$0xff]
    %v472 = vld [vmem:[#allocation2 + $0xc0] sm:$0xff]
    %v473 = vld [vmem:[#allocation2 + $0xc8] sm:$0xff]
    %v474 = vld [vmem:[#allocation2 + $0xd0] sm:$0xff]
    %v475 = vld [vmem:[#allocation2 + $0xd8] sm:$0xff]
    %v476 = vld [vmem:[#allocation2 + $0xe0] sm:$0xff]
    %v477 = vld [vmem:[#allocation2 + $0xe8] sm:$0xff]
    %v478 = vld [vmem:[#allocation2 + $0xf0] sm:$0xff]
    %v479 = vld [vmem:[#allocation2 + $0xf8] sm:$0xff]
    %v480 = vld [vmem:[#allocation2 + $0x100] sm:$0xff]
    %v481 = vld [vmem:[#allocation2 + $0x108] sm:$0xff]
    %v482 = vld [vmem:[#allocation2 + $0x110] sm:$0xff]
    %v483 = vld [vmem:[#allocation2 + $0x118] sm:$0xff]
    %v484 = vld [vmem:[#allocation2 + $0x120] sm:$0xff]
    %v485 = vld [vmem:[#allocation2 + $0x128] sm:$0xff]
    %v486 = vld [vmem:[#allocation2 + $0x130] sm:$0xff]
    %v487 = vld [vmem:[#allocation2 + $0x138] sm:$0xff]
    %v488 = vld [vmem:[#allocation2 + $0x140] sm:$0xff]
    %v489 = vld [vmem:[#allocation2 + $0x148] sm:$0xff]
    %v490 = vld [vmem:[#allocation2 + $0x150] sm:$0xff]
    %v491 = vld [vmem:[#allocation2 + $0x158] sm:$0xff]
    %v492 = vld [vmem:[#allocation2 + $0x160] sm:$0xff]
    %v493 = vld [vmem:[#allocation2 + $0x168] sm:$0xff]
    %v494 = vld [vmem:[#allocation2 + $0x170] sm:$0xff]
    %v495 = vld [vmem:[#allocation2 + $0x178] sm:$0xff]
    %v496 = vld [vmem:[#allocation2 + $0x180] sm:$0xff]
    %v497 = vld [vmem:[#allocation2 + $0x188] sm:$0xff]
    %v498 = vld [vmem:[#allocation2 + $0x190] sm:$0xff]
    %v499 = vld [vmem:[#allocation2 + $0x198] sm:$0xff]
    %v500 = vld [vmem:[#allocation2 + $0x1a0] sm:$0xff]
    %v501 = vld [vmem:[#allocation2 + $0x1a8] sm:$0xff]
    %v502 = vld [vmem:[#allocation2 + $0x1b0] sm:$0xff]
    %v503 = vld [vmem:[#allocation2 + $0x1b8] sm:$0xff]
    %v504 = vld [vmem:[#allocation2 + $0x1c0] sm:$0xff]
    %v505 = vld [vmem:[#allocation2 + $0x1c8] sm:$0xff]
    %v506 = vld [vmem:[#allocation2 + $0x1d0] sm:$0xff]
    %v507 = vld [vmem:[#allocation2 + $0x1d8] sm:$0xff]
    %v508 = vld [vmem:[#allocation2 + $0x1e0] sm:$0xff]
    %v509 = vld [vmem:[#allocation2 + $0x1e8] sm:$0xff]
    %v510 = vld [vmem:[#allocation2 + $0x1f0] sm:$0xff]
    %v511 = vld [vmem:[#allocation2 + $0x1f8] sm:$0xff]
    %v512 = vld [vmem:[#allocation2 + $0x200] sm:$0xff]
    %v513 = vld [vmem:[#allocation2 + $0x208] sm:$0xff]
    %v514 = vld [vmem:[#allocation2 + $0x210] sm:$0xff]
    %v515 = vld [vmem:[#allocation2 + $0x218] sm:$0xff]
    %v516 = vld [vmem:[#allocation2 + $0x220] sm:$0xff]
    %v517 = vld [vmem:[#allocation2 + $0x228] sm:$0xff]
    %v518 = vld [vmem:[#allocation2 + $0x230] sm:$0xff]
    %v519 = vld [vmem:[#allocation2 + $0x238] sm:$0xff]
    %v520 = vld [vmem:[#allocation2 + $0x240] sm:$0xff]
    %v521 = vld [vmem:[#allocation2 + $0x248] sm:$0xff]
    %v522 = vld [vmem:[#allocation2 + $0x250] sm:$0xff]
    %v523 = vld [vmem:[#allocation2 + $0x258] sm:$0xff]
    %v524 = vld [vmem:[#allocation2 + $0x260] sm:$0xff]
    %v525 = vld [vmem:[#allocation2 + $0x268] sm:$0xff]
    %v526 = vld [vmem:[#allocation2 + $0x270] sm:$0xff]
    %v527 = vld [vmem:[#allocation2 + $0x278] sm:$0xff]
    %v528 = vld [vmem:[#allocation2 + $0x280] sm:$0xff]
    %v529 = vld [vmem:[#allocation2 + $0x288] sm:$0xff]
    %v530 = vld [vmem:[#allocation2 + $0x290] sm:$0xff]
    %v531 = vld [vmem:[#allocation2 + $0x298] sm:$0xff]
    %v532 = vld [vmem:[#allocation2 + $0x2a0] sm:$0xff]
    %v533 = vld [vmem:[#allocation2 + $0x2a8] sm:$0xff]
    %v534 = vld [vmem:[#allocation2 + $0x2b0] sm:$0xff]
    %v535 = vld [vmem:[#allocation2 + $0x2b8] sm:$0xff]
    %v536 = vld [vmem:[#allocation2 + $0x2c0] sm:$0xff]
    %v537 = vld [vmem:[#allocation2 + $0x2c8] sm:$0xff]
    %v538 = vld [vmem:[#allocation2 + $0x2d0] sm:$0xff]
    %v539 = vld [vmem:[#allocation2 + $0x2d8] sm:$0xff]
    %v540 = vld [vmem:[#allocation2 + $0x2e0] sm:$0xff]
    %v541 = vld [vmem:[#allocation2 + $0x2e8] sm:$0xff]
    %v542 = vld [vmem:[#allocation2 + $0x2f0] sm:$0xff]
    %v543 = vld [vmem:[#allocation2 + $0x2f8] sm:$0xff]
    %v544 = vld [vmem:[#allocation2 + $0x300] sm:$0xff]
    %v545 = vld [vmem:[#allocation2 + $0x308] sm:$0xff]
    %v546 = vld [vmem:[#allocation2 + $0x310] sm:$0xff]
    %v547 = vld [vmem:[#allocation2 + $0x318] sm:$0xff]
    %v548 = vld [vmem:[#allocation2 + $0x320] sm:$0xff]
    %v549 = vld [vmem:[#allocation2 + $0x328] sm:$0xff]
    %v550 = vld [vmem:[#allocation2 + $0x330] sm:$0xff]
    %v551 = vld [vmem:[#allocation2 + $0x338] sm:$0xff]
    %v552 = vld [vmem:[#allocation2 + $0x340] sm:$0xff]
    %v553 = vld [vmem:[#allocation2 + $0x348] sm:$0xff]
    %v554 = vld [vmem:[#allocation2 + $0x350] sm:$0xff]
    %v555 = vld [vmem:[#allocation2 + $0x358] sm:$0xff]
    %v556 = vld [vmem:[#allocation2 + $0x360] sm:$0xff]
    %v557 = vld [vmem:[#allocation2 + $0x368] sm:$0xff]
    %v558 = vld [vmem:[#allocation2 + $0x370] sm:$0xff]
    %v559 = vld [vmem:[#allocation2 + $0x378] sm:$0xff]
    %v560 = vld [vmem:[#allocation2 + $0x380] sm:$0xff]
    %v561 = vld [vmem:[#allocation2 + $0x388] sm:$0xff]
    %v562 = vld [vmem:[#allocation2 + $0x390] sm:$0xff]
    %v563 = vld [vmem:[#allocation2 + $0x398] sm:$0xff]
    %v564 = vld [vmem:[#allocation2 + $0x3a0] sm:$0xff]
    %v565 = vld [vmem:[#allocation2 + $0x3a8] sm:$0xff]
    %v566 = vld [vmem:[#allocation2 + $0x3b0] sm:$0xff]
    %v567 = vld [vmem:[#allocation2 + $0x3b8] sm:$0xff]
    %v568 = vld [vmem:[#allocation2 + $0x3c0] sm:$0xff]
    %v569 = vld [vmem:[#allocation2 + $0x3c8] sm:$0xff]
    %v570 = vld [vmem:[#allocation2 + $0x3d0] sm:$0xff]
    %v571 = vld [vmem:[#allocation2 + $0x3d8] sm:$0xff]
    %v572 = vld [vmem:[#allocation2 + $0x3e0] sm:$0xff]
    %v573 = vld [vmem:[#allocation2 + $0x3e8] sm:$0xff]
    %v574 = vld [vmem:[#allocation2 + $0x3f0] sm:$0xff]
    %v575 = vld [vmem:[#allocation2 + $0x3f8] sm:$0xff]
    %v576 = vld [vmem:[#allocation2 + $0x400] sm:$0xff]
    %v577 = vld [vmem:[#allocation2 + $0x408] sm:$0xff]
    %v578 = vld [vmem:[#allocation2 + $0x410] sm:$0xff]
    %v579 = vld [vmem:[#allocation2 + $0x418] sm:$0xff]
    %v580 = vld [vmem:[#allocation2 + $0x420] sm:$0xff]
    %v581 = vld [vmem:[#allocation2 + $0x428] sm:$0xff]
    %v582 = vld [vmem:[#allocation2 + $0x430] sm:$0xff]
    %v583 = vld [vmem:[#allocation2 + $0x438] sm:$0xff]
    %v584 = vld [vmem:[#allocation2 + $0x440] sm:$0xff]
    %v585 = vld [vmem:[#allocation2 + $0x448] sm:$0xff]
    %v586 = vld [vmem:[#allocation2 + $0x450] sm:$0xff]
    %v587 = vld [vmem:[#allocation2 + $0x458] sm:$0xff]
    %v588 = vld [vmem:[#allocation2 + $0x460] sm:$0xff]
    %v589 = vld [vmem:[#allocation2 + $0x468] sm:$0xff]
    %v590 = vld [vmem:[#allocation2 + $0x470] sm:$0xff]
    %v591 = vld [vmem:[#allocation2 + $0x478] sm:$0xff]
    %v592 = vld [vmem:[#allocation2 + $0x480] sm:$0xff]
    %v593 = vld [vmem:[#allocation2 + $0x488] sm:$0xff]
    %v594 = vld [vmem:[#allocation2 + $0x490] sm:$0xff]
    %v595 = vld [vmem:[#allocation2 + $0x498] sm:$0xff]
    %v596 = vld [vmem:[#allocation2 + $0x4a0] sm:$0xff]
    %v597 = vld [vmem:[#allocation2 + $0x4a8] sm:$0xff]
    %v598 = vld [vmem:[#allocation2 + $0x4b0] sm:$0xff]
    %v599 = vld [vmem:[#allocation2 + $0x4b8] sm:$0xff]
    %v600 = vld [vmem:[#allocation2 + $0x4c0] sm:$0xff]
    %v601 = vld [vmem:[#allocation2 + $0x4c8] sm:$0xff]
    %v602 = vld [vmem:[#allocation2 + $0x4d0] sm:$0xff]
    %v603 = vld [vmem:[#allocation2 + $0x4d8] sm:$0xff]
    %v604 = vld [vmem:[#allocation2 + $0x4e0] sm:$0xff]
    %v605 = vld [vmem:[#allocation2 + $0x4e8] sm:$0xff]
    %v606 = vld [vmem:[#allocation2 + $0x4f0] sm:$0xff]
    %v607 = vld [vmem:[#allocation2 + $0x4f8] sm:$0xff]
    %v608 = vld [vmem:[#allocation2 + $0x500] sm:$0xff]
    %v609 = vld [vmem:[#allocation2 + $0x508] sm:$0xff]
    %v610 = vld [vmem:[#allocation2 + $0x510] sm:$0xff]
    %v611 = vld [vmem:[#allocation2 + $0x518] sm:$0xff]
    %v612 = vld [vmem:[#allocation2 + $0x520] sm:$0xff]
    %v613 = vld [vmem:[#allocation2 + $0x528] sm:$0xff]
    %v614 = vld [vmem:[#allocation2 + $0x530] sm:$0xff]
    %v615 = vld [vmem:[#allocation2 + $0x538] sm:$0xff]
    %v616 = vld [vmem:[#allocation2 + $0x540] sm:$0xff]
    %v617 = vld [vmem:[#allocation2 + $0x548] sm:$0xff]
    %v618 = vld [vmem:[#allocation2 + $0x550] sm:$0xff]
    %v619 = vld [vmem:[#allocation2 + $0x558] sm:$0xff]
    %v620 = vld [vmem:[#allocation2 + $0x560] sm:$0xff]
    %v621 = vld [vmem:[#allocation2 + $0x568] sm:$0xff]
    %v622 = vld [vmem:[#allocation2 + $0x570] sm:$0xff]
    %v623 = vld [vmem:[#allocation2 + $0x578] sm:$0xff]
    %v624 = vld [vmem:[#allocation2 + $0x580] sm:$0xff]
    %v625 = vld [vmem:[#allocation2 + $0x588] sm:$0xff]
    %v626 = vld [vmem:[#allocation2 + $0x590] sm:$0xff]
    %v627 = vld [vmem:[#allocation2 + $0x598] sm:$0xff]
    %v628 = vld [vmem:[#allocation2 + $0x5a0] sm:$0xff]
    %v629 = vld [vmem:[#allocation2 + $0x5a8] sm:$0xff]
    %v630 = vld [vmem:[#allocation2 + $0x5b0] sm:$0xff]
    %v631 = vld [vmem:[#allocation2 + $0x5b8] sm:$0xff]
    %v632 = vld [vmem:[#allocation2 + $0x5c0] sm:$0xff]
    %v633 = vld [vmem:[#allocation2 + $0x5c8] sm:$0xff]
    %v634 = vld [vmem:[#allocation2 + $0x5d0] sm:$0xff]
    %v635 = vld [vmem:[#allocation2 + $0x5d8] sm:$0xff]
    %v636 = vld [vmem:[#allocation2 + $0x5e0] sm:$0xff]
    %v637 = vld [vmem:[#allocation2 + $0x5e8] sm:$0xff]
    %v638 = vld [vmem:[#allocation2 + $0x5f0] sm:$0xff]
    %v639 = vld [vmem:[#allocation2 + $0x5f8] sm:$0xff]
    %v640 = vld [vmem:[#allocation2 + $0x600] sm:$0xff]
    %v641 = vld [vmem:[#allocation2 + $0x608] sm:$0xff]
    %v642 = vld [vmem:[#allocation2 + $0x610] sm:$0xff]
    %v643 = vld [vmem:[#allocation2 + $0x618] sm:$0xff]
    %v644 = vld [vmem:[#allocation2 + $0x620] sm:$0xff]
    %v645 = vld [vmem:[#allocation2 + $0x628] sm:$0xff]
    %v646 = vld [vmem:[#allocation2 + $0x630] sm:$0xff]
    %v647 = vld [vmem:[#allocation2 + $0x638] sm:$0xff]
    %v648 = vld [vmem:[#allocation2 + $0x640] sm:$0xff]
    %v649 = vld [vmem:[#allocation2 + $0x648] sm:$0xff]
    %v650 = vld [vmem:[#allocation2 + $0x650] sm:$0xff]
    %v651 = vld [vmem:[#allocation2 + $0x658] sm:$0xff]
    %v652 = vld [vmem:[#allocation2 + $0x660] sm:$0xff]
    %v653 = vld [vmem:[#allocation2 + $0x668] sm:$0xff]
    %v654 = vld [vmem:[#allocation2 + $0x670] sm:$0xff]
    %v655 = vld [vmem:[#allocation2 + $0x678] sm:$0xff]
    %v656 = vld [vmem:[#allocation2 + $0x680] sm:$0xff]
    %v657 = vld [vmem:[#allocation2 + $0x688] sm:$0xff]
    %v658 = vld [vmem:[#allocation2 + $0x690] sm:$0xff]
    %v659 = vld [vmem:[#allocation2 + $0x698] sm:$0xff]
    %v660 = vld [vmem:[#allocation2 + $0x6a0] sm:$0xff]
    %v661 = vld [vmem:[#allocation2 + $0x6a8] sm:$0xff]
    %v662 = vld [vmem:[#allocation2 + $0x6b0] sm:$0xff]
    %v663 = vld [vmem:[#allocation2 + $0x6b8] sm:$0xff]
    %v664 = vld [vmem:[#allocation2 + $0x6c0] sm:$0xff]
    %v665 = vld [vmem:[#allocation2 + $0x6c8] sm:$0xff]
    %v666 = vld [vmem:[#allocation2 + $0x6d0] sm:$0xff]
    %v667 = vld [vmem:[#allocation2 + $0x6d8] sm:$0xff]
    %v668 = vld [vmem:[#allocation2 + $0x6e0] sm:$0xff]
    %v669 = vld [vmem:[#allocation2 + $0x6e8] sm:$0xff]
    %v670 = vld [vmem:[#allocation2 + $0x6f0] sm:$0xff]
    %v671 = vld [vmem:[#allocation2 + $0x6f8] sm:$0xff]
    %v672 = vld [vmem:[#allocation2 + $0x700] sm:$0xff]
    %v673 = vld [vmem:[#allocation2 + $0x708] sm:$0xff]
    %v674 = vld [vmem:[#allocation2 + $0x710] sm:$0xff]
    %v675 = vld [vmem:[#allocation2 + $0x718] sm:$0xff]
    %v676 = vld [vmem:[#allocation2 + $0x720] sm:$0xff]
    %v677 = vld [vmem:[#allocation2 + $0x728] sm:$0xff]
    %v678 = vld [vmem:[#allocation2 + $0x730] sm:$0xff]
    %v679 = vld [vmem:[#allocation2 + $0x738] sm:$0xff]
    %v680 = vld [vmem:[#allocation2 + $0x740] sm:$0xff]
    %v681 = vld [vmem:[#allocation2 + $0x748] sm:$0xff]
    %v682 = vld [vmem:[#allocation2 + $0x750] sm:$0xff]
    %v683 = vld [vmem:[#allocation2 + $0x758] sm:$0xff]
    %v684 = vld [vmem:[#allocation2 + $0x760] sm:$0xff]
    %v685 = vld [vmem:[#allocation2 + $0x768] sm:$0xff]
    %v686 = vld [vmem:[#allocation2 + $0x770] sm:$0xff]
    %v687 = vld [vmem:[#allocation2 + $0x778] sm:$0xff]
    %v688 = vld [vmem:[#allocation2 + $0x780] sm:$0xff]
    %v689 = vld [vmem:[#allocation2 + $0x788] sm:$0xff]
    %v690 = vld [vmem:[#allocation2 + $0x790] sm:$0xff]
    %v691 = vld [vmem:[#allocation2 + $0x798] sm:$0xff]
    %v692 = vld [vmem:[#allocation2 + $0x7a0] sm:$0xff]
    %v693 = vld [vmem:[#allocation2 + $0x7a8] sm:$0xff]
    %v694 = vld [vmem:[#allocation2 + $0x7b0] sm:$0xff]
    %v695 = vld [vmem:[#allocation2 + $0x7b8] sm:$0xff]
    %v696 = vld [vmem:[#allocation2 + $0x7c0] sm:$0xff]
    %v697 = vld [vmem:[#allocation2 + $0x7c8] sm:$0xff]
    %v698 = vld [vmem:[#allocation2 + $0x7d0] sm:$0xff]
    %v699 = vld [vmem:[#allocation2 + $0x7d8] sm:$0xff]
    %v700 = vld [vmem:[#allocation2 + $0x7e0] sm:$0xff]
    %v701 = vld [vmem:[#allocation2 + $0x7e8] sm:$0xff]
    %v702 = vld [vmem:[#allocation2 + $0x7f0] sm:$0xff]
    %v703 = vld [vmem:[#allocation2 + $0x7f8] sm:$0xff]
    %v704 = vld [vmem:[%s10] sm:$0xf]
    %v706 = vlaneseq
    %v707 = vshrl.u32 %v706, 7
    %v708 = vsub.s32 0, %v707
    %v709 = vrot.slane %v704, %v708
    %v710 = vlaneseq
    %v711 = vshrl.u32 %v710, 7
    %v712 = vsub.s32 1, %v711
    %v713 = vrot.slane %v704, %v712
    %v714 = vlaneseq
    %v715 = vshrl.u32 %v714, 7
    %v716 = vsub.s32 2, %v715
    %v717 = vrot.slane %v704, %v716
    %v718 = vlaneseq
    %v719 = vshrl.u32 %v718, 7
    %v720 = vsub.s32 3, %v719
    %v721 = vrot.slane %v704, %v720
    %726 = vmatprep.subr.mxu0 %v449
    %727 = vmatpush1.msra.mxu0 %v448
    %728 = vmatprep.subr.mxu0 %v453
    %729 = vmatpush1.msra.mxu0 %v452
    %730 = vmatprep.subr.mxu0 %v457
    %731 = vmatpush1.msra.mxu0 %v456
    %732 = vmatprep.subr.mxu0 %v461
    %733 = vmatpush1.msra.mxu0 %v460
    %734 = vmatprep.subr.mxu0 %v465
    %735 = vmatpush1.msra.mxu0 %v464
    %736 = vmatprep.subr.mxu0 %v469
    %737 = vmatpush1.msra.mxu0 %v468
    %738 = vmatprep.subr.mxu0 %v473
    %739 = vmatpush1.msra.mxu0 %v472
    %740 = vmatprep.subr.mxu0 %v477
    %741 = vmatpush1.msra.mxu0 %v476
    %742 = vmatprep.subr.mxu0 %v481
    %743 = vmatpush1.msra.mxu0 %v480
    %744 = vmatprep.subr.mxu0 %v485
    %745 = vmatpush1.msra.mxu0 %v484
    %746 = vmatprep.subr.mxu0 %v489
    %747 = vmatpush1.msra.mxu0 %v488
    %748 = vmatprep.subr.mxu0 %v493
    %749 = vmatpush1.msra.mxu0 %v492
    %750 = vmatprep.subr.mxu0 %v497
    %751 = vmatpush1.msra.mxu0 %v496
    %752 = vmatprep.subr.mxu0 %v501
    %753 = vmatpush1.msra.mxu0 %v500
    %754 = vmatprep.subr.mxu0 %v505
    %755 = vmatpush1.msra.mxu0 %v504
    %756 = vmatprep.subr.mxu0 %v509
    %757 = vmatpush1.msra.mxu0 %v508
    %758 = vmatprep.subr.mxu0 %v513
    %759 = vmatpush1.msra.mxu0 %v512
    %760 = vmatprep.subr.mxu0 %v517
    %761 = vmatpush1.msra.mxu0 %v516
    %762 = vmatprep.subr.mxu0 %v521
    %763 = vmatpush1.msra.mxu0 %v520
    %764 = vmatprep.subr.mxu0 %v525
    %765 = vmatpush1.msra.mxu0 %v524
    %766 = vmatprep.subr.mxu0 %v529
    %767 = vmatpush1.msra.mxu0 %v528
    %768 = vmatprep.subr.mxu0 %v533
    %769 = vmatpush1.msra.mxu0 %v532
    %770 = vmatprep.subr.mxu0 %v537
    %771 = vmatpush1.msra.mxu0 %v536
    %772 = vmatprep.subr.mxu0 %v541
    %773 = vmatpush1.msra.mxu0 %v540
    %774 = vmatprep.subr.mxu0 %v545
    %775 = vmatpush1.msra.mxu0 %v544
    %776 = vmatprep.subr.mxu0 %v549
    %777 = vmatpush1.msra.mxu0 %v548
    %778 = vmatprep.subr.mxu0 %v553
    %779 = vmatpush1.msra.mxu0 %v552
    %780 = vmatprep.subr.mxu0 %v557
    %781 = vmatpush1.msra.mxu0 %v556
    %782 = vmatprep.subr.mxu0 %v561
    %783 = vmatpush1.msra.mxu0 %v560
    %784 = vmatprep.subr.mxu0 %v565
    %785 = vmatpush1.msra.mxu0 %v564
    %786 = vmatprep.subr.mxu0 %v569
    %787 = vmatpush1.msra.mxu0 %v568
    %788 = vmatprep.subr.mxu0 %v573
    %789 = vmatpush1.msra.mxu0 %v572
    %790 = vmatprep.mubr.f32.mxu0 %v445
    %791 = vmatmul.mubr.f32.gmra.mrb[0].mxu0 %v444
    %v792 = vpop.f32.mrb[0].mxu0
    %v793 = vadd.f32 %v709, %v792
    %v794 = vpop.f32.mrb[0].mxu0
    %v795 = vadd.f32 %v713, %v794
    %796 = vdwg.mxu0
    %797 = vmatprep.subr.mxu0 %v577
    %798 = vmatpush1.msra.mxu0 %v576
    %799 = vmatprep.subr.mxu0 %v581
    %800 = vmatpush1.msra.mxu0 %v580
    %801 = vmatprep.subr.mxu0 %v585
    %802 = vmatpush1.msra.mxu0 %v584
    %803 = vmatprep.subr.mxu0 %v589
    %804 = vmatpush1.msra.mxu0 %v588
    %805 = vmatprep.subr.mxu0 %v593
    %806 = vmatpush1.msra.mxu0 %v592
    %807 = vmatprep.subr.mxu0 %v597
    %808 = vmatpush1.msra.mxu0 %v596
    %809 = vmatprep.subr.mxu0 %v601
    %810 = vmatpush1.msra.mxu0 %v600
    %811 = vmatprep.subr.mxu0 %v605
    %812 = vmatpush1.msra.mxu0 %v604
    %813 = vmatprep.subr.mxu0 %v609
    %814 = vmatpush1.msra.mxu0 %v608
    %815 = vmatprep.subr.mxu0 %v613
    %816 = vmatpush1.msra.mxu0 %v612
    %817 = vmatprep.subr.mxu0 %v617
    %818 = vmatpush1.msra.mxu0 %v616
    %819 = vmatprep.subr.mxu0 %v621
    %820 = vmatpush1.msra.mxu0 %v620
    %821 = vmatprep.subr.mxu0 %v625
    %822 = vmatpush1.msra.mxu0 %v624
    %823 = vmatprep.subr.mxu0 %v629
    %824 = vmatpush1.msra.mxu0 %v628
    %825 = vmatprep.subr.mxu0 %v633
    %826 = vmatpush1.msra.mxu0 %v632
    %827 = vmatprep.subr.mxu0 %v637
    %828 = vmatpush1.msra.mxu0 %v636
    %829 = vmatprep.subr.mxu0 %v641
    %830 = vmatpush1.msra.mxu0 %v640
    %831 = vmatprep.subr.mxu0 %v645
    %832 = vmatpush1.msra.mxu0 %v644
    %833 = vmatprep.subr.mxu0 %v649
    %834 = vmatpush1.msra.mxu0 %v648
    %835 = vmatprep.subr.mxu0 %v653
    %836 = vmatpush1.msra.mxu0 %v652
    %837 = vmatprep.subr.mxu0 %v657
    %838 = vmatpush1.msra.mxu0 %v656
    %839 = vmatprep.subr.mxu0 %v661
    %840 = vmatpush1.msra.mxu0 %v660
    %841 = vmatprep.subr.mxu0 %v665
    %842 = vmatpush1.msra.mxu0 %v664
    %843 = vmatprep.subr.mxu0 %v669
    %844 = vmatpush1.msra.mxu0 %v668
    %845 = vmatprep.subr.mxu0 %v673
    %846 = vmatpush1.msra.mxu0 %v672
    %847 = vmatprep.subr.mxu0 %v677
    %848 = vmatpush1.msra.mxu0 %v676
    %849 = vmatprep.subr.mxu0 %v681
    %850 = vmatpush1.msra.mxu0 %v680
    %851 = vmatprep.subr.mxu0 %v685
    %852 = vmatpush1.msra.mxu0 %v684
    %853 = vmatprep.subr.mxu0 %v689
    %854 = vmatpush1.msra.mxu0 %v688
    %855 = vmatprep.subr.mxu0 %v693
    %856 = vmatpush1.msra.mxu0 %v692
    %857 = vmatprep.subr.mxu0 %v697
    %858 = vmatpush1.msra.mxu0 %v696
    %859 = vmatprep.subr.mxu0 %v701
    %860 = vmatpush1.msra.mxu0 %v700
    %861 = vmatprep.mubr.f32.mxu0 %v447
    %862 = vmatmul.mubr.f32.gmra.mrb[0].mxu0 %v446
    %v863 = vpop.f32.mrb[0].mxu0
    %v864 = vadd.f32 %v793, %v863
    %v865 = vpop.f32.mrb[0].mxu0
    %v866 = vadd.f32 %v795, %v865
    %867 = vdwg.mxu0
    %868 = vmatprep.subr.mxu0 %v451
    %869 = vmatpush1.msra.mxu0 %v450
    %870 = vmatprep.subr.mxu0 %v455
    %871 = vmatpush1.msra.mxu0 %v454
    %872 = vmatprep.subr.mxu0 %v459
    %873 = vmatpush1.msra.mxu0 %v458
    %874 = vmatprep.subr.mxu0 %v463
    %875 = vmatpush1.msra.mxu0 %v462
    %876 = vmatprep.subr.mxu0 %v467
    %877 = vmatpush1.msra.mxu0 %v466
    %878 = vmatprep.subr.mxu0 %v471
    %879 = vmatpush1.msra.mxu0 %v470
    %880 = vmatprep.subr.mxu0 %v475
    %881 = vmatpush1.msra.mxu0 %v474
    %882 = vmatprep.subr.mxu0 %v479
    %883 = vmatpush1.msra.mxu0 %v478
    %884 = vmatprep.subr.mxu0 %v483
    %885 = vmatpush1.msra.mxu0 %v482
    %886 = vmatprep.subr.mxu0 %v487
    %887 = vmatpush1.msra.mxu0 %v486
    %888 = vmatprep.subr.mxu0 %v491
    %889 = vmatpush1.msra.mxu0 %v490
    %890 = vmatprep.subr.mxu0 %v495
    %891 = vmatpush1.msra.mxu0 %v494
    %892 = vmatprep.subr.mxu0 %v499
    %893 = vmatpush1.msra.mxu0 %v498
    %894 = vmatprep.subr.mxu0 %v503
    %895 = vmatpush1.msra.mxu0 %v502
    %896 = vmatprep.subr.mxu0 %v507
    %897 = vmatpush1.msra.mxu0 %v506
    %898 = vmatprep.subr.mxu0 %v511
    %899 = vmatpush1.msra.mxu0 %v510
    %900 = vmatprep.subr.mxu0 %v515
    %901 = vmatpush1.msra.mxu0 %v514
    %902 = vmatprep.subr.mxu0 %v519
    %903 = vmatpush1.msra.mxu0 %v518
    %904 = vmatprep.subr.mxu0 %v523
    %905 = vmatpush1.msra.mxu0 %v522
    %906 = vmatprep.subr.mxu0 %v527
    %907 = vmatpush1.msra.mxu0 %v526
    %908 = vmatprep.subr.mxu0 %v531
    %909 = vmatpush1.msra.mxu0 %v530
    %910 = vmatprep.subr.mxu0 %v535
    %911 = vmatpush1.msra.mxu0 %v534
    %912 = vmatprep.subr.mxu0 %v539
    %913 = vmatpush1.msra.mxu0 %v538
    %914 = vmatprep.subr.mxu0 %v543
    %915 = vmatpush1.msra.mxu0 %v542
    %916 = vmatprep.subr.mxu0 %v547
    %917 = vmatpush1.msra.mxu0 %v546
    %918 = vmatprep.subr.mxu0 %v551
    %919 = vmatpush1.msra.mxu0 %v550
    %920 = vmatprep.subr.mxu0 %v555
    %921 = vmatpush1.msra.mxu0 %v554
    %922 = vmatprep.subr.mxu0 %v559
    %923 = vmatpush1.msra.mxu0 %v558
    %924 = vmatprep.subr.mxu0 %v563
    %925 = vmatpush1.msra.mxu0 %v562
    %926 = vmatprep.subr.mxu0 %v567
    %927 = vmatpush1.msra.mxu0 %v566
    %928 = vmatprep.subr.mxu0 %v571
    %929 = vmatpush1.msra.mxu0 %v570
    %930 = vmatprep.subr.mxu0 %v575
    %931 = vmatpush1.msra.mxu0 %v574
    %932 = vmatprep.mubr.f32.mxu0 %v445
    %933 = vmatmul.mubr.f32.gmra.mrb[0].mxu0 %v444
    %v934 = vpop.f32.mrb[0].mxu0
    %v935 = vadd.f32 %v717, %v934
    %v936 = vpop.f32.mrb[0].mxu0
    %v937 = vadd.f32 %v721, %v936
    %938 = vdwg.mxu0
    %939 = vmatprep.subr.mxu0 %v579
    %940 = vmatpush1.msra.mxu0 %v578
    %941 = vmatprep.subr.mxu0 %v583
    %942 = vmatpush1.msra.mxu0 %v582
    %943 = vmatprep.subr.mxu0 %v587
    %944 = vmatpush1.msra.mxu0 %v586
    %945 = vmatprep.subr.mxu0 %v591
    %946 = vmatpush1.msra.mxu0 %v590
    %947 = vmatprep.subr.mxu0 %v595
    %948 = vmatpush1.msra.mxu0 %v594
    %949 = vmatprep.subr.mxu0 %v599
    %950 = vmatpush1.msra.mxu0 %v598
    %951 = vmatprep.subr.mxu0 %v603
    %952 = vmatpush1.msra.mxu0 %v602
    %953 = vmatprep.subr.mxu0 %v607
    %954 = vmatpush1.msra.mxu0 %v606
    %955 = vmatprep.subr.mxu0 %v611
    %956 = vmatpush1.msra.mxu0 %v610
    %957 = vmatprep.subr.mxu0 %v615
    %958 = vmatpush1.msra.mxu0 %v614
    %959 = vmatprep.subr.mxu0 %v619
    %960 = vmatpush1.msra.mxu0 %v618
    %961 = vmatprep.subr.mxu0 %v623
    %962 = vmatpush1.msra.mxu0 %v622
    %963 = vmatprep.subr.mxu0 %v627
    %964 = vmatpush1.msra.mxu0 %v626
    %965 = vmatprep.subr.mxu0 %v631
    %966 = vmatpush1.msra.mxu0 %v630
    %967 = vmatprep.subr.mxu0 %v635
    %968 = vmatpush1.msra.mxu0 %v634
    %969 = vmatprep.subr.mxu0 %v639
    %970 = vmatpush1.msra.mxu0 %v638
    %971 = vmatprep.subr.mxu0 %v643
    %972 = vmatpush1.msra.mxu0 %v642
    %973 = vmatprep.subr.mxu0 %v647
    %974 = vmatpush1.msra.mxu0 %v646
    %975 = vmatprep.subr.mxu0 %v651
    %976 = vmatpush1.msra.mxu0 %v650
    %977 = vmatprep.subr.mxu0 %v655
    %978 = vmatpush1.msra.mxu0 %v654
    %979 = vmatprep.subr.mxu0 %v659
    %980 = vmatpush1.msra.mxu0 %v658
    %981 = vmatprep.subr.mxu0 %v663
    %982 = vmatpush1.msra.mxu0 %v662
    %983 = vmatprep.subr.mxu0 %v667
    %984 = vmatpush1.msra.mxu0 %v666
    %985 = vmatprep.subr.mxu0 %v671
    %986 = vmatpush1.msra.mxu0 %v670
    %987 = vmatprep.subr.mxu0 %v675
    %988 = vmatpush1.msra.mxu0 %v674
    %989 = vmatprep.subr.mxu0 %v679
    %990 = vmatpush1.msra.mxu0 %v678
    %991 = vmatprep.subr.mxu0 %v683
    %992 = vmatpush1.msra.mxu0 %v682
    %993 = vmatprep.subr.mxu0 %v687
    %994 = vmatpush1.msra.mxu0 %v686
    %995 = vmatprep.subr.mxu0 %v691
    %996 = vmatpush1.msra.mxu0 %v690
    %997 = vmatprep.subr.mxu0 %v695
    %998 = vmatpush1.msra.mxu0 %v694
    %999 = vmatprep.subr.mxu0 %v699
    %1000 = vmatpush1.msra.mxu0 %v698
    %1001 = vmatprep.subr.mxu0 %v703
    %1002 = vmatpush1.msra.mxu0 %v702
    %1003 = vmatprep.mubr.f32.mxu0 %v447
    %1004 = vmatmul.mubr.f32.gmra.mrb[0].mxu0 %v446
    %v1005 = vpop.f32.mrb[0].mxu0
    %v1006 = vadd.f32 %v935, %v1005
    %v1007 = vpop.f32.mrb[0].mxu0
    %v1008 = vadd.f32 %v937, %v1007
    %1009 = vdwg.mxu0
    %v1010 = vmul.f32 %v864, 0.5
    %v1011 = vmul.f32 %v866, 0.5
    %v1012 = vmul.f32 %v1006, 0.5
    %v1013 = vmul.f32 %v1008, 0.5
    %v1014 = vmul.f32 %v864, 0.70710677
    %v1015 = vmul.f32 %v866, 0.70710677
    %v1016 = vmul.f32 %v1006, 0.70710677
    %v1017 = vmul.f32 %v1008, 0.70710677
    %v1018 = vand.u32 2147483647, %v1014
    %v1019 = vand.u32 2147483647, %v1015
    %v1020 = vand.u32 2147483647, %v1016
    %v1021 = vand.u32 2147483647, %v1017
    %v1022 = vmul.f32 %v1018, 0.3275911
    %v1023 = vmul.f32 %v1019, 0.3275911
    %v1024 = vmul.f32 %v1020, 0.3275911
    %v1025 = vmul.f32 %v1021, 0.3275911
    %v1026 = vadd.f32 %v1022, 1.0
    %v1027 = vadd.f32 %v1023, 1.0
    %v1028 = vadd.f32 %v1024, 1.0
    %v1029 = vadd.f32 %v1025, 1.0
    %v1030 = vrcp.pop %v1026
    %v1031 = vmul.f32 1.0, %v1030
    %v1032 = vrcp.pop %v1027
    %v1033 = vmul.f32 1.0, %v1032
    %v1034 = vrcp.pop %v1028
    %v1035 = vmul.f32 1.0, %v1034
    %v1036 = vrcp.pop %v1029
    %v1037 = vmul.f32 1.0, %v1036
    %v1038 = vmul.f32 %v1031, 1.0614054
    %v1039 = vmul.f32 %v1033, 1.0614054
    %v1040 = vmul.f32 %v1035, 1.0614054
    %v1041 = vmul.f32 %v1037, 1.0614054
    %v1042 = vadd.f32 %v1038, -1.4531521
    %v1043 = vadd.f32 %v1039, -1.4531521
    %v1044 = vadd.f32 %v1040, -1.4531521
    %v1045 = vadd.f32 %v1041, -1.4531521
    %v1046 = vmul.f32 %v1042, %v1031
    %v1047 = vmul.f32 %v1043, %v1033
    %v1048 = vmul.f32 %v1044, %v1035
    %v1049 = vmul.f32 %v1045, %v1037
    %v1050 = vadd.f32 %v1046, 1.4214138
    %v1051 = vadd.f32 %v1047, 1.4214138
    %v1052 = vadd.f32 %v1048, 1.4214138
    %v1053 = vadd.f32 %v1049, 1.4214138
    %v1054 = vmul.f32 %v1050, %v1031
    %v1055 = vmul.f32 %v1051, %v1033
    %v1056 = vmul.f32 %v1052, %v1035
    %v1057 = vmul.f32 %v1053, %v1037
    %v1058 = vadd.f32 %v1054, -0.28449672
    %v1059 = vadd.f32 %v1055, -0.28449672
    %v1060 = vadd.f32 %v1056, -0.28449672
    %v1061 = vadd.f32 %v1057, -0.28449672
    %v1062 = vmul.f32 %v1058, %v1031
    %v1063 = vmul.f32 %v1059, %v1033
    %v1064 = vmul.f32 %v1060, %v1035
    %v1065 = vmul.f32 %v1061, %v1037
    %v1066 = vadd.f32 %v1062, 0.2548296
    %v1067 = vadd.f32 %v1063, 0.2548296
    %v1068 = vadd.f32 %v1064, 0.2548296
    %v1069 = vadd.f32 %v1065, 0.2548296
    %v1070 = vmul.f32 %v1066, %v1031
    %v1071 = vmul.f32 %v1067, %v1033
    %v1072 = vmul.f32 %v1068, %v1035
    %v1073 = vmul.f32 %v1069, %v1037
    %v1074 = vsub.f32 0.0, %v1018
    %v1075 = vsub.f32 0.0, %v1019
    %v1076 = vsub.f32 0.0, %v1020
    %v1077 = vsub.f32 0.0, %v1021
    %v1078 = vmul.f32 %v1074, %v1018
    %v1079 = vmul.f32 %v1075, %v1019
    %v1080 = vmul.f32 %v1076, %v1020
    %v1081 = vmul.f32 %v1077, %v1021
    %v1082 = vmul.f32 %v1078, 1.442695
    %v1083 = vpow.pop %v1082
    %v1084 = vmul.f32 %v1079, 1.442695
    %v1085 = vpow.pop %v1084
    %v1086 = vmul.f32 %v1080, 1.442695
    %v1087 = vpow.pop %v1086
    %v1088 = vmul.f32 %v1081, 1.442695
    %v1089 = vpow.pop %v1088
    %v1090 = vmul.f32 %v1070, %v1083
    %v1091 = vmul.f32 %v1071, %v1085
    %v1092 = vmul.f32 %v1072, %v1087
    %v1093 = vmul.f32 %v1073, %v1089
    %v1094 = vsub.f32 1.0, %v1090
    %v1095 = vsub.f32 1.0, %v1091
    %v1096 = vsub.f32 1.0, %v1092
    %v1097 = vsub.f32 1.0, %v1093
    %vm1098 = vcmp.ge.f32.partialorder %v1014, 0.0
    %vm1099 = vcmp.ge.f32.partialorder %v1015, 0.0
    %vm1100 = vcmp.ge.f32.partialorder %v1016, 0.0
    %vm1101 = vcmp.ge.f32.partialorder %v1017, 0.0
    %v1102 = vsub.f32 0.0, %v1094
    %v1103 = vsub.f32 0.0, %v1095
    %v1104 = vsub.f32 0.0, %v1096
    %v1105 = vsub.f32 0.0, %v1097
    %v1106 = vsel %vm1098, %v1094, %v1102
    %v1107 = vsel %vm1099, %v1095, %v1103
    %v1108 = vsel %vm1100, %v1096, %v1104
    %v1109 = vsel %vm1101, %v1097, %v1105
    %v1110 = vadd.f32 %v1106, 1.0
    %v1111 = vadd.f32 %v1107, 1.0
    %v1112 = vadd.f32 %v1108, 1.0
    %v1113 = vadd.f32 %v1109, 1.0
    %v1114 = vmul.f32 %v1010, %v1110
    %v1115 = vmul.f32 %v1011, %v1111
    %v1116 = vmul.f32 %v1012, %v1112
    %v1117 = vmul.f32 %v1013, %v1113
    %v1118 = vld [vmem:[#allocation5] sm:$0xff]
    %v1119 = vld [vmem:[#allocation5 + $0x8] sm:$0xff]
    %v1120 = vld [vmem:[#allocation5 + $0x10] sm:$0xff]
    %v1121 = vld [vmem:[#allocation5 + $0x18] sm:$0xff]
    %v1122 = vld [vmem:[#allocation5 + $0x20] sm:$0xff]
    %v1123 = vld [vmem:[#allocation5 + $0x28] sm:$0xff]
    %v1124 = vld [vmem:[#allocation5 + $0x30] sm:$0xff]
    %v1125 = vld [vmem:[#allocation5 + $0x38] sm:$0xff]
    %v1126 = vld [vmem:[#allocation5 + $0x40] sm:$0xff]
    %v1127 = vld [vmem:[#allocation5 + $0x48] sm:$0xff]
    %v1128 = vld [vmem:[#allocation5 + $0x50] sm:$0xff]
    %v1129 = vld [vmem:[#allocation5 + $0x58] sm:$0xff]
    %v1130 = vld [vmem:[#allocation5 + $0x60] sm:$0xff]
    %v1131 = vld [vmem:[#allocation5 + $0x68] sm:$0xff]
    %v1132 = vld [vmem:[#allocation5 + $0x70] sm:$0xff]
    %v1133 = vld [vmem:[#allocation5 + $0x78] sm:$0xff]
    %v1134 = vld [vmem:[#allocation5 + $0x80] sm:$0xff]
    %v1135 = vld [vmem:[#allocation5 + $0x88] sm:$0xff]
    %v1136 = vld [vmem:[#allocation5 + $0x90] sm:$0xff]
    %v1137 = vld [vmem:[#allocation5 + $0x98] sm:$0xff]
    %v1138 = vld [vmem:[#allocation5 + $0xa0] sm:$0xff]
    %v1139 = vld [vmem:[#allocation5 + $0xa8] sm:$0xff]
    %v1140 = vld [vmem:[#allocation5 + $0xb0] sm:$0xff]
    %v1141 = vld [vmem:[#allocation5 + $0xb8] sm:$0xff]
    %v1142 = vld [vmem:[#allocation5 + $0xc0] sm:$0xff]
    %v1143 = vld [vmem:[#allocation5 + $0xc8] sm:$0xff]
    %v1144 = vld [vmem:[#allocation5 + $0xd0] sm:$0xff]
    %v1145 = vld [vmem:[#allocation5 + $0xd8] sm:$0xff]
    %v1146 = vld [vmem:[#allocation5 + $0xe0] sm:$0xff]
    %v1147 = vld [vmem:[#allocation5 + $0xe8] sm:$0xff]
    %v1148 = vld [vmem:[#allocation5 + $0xf0] sm:$0xff]
    %v1149 = vld [vmem:[#allocation5 + $0xf8] sm:$0xff]
    %v1150 = vld [vmem:[#allocation5 + $0x100] sm:$0xff]
    %v1151 = vld [vmem:[#allocation5 + $0x108] sm:$0xff]
    %v1152 = vld [vmem:[#allocation5 + $0x110] sm:$0xff]
    %v1153 = vld [vmem:[#allocation5 + $0x118] sm:$0xff]
    %v1154 = vld [vmem:[#allocation5 + $0x120] sm:$0xff]
    %v1155 = vld [vmem:[#allocation5 + $0x128] sm:$0xff]
    %v1156 = vld [vmem:[#allocation5 + $0x130] sm:$0xff]
    %v1157 = vld [vmem:[#allocation5 + $0x138] sm:$0xff]
    %v1158 = vld [vmem:[#allocation5 + $0x140] sm:$0xff]
    %v1159 = vld [vmem:[#allocation5 + $0x148] sm:$0xff]
    %v1160 = vld [vmem:[#allocation5 + $0x150] sm:$0xff]
    %v1161 = vld [vmem:[#allocation5 + $0x158] sm:$0xff]
    %v1162 = vld [vmem:[#allocation5 + $0x160] sm:$0xff]
    %v1163 = vld [vmem:[#allocation5 + $0x168] sm:$0xff]
    %v1164 = vld [vmem:[#allocation5 + $0x170] sm:$0xff]
    %v1165 = vld [vmem:[#allocation5 + $0x178] sm:$0xff]
    %v1166 = vld [vmem:[#allocation5 + $0x180] sm:$0xff]
    %v1167 = vld [vmem:[#allocation5 + $0x188] sm:$0xff]
    %v1168 = vld [vmem:[#allocation5 + $0x190] sm:$0xff]
    %v1169 = vld [vmem:[#allocation5 + $0x198] sm:$0xff]
    %v1170 = vld [vmem:[#allocation5 + $0x1a0] sm:$0xff]
    %v1171 = vld [vmem:[#allocation5 + $0x1a8] sm:$0xff]
    %v1172 = vld [vmem:[#allocation5 + $0x1b0] sm:$0xff]
    %v1173 = vld [vmem:[#allocation5 + $0x1b8] sm:$0xff]
    %v1174 = vld [vmem:[#allocation5 + $0x1c0] sm:$0xff]
    %v1175 = vld [vmem:[#allocation5 + $0x1c8] sm:$0xff]
    %v1176 = vld [vmem:[#allocation5 + $0x1d0] sm:$0xff]
    %v1177 = vld [vmem:[#allocation5 + $0x1d8] sm:$0xff]
    %v1178 = vld [vmem:[#allocation5 + $0x1e0] sm:$0xff]
    %v1179 = vld [vmem:[#allocation5 + $0x1e8] sm:$0xff]
    %v1180 = vld [vmem:[#allocation5 + $0x1f0] sm:$0xff]
    %v1181 = vld [vmem:[#allocation5 + $0x1f8] sm:$0xff]
    %v1182 = vld [vmem:[#allocation5 + $0x200] sm:$0xff]
    %v1183 = vld [vmem:[#allocation5 + $0x208] sm:$0xff]
    %v1184 = vld [vmem:[#allocation5 + $0x210] sm:$0xff]
    %v1185 = vld [vmem:[#allocation5 + $0x218] sm:$0xff]
    %v1186 = vld [vmem:[#allocation5 + $0x220] sm:$0xff]
    %v1187 = vld [vmem:[#allocation5 + $0x228] sm:$0xff]
    %v1188 = vld [vmem:[#allocation5 + $0x230] sm:$0xff]
    %v1189 = vld [vmem:[#allocation5 + $0x238] sm:$0xff]
    %v1190 = vld [vmem:[#allocation5 + $0x240] sm:$0xff]
    %v1191 = vld [vmem:[#allocation5 + $0x248] sm:$0xff]
    %v1192 = vld [vmem:[#allocation5 + $0x250] sm:$0xff]
    %v1193 = vld [vmem:[#allocation5 + $0x258] sm:$0xff]
    %v1194 = vld [vmem:[#allocation5 + $0x260] sm:$0xff]
    %v1195 = vld [vmem:[#allocation5 + $0x268] sm:$0xff]
    %v1196 = vld [vmem:[#allocation5 + $0x270] sm:$0xff]
    %v1197 = vld [vmem:[#allocation5 + $0x278] sm:$0xff]
    %v1198 = vld [vmem:[#allocation5 + $0x280] sm:$0xff]
    %v1199 = vld [vmem:[#allocation5 + $0x288] sm:$0xff]
    %v1200 = vld [vmem:[#allocation5 + $0x290] sm:$0xff]
    %v1201 = vld [vmem:[#allocation5 + $0x298] sm:$0xff]
    %v1202 = vld [vmem:[#allocation5 + $0x2a0] sm:$0xff]
    %v1203 = vld [vmem:[#allocation5 + $0x2a8] sm:$0xff]
    %v1204 = vld [vmem:[#allocation5 + $0x2b0] sm:$0xff]
    %v1205 = vld [vmem:[#allocation5 + $0x2b8] sm:$0xff]
    %v1206 = vld [vmem:[#allocation5 + $0x2c0] sm:$0xff]
    %v1207 = vld [vmem:[#allocation5 + $0x2c8] sm:$0xff]
    %v1208 = vld [vmem:[#allocation5 + $0x2d0] sm:$0xff]
    %v1209 = vld [vmem:[#allocation5 + $0x2d8] sm:$0xff]
    %v1210 = vld [vmem:[#allocation5 + $0x2e0] sm:$0xff]
    %v1211 = vld [vmem:[#allocation5 + $0x2e8] sm:$0xff]
    %v1212 = vld [vmem:[#allocation5 + $0x2f0] sm:$0xff]
    %v1213 = vld [vmem:[#allocation5 + $0x2f8] sm:$0xff]
    %v1214 = vld [vmem:[#allocation5 + $0x300] sm:$0xff]
    %v1215 = vld [vmem:[#allocation5 + $0x308] sm:$0xff]
    %v1216 = vld [vmem:[#allocation5 + $0x310] sm:$0xff]
    %v1217 = vld [vmem:[#allocation5 + $0x318] sm:$0xff]
    %v1218 = vld [vmem:[#allocation5 + $0x320] sm:$0xff]
    %v1219 = vld [vmem:[#allocation5 + $0x328] sm:$0xff]
    %v1220 = vld [vmem:[#allocation5 + $0x330] sm:$0xff]
    %v1221 = vld [vmem:[#allocation5 + $0x338] sm:$0xff]
    %v1222 = vld [vmem:[#allocation5 + $0x340] sm:$0xff]
    %v1223 = vld [vmem:[#allocation5 + $0x348] sm:$0xff]
    %v1224 = vld [vmem:[#allocation5 + $0x350] sm:$0xff]
    %v1225 = vld [vmem:[#allocation5 + $0x358] sm:$0xff]
    %v1226 = vld [vmem:[#allocation5 + $0x360] sm:$0xff]
    %v1227 = vld [vmem:[#allocation5 + $0x368] sm:$0xff]
    %v1228 = vld [vmem:[#allocation5 + $0x370] sm:$0xff]
    %v1229 = vld [vmem:[#allocation5 + $0x378] sm:$0xff]
    %v1230 = vld [vmem:[#allocation5 + $0x380] sm:$0xff]
    %v1231 = vld [vmem:[#allocation5 + $0x388] sm:$0xff]
    %v1232 = vld [vmem:[#allocation5 + $0x390] sm:$0xff]
    %v1233 = vld [vmem:[#allocation5 + $0x398] sm:$0xff]
    %v1234 = vld [vmem:[#allocation5 + $0x3a0] sm:$0xff]
    %v1235 = vld [vmem:[#allocation5 + $0x3a8] sm:$0xff]
    %v1236 = vld [vmem:[#allocation5 + $0x3b0] sm:$0xff]
    %v1237 = vld [vmem:[#allocation5 + $0x3b8] sm:$0xff]
    %v1238 = vld [vmem:[#allocation5 + $0x3c0] sm:$0xff]
    %v1239 = vld [vmem:[#allocation5 + $0x3c8] sm:$0xff]
    %v1240 = vld [vmem:[#allocation5 + $0x3d0] sm:$0xff]
    %v1241 = vld [vmem:[#allocation5 + $0x3d8] sm:$0xff]
    %v1242 = vld [vmem:[#allocation5 + $0x3e0] sm:$0xff]
    %v1243 = vld [vmem:[#allocation5 + $0x3e8] sm:$0xff]
    %v1244 = vld [vmem:[#allocation5 + $0x3f0] sm:$0xff]
    %v1245 = vld [vmem:[#allocation5 + $0x3f8] sm:$0xff]
    %v1246 = vld [vmem:[#allocation5 + $0x400] sm:$0xff]
    %v1247 = vld [vmem:[#allocation5 + $0x408] sm:$0xff]
    %v1248 = vld [vmem:[#allocation5 + $0x410] sm:$0xff]
    %v1249 = vld [vmem:[#allocation5 + $0x418] sm:$0xff]
    %v1250 = vld [vmem:[#allocation5 + $0x420] sm:$0xff]
    %v1251 = vld [vmem:[#allocation5 + $0x428] sm:$0xff]
    %v1252 = vld [vmem:[#allocation5 + $0x430] sm:$0xff]
    %v1253 = vld [vmem:[#allocation5 + $0x438] sm:$0xff]
    %v1254 = vld [vmem:[#allocation5 + $0x440] sm:$0xff]
    %v1255 = vld [vmem:[#allocation5 + $0x448] sm:$0xff]
    %v1256 = vld [vmem:[#allocation5 + $0x450] sm:$0xff]
    %v1257 = vld [vmem:[#allocation5 + $0x458] sm:$0xff]
    %v1258 = vld [vmem:[#allocation5 + $0x460] sm:$0xff]
    %v1259 = vld [vmem:[#allocation5 + $0x468] sm:$0xff]
    %v1260 = vld [vmem:[#allocation5 + $0x470] sm:$0xff]
    %v1261 = vld [vmem:[#allocation5 + $0x478] sm:$0xff]
    %v1262 = vld [vmem:[#allocation5 + $0x480] sm:$0xff]
    %v1263 = vld [vmem:[#allocation5 + $0x488] sm:$0xff]
    %v1264 = vld [vmem:[#allocation5 + $0x490] sm:$0xff]
    %v1265 = vld [vmem:[#allocation5 + $0x498] sm:$0xff]
    %v1266 = vld [vmem:[#allocation5 + $0x4a0] sm:$0xff]
    %v1267 = vld [vmem:[#allocation5 + $0x4a8] sm:$0xff]
    %v1268 = vld [vmem:[#allocation5 + $0x4b0] sm:$0xff]
    %v1269 = vld [vmem:[#allocation5 + $0x4b8] sm:$0xff]
    %v1270 = vld [vmem:[#allocation5 + $0x4c0] sm:$0xff]
    %v1271 = vld [vmem:[#allocation5 + $0x4c8] sm:$0xff]
    %v1272 = vld [vmem:[#allocation5 + $0x4d0] sm:$0xff]
    %v1273 = vld [vmem:[#allocation5 + $0x4d8] sm:$0xff]
    %v1274 = vld [vmem:[#allocation5 + $0x4e0] sm:$0xff]
    %v1275 = vld [vmem:[#allocation5 + $0x4e8] sm:$0xff]
    %v1276 = vld [vmem:[#allocation5 + $0x4f0] sm:$0xff]
    %v1277 = vld [vmem:[#allocation5 + $0x4f8] sm:$0xff]
    %v1278 = vld [vmem:[#allocation5 + $0x500] sm:$0xff]
    %v1279 = vld [vmem:[#allocation5 + $0x508] sm:$0xff]
    %v1280 = vld [vmem:[#allocation5 + $0x510] sm:$0xff]
    %v1281 = vld [vmem:[#allocation5 + $0x518] sm:$0xff]
    %v1282 = vld [vmem:[#allocation5 + $0x520] sm:$0xff]
    %v1283 = vld [vmem:[#allocation5 + $0x528] sm:$0xff]
    %v1284 = vld [vmem:[#allocation5 + $0x530] sm:$0xff]
    %v1285 = vld [vmem:[#allocation5 + $0x538] sm:$0xff]
    %v1286 = vld [vmem:[#allocation5 + $0x540] sm:$0xff]
    %v1287 = vld [vmem:[#allocation5 + $0x548] sm:$0xff]
    %v1288 = vld [vmem:[#allocation5 + $0x550] sm:$0xff]
    %v1289 = vld [vmem:[#allocation5 + $0x558] sm:$0xff]
    %v1290 = vld [vmem:[#allocation5 + $0x560] sm:$0xff]
    %v1291 = vld [vmem:[#allocation5 + $0x568] sm:$0xff]
    %v1292 = vld [vmem:[#allocation5 + $0x570] sm:$0xff]
    %v1293 = vld [vmem:[#allocation5 + $0x578] sm:$0xff]
    %v1294 = vld [vmem:[#allocation5 + $0x580] sm:$0xff]
    %v1295 = vld [vmem:[#allocation5 + $0x588] sm:$0xff]
    %v1296 = vld [vmem:[#allocation5 + $0x590] sm:$0xff]
    %v1297 = vld [vmem:[#allocation5 + $0x598] sm:$0xff]
    %v1298 = vld [vmem:[#allocation5 + $0x5a0] sm:$0xff]
    %v1299 = vld [vmem:[#allocation5 + $0x5a8] sm:$0xff]
    %v1300 = vld [vmem:[#allocation5 + $0x5b0] sm:$0xff]
    %v1301 = vld [vmem:[#allocation5 + $0x5b8] sm:$0xff]
    %v1302 = vld [vmem:[#allocation5 + $0x5c0] sm:$0xff]
    %v1303 = vld [vmem:[#allocation5 + $0x5c8] sm:$0xff]
    %v1304 = vld [vmem:[#allocation5 + $0x5d0] sm:$0xff]
    %v1305 = vld [vmem:[#allocation5 + $0x5d8] sm:$0xff]
    %v1306 = vld [vmem:[#allocation5 + $0x5e0] sm:$0xff]
    %v1307 = vld [vmem:[#allocation5 + $0x5e8] sm:$0xff]
    %v1308 = vld [vmem:[#allocation5 + $0x5f0] sm:$0xff]
    %v1309 = vld [vmem:[#allocation5 + $0x5f8] sm:$0xff]
    %v1310 = vld [vmem:[#allocation5 + $0x600] sm:$0xff]
    %v1311 = vld [vmem:[#allocation5 + $0x608] sm:$0xff]
    %v1312 = vld [vmem:[#allocation5 + $0x610] sm:$0xff]
    %v1313 = vld [vmem:[#allocation5 + $0x618] sm:$0xff]
    %v1314 = vld [vmem:[#allocation5 + $0x620] sm:$0xff]
    %v1315 = vld [vmem:[#allocation5 + $0x628] sm:$0xff]
    %v1316 = vld [vmem:[#allocation5 + $0x630] sm:$0xff]
    %v1317 = vld [vmem:[#allocation5 + $0x638] sm:$0xff]
    %v1318 = vld [vmem:[#allocation5 + $0x640] sm:$0xff]
    %v1319 = vld [vmem:[#allocation5 + $0x648] sm:$0xff]
    %v1320 = vld [vmem:[#allocation5 + $0x650] sm:$0xff]
    %v1321 = vld [vmem:[#allocation5 + $0x658] sm:$0xff]
    %v1322 = vld [vmem:[#allocation5 + $0x660] sm:$0xff]
    %v1323 = vld [vmem:[#allocation5 + $0x668] sm:$0xff]
    %v1324 = vld [vmem:[#allocation5 + $0x670] sm:$0xff]
    %v1325 = vld [vmem:[#allocation5 + $0x678] sm:$0xff]
    %v1326 = vld [vmem:[#allocation5 + $0x680] sm:$0xff]
    %v1327 = vld [vmem:[#allocation5 + $0x688] sm:$0xff]
    %v1328 = vld [vmem:[#allocation5 + $0x690] sm:$0xff]
    %v1329 = vld [vmem:[#allocation5 + $0x698] sm:$0xff]
    %v1330 = vld [vmem:[#allocation5 + $0x6a0] sm:$0xff]
    %v1331 = vld [vmem:[#allocation5 + $0x6a8] sm:$0xff]
    %v1332 = vld [vmem:[#allocation5 + $0x6b0] sm:$0xff]
    %v1333 = vld [vmem:[#allocation5 + $0x6b8] sm:$0xff]
    %v1334 = vld [vmem:[#allocation5 + $0x6c0] sm:$0xff]
    %v1335 = vld [vmem:[#allocation5 + $0x6c8] sm:$0xff]
    %v1336 = vld [vmem:[#allocation5 + $0x6d0] sm:$0xff]
    %v1337 = vld [vmem:[#allocation5 + $0x6d8] sm:$0xff]
    %v1338 = vld [vmem:[#allocation5 + $0x6e0] sm:$0xff]
    %v1339 = vld [vmem:[#allocation5 + $0x6e8] sm:$0xff]
    %v1340 = vld [vmem:[#allocation5 + $0x6f0] sm:$0xff]
    %v1341 = vld [vmem:[#allocation5 + $0x6f8] sm:$0xff]
    %v1342 = vld [vmem:[#allocation5 + $0x700] sm:$0xff]
    %v1343 = vld [vmem:[#allocation5 + $0x708] sm:$0xff]
    %v1344 = vld [vmem:[#allocation5 + $0x710] sm:$0xff]
    %v1345 = vld [vmem:[#allocation5 + $0x718] sm:$0xff]
    %v1346 = vld [vmem:[#allocation5 + $0x720] sm:$0xff]
    %v1347 = vld [vmem:[#allocation5 + $0x728] sm:$0xff]
    %v1348 = vld [vmem:[#allocation5 + $0x730] sm:$0xff]
    %v1349 = vld [vmem:[#allocation5 + $0x738] sm:$0xff]
    %v1350 = vld [vmem:[#allocation5 + $0x740] sm:$0xff]
    %v1351 = vld [vmem:[#allocation5 + $0x748] sm:$0xff]
    %v1352 = vld [vmem:[#allocation5 + $0x750] sm:$0xff]
    %v1353 = vld [vmem:[#allocation5 + $0x758] sm:$0xff]
    %v1354 = vld [vmem:[#allocation5 + $0x760] sm:$0xff]
    %v1355 = vld [vmem:[#allocation5 + $0x768] sm:$0xff]
    %v1356 = vld [vmem:[#allocation5 + $0x770] sm:$0xff]
    %v1357 = vld [vmem:[#allocation5 + $0x778] sm:$0xff]
    %v1358 = vld [vmem:[#allocation5 + $0x780] sm:$0xff]
    %v1359 = vld [vmem:[#allocation5 + $0x788] sm:$0xff]
    %v1360 = vld [vmem:[#allocation5 + $0x790] sm:$0xff]
    %v1361 = vld [vmem:[#allocation5 + $0x798] sm:$0xff]
    %v1362 = vld [vmem:[#allocation5 + $0x7a0] sm:$0xff]
    %v1363 = vld [vmem:[#allocation5 + $0x7a8] sm:$0xff]
    %v1364 = vld [vmem:[#allocation5 + $0x7b0] sm:$0xff]
    %v1365 = vld [vmem:[#allocation5 + $0x7b8] sm:$0xff]
    %v1366 = vld [vmem:[#allocation5 + $0x7c0] sm:$0xff]
    %v1367 = vld [vmem:[#allocation5 + $0x7c8] sm:$0xff]
    %v1368 = vld [vmem:[#allocation5 + $0x7d0] sm:$0xff]
    %v1369 = vld [vmem:[#allocation5 + $0x7d8] sm:$0xff]
    %v1370 = vld [vmem:[#allocation5 + $0x7e0] sm:$0xff]
    %v1371 = vld [vmem:[#allocation5 + $0x7e8] sm:$0xff]
    %v1372 = vld [vmem:[#allocation5 + $0x7f0] sm:$0xff]
    %v1373 = vld [vmem:[#allocation5 + $0x7f8] sm:$0xff]
    %v1374 = vld [vmem:[%s11] sm:$0xf]
    %v1376 = vlaneseq
    %v1377 = vshrl.u32 %v1376, 7
    %v1378 = vsub.s32 0, %v1377
    %v1379 = vrot.slane %v1374, %v1378
    %v1380 = vlaneseq
    %v1381 = vshrl.u32 %v1380, 7
    %v1382 = vsub.s32 1, %v1381
    %v1383 = vrot.slane %v1374, %v1382
    %v1384 = vlaneseq
    %v1385 = vshrl.u32 %v1384, 7
    %v1386 = vsub.s32 2, %v1385
    %v1387 = vrot.slane %v1374, %v1386
    %v1388 = vlaneseq
    %v1389 = vshrl.u32 %v1388, 7
    %v1390 = vsub.s32 3, %v1389
    %v1391 = vrot.slane %v1374, %v1390
    %1396 = vmatprep.subr.mxu0 %v1119
    %1397 = vmatpush1.msra.mxu0 %v1118
    %1398 = vmatprep.subr.mxu0 %v1123
    %1399 = vmatpush1.msra.mxu0 %v1122
    %1400 = vmatprep.subr.mxu0 %v1127
    %1401 = vmatpush1.msra.mxu0 %v1126
    %1402 = vmatprep.subr.mxu0 %v1131
    %1403 = vmatpush1.msra.mxu0 %v1130
    %1404 = vmatprep.subr.mxu0 %v1135
    %1405 = vmatpush1.msra.mxu0 %v1134
    %1406 = vmatprep.subr.mxu0 %v1139
    %1407 = vmatpush1.msra.mxu0 %v1138
    %1408 = vmatprep.subr.mxu0 %v1143
    %1409 = vmatpush1.msra.mxu0 %v1142
    %1410 = vmatprep.subr.mxu0 %v1147
    %1411 = vmatpush1.msra.mxu0 %v1146
    %1412 = vmatprep.subr.mxu0 %v1151
    %1413 = vmatpush1.msra.mxu0 %v1150
    %1414 = vmatprep.subr.mxu0 %v1155
    %1415 = vmatpush1.msra.mxu0 %v1154
    %1416 = vmatprep.subr.mxu0 %v1159
    %1417 = vmatpush1.msra.mxu0 %v1158
    %1418 = vmatprep.subr.mxu0 %v1163
    %1419 = vmatpush1.msra.mxu0 %v1162
    %1420 = vmatprep.subr.mxu0 %v1167
    %1421 = vmatpush1.msra.mxu0 %v1166
    %1422 = vmatprep.subr.mxu0 %v1171
    %1423 = vmatpush1.msra.mxu0 %v1170
    %1424 = vmatprep.subr.mxu0 %v1175
    %1425 = vmatpush1.msra.mxu0 %v1174
    %1426 = vmatprep.subr.mxu0 %v1179
    %1427 = vmatpush1.msra.mxu0 %v1178
    %1428 = vmatprep.subr.mxu0 %v1183
    %1429 = vmatpush1.msra.mxu0 %v1182
    %1430 = vmatprep.subr.mxu0 %v1187
    %1431 = vmatpush1.msra.mxu0 %v1186
    %1432 = vmatprep.subr.mxu0 %v1191
    %1433 = vmatpush1.msra.mxu0 %v1190
    %1434 = vmatprep.subr.mxu0 %v1195
    %1435 = vmatpush1.msra.mxu0 %v1194
    %1436 = vmatprep.subr.mxu0 %v1199
    %1437 = vmatpush1.msra.mxu0 %v1198
    %1438 = vmatprep.subr.mxu0 %v1203
    %1439 = vmatpush1.msra.mxu0 %v1202
    %1440 = vmatprep.subr.mxu0 %v1207
    %1441 = vmatpush1.msra.mxu0 %v1206
    %1442 = vmatprep.subr.mxu0 %v1211
    %1443 = vmatpush1.msra.mxu0 %v1210
    %1444 = vmatprep.subr.mxu0 %v1215
    %1445 = vmatpush1.msra.mxu0 %v1214
    %1446 = vmatprep.subr.mxu0 %v1219
    %1447 = vmatpush1.msra.mxu0 %v1218
    %1448 = vmatprep.subr.mxu0 %v1223
    %1449 = vmatpush1.msra.mxu0 %v1222
    %1450 = vmatprep.subr.mxu0 %v1227
    %1451 = vmatpush1.msra.mxu0 %v1226
    %1452 = vmatprep.subr.mxu0 %v1231
    %1453 = vmatpush1.msra.mxu0 %v1230
    %1454 = vmatprep.subr.mxu0 %v1235
    %1455 = vmatpush1.msra.mxu0 %v1234
    %1456 = vmatprep.subr.mxu0 %v1239
    %1457 = vmatpush1.msra.mxu0 %v1238
    %1458 = vmatprep.subr.mxu0 %v1243
    %1459 = vmatpush1.msra.mxu0 %v1242
    %1460 = vmatprep.mubr.f32.mxu0 %v1115
    %1461 = vmatmul.mubr.f32.gmra.mrb[0].mxu0 %v1114
    %v1462 = vpop.f32.mrb[0].mxu0
    %v1463 = vadd.f32 %v1379, %v1462
    %v1464 = vpop.f32.mrb[0].mxu0
    %v1465 = vadd.f32 %v1383, %v1464
    %1466 = vdwg.mxu0
    %1467 = vmatprep.subr.mxu0 %v1247
    %1468 = vmatpush1.msra.mxu0 %v1246
    %1469 = vmatprep.subr.mxu0 %v1251
    %1470 = vmatpush1.msra.mxu0 %v1250
    %1471 = vmatprep.subr.mxu0 %v1255
    %1472 = vmatpush1.msra.mxu0 %v1254
    %1473 = vmatprep.subr.mxu0 %v1259
    %1474 = vmatpush1.msra.mxu0 %v1258
    %1475 = vmatprep.subr.mxu0 %v1263
    %1476 = vmatpush1.msra.mxu0 %v1262
    %1477 = vmatprep.subr.mxu0 %v1267
    %1478 = vmatpush1.msra.mxu0 %v1266
    %1479 = vmatprep.subr.mxu0 %v1271
    %1480 = vmatpush1.msra.mxu0 %v1270
    %1481 = vmatprep.subr.mxu0 %v1275
    %1482 = vmatpush1.msra.mxu0 %v1274
    %1483 = vmatprep.subr.mxu0 %v1279
    %1484 = vmatpush1.msra.mxu0 %v1278
    %1485 = vmatprep.subr.mxu0 %v1283
    %1486 = vmatpush1.msra.mxu0 %v1282
    %1487 = vmatprep.subr.mxu0 %v1287
    %1488 = vmatpush1.msra.mxu0 %v1286
    %1489 = vmatprep.subr.mxu0 %v1291
    %1490 = vmatpush1.msra.mxu0 %v1290
    %1491 = vmatprep.subr.mxu0 %v1295
    %1492 = vmatpush1.msra.mxu0 %v1294
    %1493 = vmatprep.subr.mxu0 %v1299
    %1494 = vmatpush1.msra.mxu0 %v1298
    %1495 = vmatprep.subr.mxu0 %v1303
    %1496 = vmatpush1.msra.mxu0 %v1302
    %1497 = vmatprep.subr.mxu0 %v1307
    %1498 = vmatpush1.msra.mxu0 %v1306
    %1499 = vmatprep.subr.mxu0 %v1311
    %1500 = vmatpush1.msra.mxu0 %v1310
    %1501 = vmatprep.subr.mxu0 %v1315
    %1502 = vmatpush1.msra.mxu0 %v1314
    %1503 = vmatprep.subr.mxu0 %v1319
    %1504 = vmatpush1.msra.mxu0 %v1318
    %1505 = vmatprep.subr.mxu0 %v1323
    %1506 = vmatpush1.msra.mxu0 %v1322
    %1507 = vmatprep.subr.mxu0 %v1327
    %1508 = vmatpush1.msra.mxu0 %v1326
    %1509 = vmatprep.subr.mxu0 %v1331
    %1510 = vmatpush1.msra.mxu0 %v1330
    %1511 = vmatprep.subr.mxu0 %v1335
    %1512 = vmatpush1.msra.mxu0 %v1334
    %1513 = vmatprep.subr.mxu0 %v1339
    %1514 = vmatpush1.msra.mxu0 %v1338
    %1515 = vmatprep.subr.mxu0 %v1343
    %1516 = vmatpush1.msra.mxu0 %v1342
    %1517 = vmatprep.subr.mxu0 %v1347
    %1518 = vmatpush1.msra.mxu0 %v1346
    %1519 = vmatprep.subr.mxu0 %v1351
    %1520 = vmatpush1.msra.mxu0 %v1350
    %1521 = vmatprep.subr.mxu0 %v1355
    %1522 = vmatpush1.msra.mxu0 %v1354
    %1523 = vmatprep.subr.mxu0 %v1359
    %1524 = vmatpush1.msra.mxu0 %v1358
    %1525 = vmatprep.subr.mxu0 %v1363
    %1526 = vmatpush1.msra.mxu0 %v1362
    %1527 = vmatprep.subr.mxu0 %v1367
    %1528 = vmatpush1.msra.mxu0 %v1366
    %1529 = vmatprep.subr.mxu0 %v1371
    %1530 = vmatpush1.msra.mxu0 %v1370
    %1531 = vmatprep.mubr.f32.mxu0 %v1117
    %1532 = vmatmul.mubr.f32.gmra.mrb[0].mxu0 %v1116
    %v1533 = vpop.f32.mrb[0].mxu0
    %v1534 = vadd.f32 %v1463, %v1533
    %v1535 = vpop.f32.mrb[0].mxu0
    %v1536 = vadd.f32 %v1465, %v1535
    %1537 = vdwg.mxu0
    %1538 = vmatprep.subr.mxu0 %v1121
    %1539 = vmatpush1.msra.mxu0 %v1120
    %1540 = vmatprep.subr.mxu0 %v1125
    %1541 = vmatpush1.msra.mxu0 %v1124
    %1542 = vmatprep.subr.mxu0 %v1129
    %1543 = vmatpush1.msra.mxu0 %v1128
    %1544 = vmatprep.subr.mxu0 %v1133
    %1545 = vmatpush1.msra.mxu0 %v1132
    %1546 = vmatprep.subr.mxu0 %v1137
    %1547 = vmatpush1.msra.mxu0 %v1136
    %1548 = vmatprep.subr.mxu0 %v1141
    %1549 = vmatpush1.msra.mxu0 %v1140
    %1550 = vmatprep.subr.mxu0 %v1145
    %1551 = vmatpush1.msra.mxu0 %v1144
    %1552 = vmatprep.subr.mxu0 %v1149
    %1553 = vmatpush1.msra.mxu0 %v1148
    %1554 = vmatprep.subr.mxu0 %v1153
    %1555 = vmatpush1.msra.mxu0 %v1152
    %1556 = vmatprep.subr.mxu0 %v1157
    %1557 = vmatpush1.msra.mxu0 %v1156
    %1558 = vmatprep.subr.mxu0 %v1161
    %1559 = vmatpush1.msra.mxu0 %v1160
    %1560 = vmatprep.subr.mxu0 %v1165
    %1561 = vmatpush1.msra.mxu0 %v1164
    %1562 = vmatprep.subr.mxu0 %v1169
    %1563 = vmatpush1.msra.mxu0 %v1168
    %1564 = vmatprep.subr.mxu0 %v1173
    %1565 = vmatpush1.msra.mxu0 %v1172
    %1566 = vmatprep.subr.mxu0 %v1177
    %1567 = vmatpush1.msra.mxu0 %v1176
    %1568 = vmatprep.subr.mxu0 %v1181
    %1569 = vmatpush1.msra.mxu0 %v1180
    %1570 = vmatprep.subr.mxu0 %v1185
    %1571 = vmatpush1.msra.mxu0 %v1184
    %1572 = vmatprep.subr.mxu0 %v1189
    %1573 = vmatpush1.msra.mxu0 %v1188
    %1574 = vmatprep.subr.mxu0 %v1193
    %1575 = vmatpush1.msra.mxu0 %v1192
    %1576 = vmatprep.subr.mxu0 %v1197
    %1577 = vmatpush1.msra.mxu0 %v1196
    %1578 = vmatprep.subr.mxu0 %v1201
    %1579 = vmatpush1.msra.mxu0 %v1200
    %1580 = vmatprep.subr.mxu0 %v1205
    %1581 = vmatpush1.msra.mxu0 %v1204
    %1582 = vmatprep.subr.mxu0 %v1209
    %1583 = vmatpush1.msra.mxu0 %v1208
    %1584 = vmatprep.subr.mxu0 %v1213
    %1585 = vmatpush1.msra.mxu0 %v1212
    %1586 = vmatprep.subr.mxu0 %v1217
    %1587 = vmatpush1.msra.mxu0 %v1216
    %1588 = vmatprep.subr.mxu0 %v1221
    %1589 = vmatpush1.msra.mxu0 %v1220
    %1590 = vmatprep.subr.mxu0 %v1225
    %1591 = vmatpush1.msra.mxu0 %v1224
    %1592 = vmatprep.subr.mxu0 %v1229
    %1593 = vmatpush1.msra.mxu0 %v1228
    %1594 = vmatprep.subr.mxu0 %v1233
    %1595 = vmatpush1.msra.mxu0 %v1232
    %1596 = vmatprep.subr.mxu0 %v1237
    %1597 = vmatpush1.msra.mxu0 %v1236
    %1598 = vmatprep.subr.mxu0 %v1241
    %1599 = vmatpush1.msra.mxu0 %v1240
    %1600 = vmatprep.subr.mxu0 %v1245
    %1601 = vmatpush1.msra.mxu0 %v1244
    %1602 = vmatprep.mubr.f32.mxu0 %v1115
    %1603 = vmatmul.mubr.f32.gmra.mrb[0].mxu0 %v1114
    %v1604 = vpop.f32.mrb[0].mxu0
    %v1605 = vadd.f32 %v1387, %v1604
    %v1606 = vpop.f32.mrb[0].mxu0
    %v1607 = vadd.f32 %v1391, %v1606
    %1608 = vdwg.mxu0
    %1609 = vmatprep.subr.mxu0 %v1249
    %1610 = vmatpush1.msra.mxu0 %v1248
    %1611 = vmatprep.subr.mxu0 %v1253
    %1612 = vmatpush1.msra.mxu0 %v1252
    %1613 = vmatprep.subr.mxu0 %v1257
    %1614 = vmatpush1.msra.mxu0 %v1256
    %1615 = vmatprep.subr.mxu0 %v1261
    %1616 = vmatpush1.msra.mxu0 %v1260
    %1617 = vmatprep.subr.mxu0 %v1265
    %1618 = vmatpush1.msra.mxu0 %v1264
    %1619 = vmatprep.subr.mxu0 %v1269
    %1620 = vmatpush1.msra.mxu0 %v1268
    %1621 = vmatprep.subr.mxu0 %v1273
    %1622 = vmatpush1.msra.mxu0 %v1272
    %1623 = vmatprep.subr.mxu0 %v1277
    %1624 = vmatpush1.msra.mxu0 %v1276
    %1625 = vmatprep.subr.mxu0 %v1281
    %1626 = vmatpush1.msra.mxu0 %v1280
    %1627 = vmatprep.subr.mxu0 %v1285
    %1628 = vmatpush1.msra.mxu0 %v1284
    %1629 = vmatprep.subr.mxu0 %v1289
    %1630 = vmatpush1.msra.mxu0 %v1288
    %1631 = vmatprep.subr.mxu0 %v1293
    %1632 = vmatpush1.msra.mxu0 %v1292
    %1633 = vmatprep.subr.mxu0 %v1297
    %1634 = vmatpush1.msra.mxu0 %v1296
    %1635 = vmatprep.subr.mxu0 %v1301
    %1636 = vmatpush1.msra.mxu0 %v1300
    %1637 = vmatprep.subr.mxu0 %v1305
    %1638 = vmatpush1.msra.mxu0 %v1304
    %1639 = vmatprep.subr.mxu0 %v1309
    %1640 = vmatpush1.msra.mxu0 %v1308
    %1641 = vmatprep.subr.mxu0 %v1313
    %1642 = vmatpush1.msra.mxu0 %v1312
    %1643 = vmatprep.subr.mxu0 %v1317
    %1644 = vmatpush1.msra.mxu0 %v1316
    %1645 = vmatprep.subr.mxu0 %v1321
    %1646 = vmatpush1.msra.mxu0 %v1320
    %1647 = vmatprep.subr.mxu0 %v1325
    %1648 = vmatpush1.msra.mxu0 %v1324
    %1649 = vmatprep.subr.mxu0 %v1329
    %1650 = vmatpush1.msra.mxu0 %v1328
    %1651 = vmatprep.subr.mxu0 %v1333
    %1652 = vmatpush1.msra.mxu0 %v1332
    %1653 = vmatprep.subr.mxu0 %v1337
    %1654 = vmatpush1.msra.mxu0 %v1336
    %1655 = vmatprep.subr.mxu0 %v1341
    %1656 = vmatpush1.msra.mxu0 %v1340
    %1657 = vmatprep.subr.mxu0 %v1345
    %1658 = vmatpush1.msra.mxu0 %v1344
    %1659 = vmatprep.subr.mxu0 %v1349
    %1660 = vmatpush1.msra.mxu0 %v1348
    %1661 = vmatprep.subr.mxu0 %v1353
    %1662 = vmatpush1.msra.mxu0 %v1352
    %1663 = vmatprep.subr.mxu0 %v1357
    %1664 = vmatpush1.msra.mxu0 %v1356
    %1665 = vmatprep.subr.mxu0 %v1361
    %1666 = vmatpush1.msra.mxu0 %v1360
    %1667 = vmatprep.subr.mxu0 %v1365
    %1668 = vmatpush1.msra.mxu0 %v1364
    %1669 = vmatprep.subr.mxu0 %v1369
    %1670 = vmatpush1.msra.mxu0 %v1368
    %1671 = vmatprep.subr.mxu0 %v1373
    %1672 = vmatpush1.msra.mxu0 %v1372
    %1673 = vmatprep.mubr.f32.mxu0 %v1117
    %1674 = vmatmul.mubr.f32.gmra.mrb[0].mxu0 %v1116
    %v1675 = vpop.f32.mrb[0].mxu0
    %v1676 = vadd.f32 %v1605, %v1675
    %v1677 = vpop.f32.mrb[0].mxu0
    %v1678 = vadd.f32 %v1607, %v1677
    %1679 = vdwg.mxu0
    %v1680 = vmul.f32 %v1534, 0.5
    %v1681 = vmul.f32 %v1536, 0.5
    %v1682 = vmul.f32 %v1676, 0.5
    %v1683 = vmul.f32 %v1678, 0.5
    %v1684 = vmul.f32 %v1534, 0.70710677
    %v1685 = vmul.f32 %v1536, 0.70710677
    %v1686 = vmul.f32 %v1676, 0.70710677
    %v1687 = vmul.f32 %v1678, 0.70710677
    %v1688 = vand.u32 2147483647, %v1684
    %v1689 = vand.u32 2147483647, %v1685
    %v1690 = vand.u32 2147483647, %v1686
    %v1691 = vand.u32 2147483647, %v1687
    %v1692 = vmul.f32 %v1688, 0.3275911
    %v1693 = vmul.f32 %v1689, 0.3275911
    %v1694 = vmul.f32 %v1690, 0.3275911
    %v1695 = vmul.f32 %v1691, 0.3275911
    %v1696 = vadd.f32 %v1692, 1.0
    %v1697 = vadd.f32 %v1693, 1.0
    %v1698 = vadd.f32 %v1694, 1.0
    %v1699 = vadd.f32 %v1695, 1.0
    %v1700 = vrcp.pop %v1696
    %v1701 = vmul.f32 1.0, %v1700
    %v1702 = vrcp.pop %v1697
    %v1703 = vmul.f32 1.0, %v1702
    %v1704 = vrcp.pop %v1698
    %v1705 = vmul.f32 1.0, %v1704
    %v1706 = vrcp.pop %v1699
    %v1707 = vmul.f32 1.0, %v1706
    %v1708 = vmul.f32 %v1701, 1.0614054
    %v1709 = vmul.f32 %v1703, 1.0614054
    %v1710 = vmul.f32 %v1705, 1.0614054
    %v1711 = vmul.f32 %v1707, 1.0614054
    %v1712 = vadd.f32 %v1708, -1.4531521
    %v1713 = vadd.f32 %v1709, -1.4531521
    %v1714 = vadd.f32 %v1710, -1.4531521
    %v1715 = vadd.f32 %v1711, -1.4531521
    %v1716 = vmul.f32 %v1712, %v1701
    %v1717 = vmul.f32 %v1713, %v1703
    %v1718 = vmul.f32 %v1714, %v1705
    %v1719 = vmul.f32 %v1715, %v1707
    %v1720 = vadd.f32 %v1716, 1.4214138
    %v1721 = vadd.f32 %v1717, 1.4214138
    %v1722 = vadd.f32 %v1718, 1.4214138
    %v1723 = vadd.f32 %v1719, 1.4214138
    %v1724 = vmul.f32 %v1720, %v1701
    %v1725 = vmul.f32 %v1721, %v1703
    %v1726 = vmul.f32 %v1722, %v1705
    %v1727 = vmul.f32 %v1723, %v1707
    %v1728 = vadd.f32 %v1724, -0.28449672
    %v1729 = vadd.f32 %v1725, -0.28449672
    %v1730 = vadd.f32 %v1726, -0.28449672
    %v1731 = vadd.f32 %v1727, -0.28449672
    %v1732 = vmul.f32 %v1728, %v1701
    %v1733 = vmul.f32 %v1729, %v1703
    %v1734 = vmul.f32 %v1730, %v1705
    %v1735 = vmul.f32 %v1731, %v1707
    %v1736 = vadd.f32 %v1732, 0.2548296
    %v1737 = vadd.f32 %v1733, 0.2548296
    %v1738 = vadd.f32 %v1734, 0.2548296
    %v1739 = vadd.f32 %v1735, 0.2548296
    %v1740 = vmul.f32 %v1736, %v1701
    %v1741 = vmul.f32 %v1737, %v1703
    %v1742 = vmul.f32 %v1738, %v1705
    %v1743 = vmul.f32 %v1739, %v1707
    %v1744 = vsub.f32 0.0, %v1688
    %v1745 = vsub.f32 0.0, %v1689
    %v1746 = vsub.f32 0.0, %v1690
    %v1747 = vsub.f32 0.0, %v1691
    %v1748 = vmul.f32 %v1744, %v1688
    %v1749 = vmul.f32 %v1745, %v1689
    %v1750 = vmul.f32 %v1746, %v1690
    %v1751 = vmul.f32 %v1747, %v1691
    %v1752 = vmul.f32 %v1748, 1.442695
    %v1753 = vpow.pop %v1752
    %v1754 = vmul.f32 %v1749, 1.442695
    %v1755 = vpow.pop %v1754
    %v1756 = vmul.f32 %v1750, 1.442695
    %v1757 = vpow.pop %v1756
    %v1758 = vmul.f32 %v1751, 1.442695
    %v1759 = vpow.pop %v1758
    %v1760 = vmul.f32 %v1740, %v1753
    %v1761 = vmul.f32 %v1741, %v1755
    %v1762 = vmul.f32 %v1742, %v1757
    %v1763 = vmul.f32 %v1743, %v1759
    %v1764 = vsub.f32 1.0, %v1760
    %v1765 = vsub.f32 1.0, %v1761
    %v1766 = vsub.f32 1.0, %v1762
    %v1767 = vsub.f32 1.0, %v1763
    %vm1768 = vcmp.ge.f32.partialorder %v1684, 0.0
    %vm1769 = vcmp.ge.f32.partialorder %v1685, 0.0
    %vm1770 = vcmp.ge.f32.partialorder %v1686, 0.0
    %vm1771 = vcmp.ge.f32.partialorder %v1687, 0.0
    %v1772 = vsub.f32 0.0, %v1764
    %v1773 = vsub.f32 0.0, %v1765
    %v1774 = vsub.f32 0.0, %v1766
    %v1775 = vsub.f32 0.0, %v1767
    %v1776 = vsel %vm1768, %v1764, %v1772
    %v1777 = vsel %vm1769, %v1765, %v1773
    %v1778 = vsel %vm1770, %v1766, %v1774
    %v1779 = vsel %vm1771, %v1767, %v1775
    %v1780 = vadd.f32 %v1776, 1.0
    %v1781 = vadd.f32 %v1777, 1.0
    %v1782 = vadd.f32 %v1778, 1.0
    %v1783 = vadd.f32 %v1779, 1.0
    %v1784 = vmul.f32 %v1680, %v1780
    %v1785 = vmul.f32 %v1681, %v1781
    %v1786 = vmul.f32 %v1682, %v1782
    %v1787 = vmul.f32 %v1683, %v1783
    %v1788 = vld [vmem:[#allocation7] sm:$0xff]
    %v1789 = vld [vmem:[#allocation7 + $0x8] sm:$0xff]
    %v1790 = vld [vmem:[#allocation7 + $0x10] sm:$0xff]
    %v1791 = vld [vmem:[#allocation7 + $0x18] sm:$0xff]
    %v1792 = vld [vmem:[#allocation7 + $0x20] sm:$0xff]
    %v1793 = vld [vmem:[#allocation7 + $0x28] sm:$0xff]
    %v1794 = vld [vmem:[#allocation7 + $0x30] sm:$0xff]
    %v1795 = vld [vmem:[#allocation7 + $0x38] sm:$0xff]
    %v1796 = vld [vmem:[#allocation7 + $0x40] sm:$0xff]
    %v1797 = vld [vmem:[#allocation7 + $0x48] sm:$0xff]
    %v1798 = vld [vmem:[#allocation7 + $0x50] sm:$0xff]
    %v1799 = vld [vmem:[#allocation7 + $0x58] sm:$0xff]
    %v1800 = vld [vmem:[#allocation7 + $0x60] sm:$0xff]
    %v1801 = vld [vmem:[#allocation7 + $0x68] sm:$0xff]
    %v1802 = vld [vmem:[#allocation7 + $0x70] sm:$0xff]
    %v1803 = vld [vmem:[#allocation7 + $0x78] sm:$0xff]
    %v1804 = vld [vmem:[#allocation7 + $0x80] sm:$0xff]
    %v1805 = vld [vmem:[#allocation7 + $0x88] sm:$0xff]
    %v1806 = vld [vmem:[#allocation7 + $0x90] sm:$0xff]
    %v1807 = vld [vmem:[#allocation7 + $0x98] sm:$0xff]
    %v1808 = vld [vmem:[#allocation7 + $0xa0] sm:$0xff]
    %v1809 = vld [vmem:[#allocation7 + $0xa8] sm:$0xff]
    %v1810 = vld [vmem:[#allocation7 + $0xb0] sm:$0xff]
    %v1811 = vld [vmem:[#allocation7 + $0xb8] sm:$0xff]
    %v1812 = vld [vmem:[#allocation7 + $0xc0] sm:$0xff]
    %v1813 = vld [vmem:[#allocation7 + $0xc8] sm:$0xff]
    %v1814 = vld [vmem:[#allocation7 + $0xd0] sm:$0xff]
    %v1815 = vld [vmem:[#allocation7 + $0xd8] sm:$0xff]
    %v1816 = vld [vmem:[#allocation7 + $0xe0] sm:$0xff]
    %v1817 = vld [vmem:[#allocation7 + $0xe8] sm:$0xff]
    %v1818 = vld [vmem:[#allocation7 + $0xf0] sm:$0xff]
    %v1819 = vld [vmem:[#allocation7 + $0xf8] sm:$0xff]
    %v1820 = vld [vmem:[#allocation7 + $0x100] sm:$0xff]
    %v1821 = vld [vmem:[#allocation7 + $0x108] sm:$0xff]
    %v1822 = vld [vmem:[#allocation7 + $0x110] sm:$0xff]
    %v1823 = vld [vmem:[#allocation7 + $0x118] sm:$0xff]
    %v1824 = vld [vmem:[#allocation7 + $0x120] sm:$0xff]
    %v1825 = vld [vmem:[#allocation7 + $0x128] sm:$0xff]
    %v1826 = vld [vmem:[#allocation7 + $0x130] sm:$0xff]
    %v1827 = vld [vmem:[#allocation7 + $0x138] sm:$0xff]
    %v1828 = vld [vmem:[#allocation7 + $0x140] sm:$0xff]
    %v1829 = vld [vmem:[#allocation7 + $0x148] sm:$0xff]
    %v1830 = vld [vmem:[#allocation7 + $0x150] sm:$0xff]
    %v1831 = vld [vmem:[#allocation7 + $0x158] sm:$0xff]
    %v1832 = vld [vmem:[#allocation7 + $0x160] sm:$0xff]
    %v1833 = vld [vmem:[#allocation7 + $0x168] sm:$0xff]
    %v1834 = vld [vmem:[#allocation7 + $0x170] sm:$0xff]
    %v1835 = vld [vmem:[#allocation7 + $0x178] sm:$0xff]
    %v1836 = vld [vmem:[#allocation7 + $0x180] sm:$0xff]
    %v1837 = vld [vmem:[#allocation7 + $0x188] sm:$0xff]
    %v1838 = vld [vmem:[#allocation7 + $0x190] sm:$0xff]
    %v1839 = vld [vmem:[#allocation7 + $0x198] sm:$0xff]
    %v1840 = vld [vmem:[#allocation7 + $0x1a0] sm:$0xff]
    %v1841 = vld [vmem:[#allocation7 + $0x1a8] sm:$0xff]
    %v1842 = vld [vmem:[#allocation7 + $0x1b0] sm:$0xff]
    %v1843 = vld [vmem:[#allocation7 + $0x1b8] sm:$0xff]
    %v1844 = vld [vmem:[#allocation7 + $0x1c0] sm:$0xff]
    %v1845 = vld [vmem:[#allocation7 + $0x1c8] sm:$0xff]
    %v1846 = vld [vmem:[#allocation7 + $0x1d0] sm:$0xff]
    %v1847 = vld [vmem:[#allocation7 + $0x1d8] sm:$0xff]
    %v1848 = vld [vmem:[#allocation7 + $0x1e0] sm:$0xff]
    %v1849 = vld [vmem:[#allocation7 + $0x1e8] sm:$0xff]
    %v1850 = vld [vmem:[#allocation7 + $0x1f0] sm:$0xff]
    %v1851 = vld [vmem:[#allocation7 + $0x1f8] sm:$0xff]
    %v1852 = vld [vmem:[#allocation7 + $0x200] sm:$0xff]
    %v1853 = vld [vmem:[#allocation7 + $0x208] sm:$0xff]
    %v1854 = vld [vmem:[#allocation7 + $0x210] sm:$0xff]
    %v1855 = vld [vmem:[#allocation7 + $0x218] sm:$0xff]
    %v1856 = vld [vmem:[#allocation7 + $0x220] sm:$0xff]
    %v1857 = vld [vmem:[#allocation7 + $0x228] sm:$0xff]
    %v1858 = vld [vmem:[#allocation7 + $0x230] sm:$0xff]
    %v1859 = vld [vmem:[#allocation7 + $0x238] sm:$0xff]
    %v1860 = vld [vmem:[#allocation7 + $0x240] sm:$0xff]
    %v1861 = vld [vmem:[#allocation7 + $0x248] sm:$0xff]
    %v1862 = vld [vmem:[#allocation7 + $0x250] sm:$0xff]
    %v1863 = vld [vmem:[#allocation7 + $0x258] sm:$0xff]
    %v1864 = vld [vmem:[#allocation7 + $0x260] sm:$0xff]
    %v1865 = vld [vmem:[#allocation7 + $0x268] sm:$0xff]
    %v1866 = vld [vmem:[#allocation7 + $0x270] sm:$0xff]
    %v1867 = vld [vmem:[#allocation7 + $0x278] sm:$0xff]
    %v1868 = vld [vmem:[#allocation7 + $0x280] sm:$0xff]
    %v1869 = vld [vmem:[#allocation7 + $0x288] sm:$0xff]
    %v1870 = vld [vmem:[#allocation7 + $0x290] sm:$0xff]
    %v1871 = vld [vmem:[#allocation7 + $0x298] sm:$0xff]
    %v1872 = vld [vmem:[#allocation7 + $0x2a0] sm:$0xff]
    %v1873 = vld [vmem:[#allocation7 + $0x2a8] sm:$0xff]
    %v1874 = vld [vmem:[#allocation7 + $0x2b0] sm:$0xff]
    %v1875 = vld [vmem:[#allocation7 + $0x2b8] sm:$0xff]
    %v1876 = vld [vmem:[#allocation7 + $0x2c0] sm:$0xff]
    %v1877 = vld [vmem:[#allocation7 + $0x2c8] sm:$0xff]
    %v1878 = vld [vmem:[#allocation7 + $0x2d0] sm:$0xff]
    %v1879 = vld [vmem:[#allocation7 + $0x2d8] sm:$0xff]
    %v1880 = vld [vmem:[#allocation7 + $0x2e0] sm:$0xff]
    %v1881 = vld [vmem:[#allocation7 + $0x2e8] sm:$0xff]
    %v1882 = vld [vmem:[#allocation7 + $0x2f0] sm:$0xff]
    %v1883 = vld [vmem:[#allocation7 + $0x2f8] sm:$0xff]
    %v1884 = vld [vmem:[#allocation7 + $0x300] sm:$0xff]
    %v1885 = vld [vmem:[#allocation7 + $0x308] sm:$0xff]
    %v1886 = vld [vmem:[#allocation7 + $0x310] sm:$0xff]
    %v1887 = vld [vmem:[#allocation7 + $0x318] sm:$0xff]
    %v1888 = vld [vmem:[#allocation7 + $0x320] sm:$0xff]
    %v1889 = vld [vmem:[#allocation7 + $0x328] sm:$0xff]
    %v1890 = vld [vmem:[#allocation7 + $0x330] sm:$0xff]
    %v1891 = vld [vmem:[#allocation7 + $0x338] sm:$0xff]
    %v1892 = vld [vmem:[#allocation7 + $0x340] sm:$0xff]
    %v1893 = vld [vmem:[#allocation7 + $0x348] sm:$0xff]
    %v1894 = vld [vmem:[#allocation7 + $0x350] sm:$0xff]
    %v1895 = vld [vmem:[#allocation7 + $0x358] sm:$0xff]
    %v1896 = vld [vmem:[#allocation7 + $0x360] sm:$0xff]
    %v1897 = vld [vmem:[#allocation7 + $0x368] sm:$0xff]
    %v1898 = vld [vmem:[#allocation7 + $0x370] sm:$0xff]
    %v1899 = vld [vmem:[#allocation7 + $0x378] sm:$0xff]
    %v1900 = vld [vmem:[#allocation7 + $0x380] sm:$0xff]
    %v1901 = vld [vmem:[#allocation7 + $0x388] sm:$0xff]
    %v1902 = vld [vmem:[#allocation7 + $0x390] sm:$0xff]
    %v1903 = vld [vmem:[#allocation7 + $0x398] sm:$0xff]
    %v1904 = vld [vmem:[#allocation7 + $0x3a0] sm:$0xff]
    %v1905 = vld [vmem:[#allocation7 + $0x3a8] sm:$0xff]
    %v1906 = vld [vmem:[#allocation7 + $0x3b0] sm:$0xff]
    %v1907 = vld [vmem:[#allocation7 + $0x3b8] sm:$0xff]
    %v1908 = vld [vmem:[#allocation7 + $0x3c0] sm:$0xff]
    %v1909 = vld [vmem:[#allocation7 + $0x3c8] sm:$0xff]
    %v1910 = vld [vmem:[#allocation7 + $0x3d0] sm:$0xff]
    %v1911 = vld [vmem:[#allocation7 + $0x3d8] sm:$0xff]
    %v1912 = vld [vmem:[#allocation7 + $0x3e0] sm:$0xff]
    %v1913 = vld [vmem:[#allocation7 + $0x3e8] sm:$0xff]
    %v1914 = vld [vmem:[#allocation7 + $0x3f0] sm:$0xff]
    %v1915 = vld [vmem:[#allocation7 + $0x3f8] sm:$0xff]
    %v1916 = vld [vmem:[#allocation7 + $0x400] sm:$0xff]
    %v1917 = vld [vmem:[#allocation7 + $0x408] sm:$0xff]
    %v1918 = vld [vmem:[#allocation7 + $0x410] sm:$0xff]
    %v1919 = vld [vmem:[#allocation7 + $0x418] sm:$0xff]
    %v1920 = vld [vmem:[#allocation7 + $0x420] sm:$0xff]
    %v1921 = vld [vmem:[#allocation7 + $0x428] sm:$0xff]
    %v1922 = vld [vmem:[#allocation7 + $0x430] sm:$0xff]
    %v1923 = vld [vmem:[#allocation7 + $0x438] sm:$0xff]
    %v1924 = vld [vmem:[#allocation7 + $0x440] sm:$0xff]
    %v1925 = vld [vmem:[#allocation7 + $0x448] sm:$0xff]
    %v1926 = vld [vmem:[#allocation7 + $0x450] sm:$0xff]
    %v1927 = vld [vmem:[#allocation7 + $0x458] sm:$0xff]
    %v1928 = vld [vmem:[#allocation7 + $0x460] sm:$0xff]
    %v1929 = vld [vmem:[#allocation7 + $0x468] sm:$0xff]
    %v1930 = vld [vmem:[#allocation7 + $0x470] sm:$0xff]
    %v1931 = vld [vmem:[#allocation7 + $0x478] sm:$0xff]
    %v1932 = vld [vmem:[#allocation7 + $0x480] sm:$0xff]
    %v1933 = vld [vmem:[#allocation7 + $0x488] sm:$0xff]
    %v1934 = vld [vmem:[#allocation7 + $0x490] sm:$0xff]
    %v1935 = vld [vmem:[#allocation7 + $0x498] sm:$0xff]
    %v1936 = vld [vmem:[#allocation7 + $0x4a0] sm:$0xff]
    %v1937 = vld [vmem:[#allocation7 + $0x4a8] sm:$0xff]
    %v1938 = vld [vmem:[#allocation7 + $0x4b0] sm:$0xff]
    %v1939 = vld [vmem:[#allocation7 + $0x4b8] sm:$0xff]
    %v1940 = vld [vmem:[#allocation7 + $0x4c0] sm:$0xff]
    %v1941 = vld [vmem:[#allocation7 + $0x4c8] sm:$0xff]
    %v1942 = vld [vmem:[#allocation7 + $0x4d0] sm:$0xff]
    %v1943 = vld [vmem:[#allocation7 + $0x4d8] sm:$0xff]
    %v1944 = vld [vmem:[#allocation7 + $0x4e0] sm:$0xff]
    %v1945 = vld [vmem:[#allocation7 + $0x4e8] sm:$0xff]
    %v1946 = vld [vmem:[#allocation7 + $0x4f0] sm:$0xff]
    %v1947 = vld [vmem:[#allocation7 + $0x4f8] sm:$0xff]
    %v1948 = vld [vmem:[#allocation7 + $0x500] sm:$0xff]
    %v1949 = vld [vmem:[#allocation7 + $0x508] sm:$0xff]
    %v1950 = vld [vmem:[#allocation7 + $0x510] sm:$0xff]
    %v1951 = vld [vmem:[#allocation7 + $0x518] sm:$0xff]
    %v1952 = vld [vmem:[#allocation7 + $0x520] sm:$0xff]
    %v1953 = vld [vmem:[#allocation7 + $0x528] sm:$0xff]
    %v1954 = vld [vmem:[#allocation7 + $0x530] sm:$0xff]
    %v1955 = vld [vmem:[#allocation7 + $0x538] sm:$0xff]
    %v1956 = vld [vmem:[#allocation7 + $0x540] sm:$0xff]
    %v1957 = vld [vmem:[#allocation7 + $0x548] sm:$0xff]
    %v1958 = vld [vmem:[#allocation7 + $0x550] sm:$0xff]
    %v1959 = vld [vmem:[#allocation7 + $0x558] sm:$0xff]
    %v1960 = vld [vmem:[#allocation7 + $0x560] sm:$0xff]
    %v1961 = vld [vmem:[#allocation7 + $0x568] sm:$0xff]
    %v1962 = vld [vmem:[#allocation7 + $0x570] sm:$0xff]
    %v1963 = vld [vmem:[#allocation7 + $0x578] sm:$0xff]
    %v1964 = vld [vmem:[#allocation7 + $0x580] sm:$0xff]
    %v1965 = vld [vmem:[#allocation7 + $0x588] sm:$0xff]
    %v1966 = vld [vmem:[#allocation7 + $0x590] sm:$0xff]
    %v1967 = vld [vmem:[#allocation7 + $0x598] sm:$0xff]
    %v1968 = vld [vmem:[#allocation7 + $0x5a0] sm:$0xff]
    %v1969 = vld [vmem:[#allocation7 + $0x5a8] sm:$0xff]
    %v1970 = vld [vmem:[#allocation7 + $0x5b0] sm:$0xff]
    %v1971 = vld [vmem:[#allocation7 + $0x5b8] sm:$0xff]
    %v1972 = vld [vmem:[#allocation7 + $0x5c0] sm:$0xff]
    %v1973 = vld [vmem:[#allocation7 + $0x5c8] sm:$0xff]
    %v1974 = vld [vmem:[#allocation7 + $0x5d0] sm:$0xff]
    %v1975 = vld [vmem:[#allocation7 + $0x5d8] sm:$0xff]
    %v1976 = vld [vmem:[#allocation7 + $0x5e0] sm:$0xff]
    %v1977 = vld [vmem:[#allocation7 + $0x5e8] sm:$0xff]
    %v1978 = vld [vmem:[#allocation7 + $0x5f0] sm:$0xff]
    %v1979 = vld [vmem:[#allocation7 + $0x5f8] sm:$0xff]
    %v1980 = vld [vmem:[#allocation7 + $0x600] sm:$0xff]
    %v1981 = vld [vmem:[#allocation7 + $0x608] sm:$0xff]
    %v1982 = vld [vmem:[#allocation7 + $0x610] sm:$0xff]
    %v1983 = vld [vmem:[#allocation7 + $0x618] sm:$0xff]
    %v1984 = vld [vmem:[#allocation7 + $0x620] sm:$0xff]
    %v1985 = vld [vmem:[#allocation7 + $0x628] sm:$0xff]
    %v1986 = vld [vmem:[#allocation7 + $0x630] sm:$0xff]
    %v1987 = vld [vmem:[#allocation7 + $0x638] sm:$0xff]
    %v1988 = vld [vmem:[#allocation7 + $0x640] sm:$0xff]
    %v1989 = vld [vmem:[#allocation7 + $0x648] sm:$0xff]
    %v1990 = vld [vmem:[#allocation7 + $0x650] sm:$0xff]
    %v1991 = vld [vmem:[#allocation7 + $0x658] sm:$0xff]
    %v1992 = vld [vmem:[#allocation7 + $0x660] sm:$0xff]
    %v1993 = vld [vmem:[#allocation7 + $0x668] sm:$0xff]
    %v1994 = vld [vmem:[#allocation7 + $0x670] sm:$0xff]
    %v1995 = vld [vmem:[#allocation7 + $0x678] sm:$0xff]
    %v1996 = vld [vmem:[#allocation7 + $0x680] sm:$0xff]
    %v1997 = vld [vmem:[#allocation7 + $0x688] sm:$0xff]
    %v1998 = vld [vmem:[#allocation7 + $0x690] sm:$0xff]
    %v1999 = vld [vmem:[#allocation7 + $0x698] sm:$0xff]
    %v2000 = vld [vmem:[#allocation7 + $0x6a0] sm:$0xff]
    %v2001 = vld [vmem:[#allocation7 + $0x6a8] sm:$0xff]
    %v2002 = vld [vmem:[#allocation7 + $0x6b0] sm:$0xff]
    %v2003 = vld [vmem:[#allocation7 + $0x6b8] sm:$0xff]
    %v2004 = vld [vmem:[#allocation7 + $0x6c0] sm:$0xff]
    %v2005 = vld [vmem:[#allocation7 + $0x6c8] sm:$0xff]
    %v2006 = vld [vmem:[#allocation7 + $0x6d0] sm:$0xff]
    %v2007 = vld [vmem:[#allocation7 + $0x6d8] sm:$0xff]
    %v2008 = vld [vmem:[#allocation7 + $0x6e0] sm:$0xff]
    %v2009 = vld [vmem:[#allocation7 + $0x6e8] sm:$0xff]
    %v2010 = vld [vmem:[#allocation7 + $0x6f0] sm:$0xff]
    %v2011 = vld [vmem:[#allocation7 + $0x6f8] sm:$0xff]
    %v2012 = vld [vmem:[#allocation7 + $0x700] sm:$0xff]
    %v2013 = vld [vmem:[#allocation7 + $0x708] sm:$0xff]
    %v2014 = vld [vmem:[#allocation7 + $0x710] sm:$0xff]
    %v2015 = vld [vmem:[#allocation7 + $0x718] sm:$0xff]
    %v2016 = vld [vmem:[#allocation7 + $0x720] sm:$0xff]
    %v2017 = vld [vmem:[#allocation7 + $0x728] sm:$0xff]
    %v2018 = vld [vmem:[#allocation7 + $0x730] sm:$0xff]
    %v2019 = vld [vmem:[#allocation7 + $0x738] sm:$0xff]
    %v2020 = vld [vmem:[#allocation7 + $0x740] sm:$0xff]
    %v2021 = vld [vmem:[#allocation7 + $0x748] sm:$0xff]
    %v2022 = vld [vmem:[#allocation7 + $0x750] sm:$0xff]
    %v2023 = vld [vmem:[#allocation7 + $0x758] sm:$0xff]
    %v2024 = vld [vmem:[#allocation7 + $0x760] sm:$0xff]
    %v2025 = vld [vmem:[#allocation7 + $0x768] sm:$0xff]
    %v2026 = vld [vmem:[#allocation7 + $0x770] sm:$0xff]
    %v2027 = vld [vmem:[#allocation7 + $0x778] sm:$0xff]
    %v2028 = vld [vmem:[#allocation7 + $0x780] sm:$0xff]
    %v2029 = vld [vmem:[#allocation7 + $0x788] sm:$0xff]
    %v2030 = vld [vmem:[#allocation7 + $0x790] sm:$0xff]
    %v2031 = vld [vmem:[#allocation7 + $0x798] sm:$0xff]
    %v2032 = vld [vmem:[#allocation7 + $0x7a0] sm:$0xff]
    %v2033 = vld [vmem:[#allocation7 + $0x7a8] sm:$0xff]
    %v2034 = vld [vmem:[#allocation7 + $0x7b0] sm:$0xff]
    %v2035 = vld [vmem:[#allocation7 + $0x7b8] sm:$0xff]
    %v2036 = vld [vmem:[#allocation7 + $0x7c0] sm:$0xff]
    %v2037 = vld [vmem:[#allocation7 + $0x7c8] sm:$0xff]
    %v2038 = vld [vmem:[#allocation7 + $0x7d0] sm:$0xff]
    %v2039 = vld [vmem:[#allocation7 + $0x7d8] sm:$0xff]
    %v2040 = vld [vmem:[#allocation7 + $0x7e0] sm:$0xff]
    %v2041 = vld [vmem:[#allocation7 + $0x7e8] sm:$0xff]
    %v2042 = vld [vmem:[#allocation7 + $0x7f0] sm:$0xff]
    %v2043 = vld [vmem:[#allocation7 + $0x7f8] sm:$0xff]
    %v2044 = vld [vmem:[%s12] sm:$0xf]
    %v2046 = vlaneseq
    %v2047 = vshrl.u32 %v2046, 7
    %v2048 = vsub.s32 0, %v2047
    %v2049 = vrot.slane %v2044, %v2048
    %v2050 = vlaneseq
    %v2051 = vshrl.u32 %v2050, 7
    %v2052 = vsub.s32 1, %v2051
    %v2053 = vrot.slane %v2044, %v2052
    %v2054 = vlaneseq
    %v2055 = vshrl.u32 %v2054, 7
    %v2056 = vsub.s32 2, %v2055
    %v2057 = vrot.slane %v2044, %v2056
    %v2058 = vlaneseq
    %v2059 = vshrl.u32 %v2058, 7
    %v2060 = vsub.s32 3, %v2059
    %v2061 = vrot.slane %v2044, %v2060
    %2066 = vmatprep.subr.mxu0 %v1789
    %2067 = vmatpush1.msra.mxu0 %v1788
    %2068 = vmatprep.subr.mxu0 %v1793
    %2069 = vmatpush1.msra.mxu0 %v1792
    %2070 = vmatprep.subr.mxu0 %v1797
    %2071 = vmatpush1.msra.mxu0 %v1796
    %2072 = vmatprep.subr.mxu0 %v1801
    %2073 = vmatpush1.msra.mxu0 %v1800
    %2074 = vmatprep.subr.mxu0 %v1805
    %2075 = vmatpush1.msra.mxu0 %v1804
    %2076 = vmatprep.subr.mxu0 %v1809
    %2077 = vmatpush1.msra.mxu0 %v1808
    %2078 = vmatprep.subr.mxu0 %v1813
    %2079 = vmatpush1.msra.mxu0 %v1812
    %2080 = vmatprep.subr.mxu0 %v1817
    %2081 = vmatpush1.msra.mxu0 %v1816
    %2082 = vmatprep.subr.mxu0 %v1821
    %2083 = vmatpush1.msra.mxu0 %v1820
    %2084 = vmatprep.subr.mxu0 %v1825
    %2085 = vmatpush1.msra.mxu0 %v1824
    %2086 = vmatprep.subr.mxu0 %v1829
    %2087 = vmatpush1.msra.mxu0 %v1828
    %2088 = vmatprep.subr.mxu0 %v1833
    %2089 = vmatpush1.msra.mxu0 %v1832
    %2090 = vmatprep.subr.mxu0 %v1837
    %2091 = vmatpush1.msra.mxu0 %v1836
    %2092 = vmatprep.subr.mxu0 %v1841
    %2093 = vmatpush1.msra.mxu0 %v1840
    %2094 = vmatprep.subr.mxu0 %v1845
    %2095 = vmatpush1.msra.mxu0 %v1844
    %2096 = vmatprep.subr.mxu0 %v1849
    %2097 = vmatpush1.msra.mxu0 %v1848
    %2098 = vmatprep.subr.mxu0 %v1853
    %2099 = vmatpush1.msra.mxu0 %v1852
    %2100 = vmatprep.subr.mxu0 %v1857
    %2101 = vmatpush1.msra.mxu0 %v1856
    %2102 = vmatprep.subr.mxu0 %v1861
    %2103 = vmatpush1.msra.mxu0 %v1860
    %2104 = vmatprep.subr.mxu0 %v1865
    %2105 = vmatpush1.msra.mxu0 %v1864
    %2106 = vmatprep.subr.mxu0 %v1869
    %2107 = vmatpush1.msra.mxu0 %v1868
    %2108 = vmatprep.subr.mxu0 %v1873
    %2109 = vmatpush1.msra.mxu0 %v1872
    %2110 = vmatprep.subr.mxu0 %v1877
    %2111 = vmatpush1.msra.mxu0 %v1876
    %2112 = vmatprep.subr.mxu0 %v1881
    %2113 = vmatpush1.msra.mxu0 %v1880
    %2114 = vmatprep.subr.mxu0 %v1885
    %2115 = vmatpush1.msra.mxu0 %v1884
    %2116 = vmatprep.subr.mxu0 %v1889
    %2117 = vmatpush1.msra.mxu0 %v1888
    %2118 = vmatprep.subr.mxu0 %v1893
    %2119 = vmatpush1.msra.mxu0 %v1892
    %2120 = vmatprep.subr.mxu0 %v1897
    %2121 = vmatpush1.msra.mxu0 %v1896
    %2122 = vmatprep.subr.mxu0 %v1901
    %2123 = vmatpush1.msra.mxu0 %v1900
    %2124 = vmatprep.subr.mxu0 %v1905
    %2125 = vmatpush1.msra.mxu0 %v1904
    %2126 = vmatprep.subr.mxu0 %v1909
    %2127 = vmatpush1.msra.mxu0 %v1908
    %2128 = vmatprep.subr.mxu0 %v1913
    %2129 = vmatpush1.msra.mxu0 %v1912
    %2130 = vmatprep.mubr.f32.mxu0 %v1785
    %2131 = vmatmul.mubr.f32.gmra.mrb[0].mxu0 %v1784
    %v2132 = vpop.f32.mrb[0].mxu0
    %v2133 = vadd.f32 %v2049, %v2132
    %v2134 = vpop.f32.mrb[0].mxu0
    %v2135 = vadd.f32 %v2053, %v2134
    %2136 = vdwg.mxu0
    %2137 = vmatprep.subr.mxu0 %v1917
    %2138 = vmatpush1.msra.mxu0 %v1916
    %2139 = vmatprep.subr.mxu0 %v1921
    %2140 = vmatpush1.msra.mxu0 %v1920
    %2141 = vmatprep.subr.mxu0 %v1925
    %2142 = vmatpush1.msra.mxu0 %v1924
    %2143 = vmatprep.subr.mxu0 %v1929
    %2144 = vmatpush1.msra.mxu0 %v1928
    %2145 = vmatprep.subr.mxu0 %v1933
    %2146 = vmatpush1.msra.mxu0 %v1932
    %2147 = vmatprep.subr.mxu0 %v1937
    %2148 = vmatpush1.msra.mxu0 %v1936
    %2149 = vmatprep.subr.mxu0 %v1941
    %2150 = vmatpush1.msra.mxu0 %v1940
    %2151 = vmatprep.subr.mxu0 %v1945
    %2152 = vmatpush1.msra.mxu0 %v1944
    %2153 = vmatprep.subr.mxu0 %v1949
    %2154 = vmatpush1.msra.mxu0 %v1948
    %2155 = vmatprep.subr.mxu0 %v1953
    %2156 = vmatpush1.msra.mxu0 %v1952
    %2157 = vmatprep.subr.mxu0 %v1957
    %2158 = vmatpush1.msra.mxu0 %v1956
    %2159 = vmatprep.subr.mxu0 %v1961
    %2160 = vmatpush1.msra.mxu0 %v1960
    %2161 = vmatprep.subr.mxu0 %v1965
    %2162 = vmatpush1.msra.mxu0 %v1964
    %2163 = vmatprep.subr.mxu0 %v1969
    %2164 = vmatpush1.msra.mxu0 %v1968
    %2165 = vmatprep.subr.mxu0 %v1973
    %2166 = vmatpush1.msra.mxu0 %v1972
    %2167 = vmatprep.subr.mxu0 %v1977
    %2168 = vmatpush1.msra.mxu0 %v1976
    %2169 = vmatprep.subr.mxu0 %v1981
    %2170 = vmatpush1.msra.mxu0 %v1980
    %2171 = vmatprep.subr.mxu0 %v1985
    %2172 = vmatpush1.msra.mxu0 %v1984
    %2173 = vmatprep.subr.mxu0 %v1989
    %2174 = vmatpush1.msra.mxu0 %v1988
    %2175 = vmatprep.subr.mxu0 %v1993
    %2176 = vmatpush1.msra.mxu0 %v1992
    %2177 = vmatprep.subr.mxu0 %v1997
    %2178 = vmatpush1.msra.mxu0 %v1996
    %2179 = vmatprep.subr.mxu0 %v2001
    %2180 = vmatpush1.msra.mxu0 %v2000
    %2181 = vmatprep.subr.mxu0 %v2005
    %2182 = vmatpush1.msra.mxu0 %v2004
    %2183 = vmatprep.subr.mxu0 %v2009
    %2184 = vmatpush1.msra.mxu0 %v2008
    %2185 = vmatprep.subr.mxu0 %v2013
    %2186 = vmatpush1.msra.mxu0 %v2012
    %2187 = vmatprep.subr.mxu0 %v2017
    %2188 = vmatpush1.msra.mxu0 %v2016
    %2189 = vmatprep.subr.mxu0 %v2021
    %2190 = vmatpush1.msra.mxu0 %v2020
    %2191 = vmatprep.subr.mxu0 %v2025
    %2192 = vmatpush1.msra.mxu0 %v2024
    %2193 = vmatprep.subr.mxu0 %v2029
    %2194 = vmatpush1.msra.mxu0 %v2028
    %2195 = vmatprep.subr.mxu0 %v2033
    %2196 = vmatpush1.msra.mxu0 %v2032
    %2197 = vmatprep.subr.mxu0 %v2037
    %2198 = vmatpush1.msra.mxu0 %v2036
    %2199 = vmatprep.subr.mxu0 %v2041
    %2200 = vmatpush1.msra.mxu0 %v2040
    %2201 = vmatprep.mubr.f32.mxu0 %v1787
    %2202 = vmatmul.mubr.f32.gmra.mrb[0].mxu0 %v1786
    %v2203 = vpop.f32.mrb[0].mxu0
    %v2204 = vadd.f32 %v2133, %v2203
    %v2205 = vpop.f32.mrb[0].mxu0
    %v2206 = vadd.f32 %v2135, %v2205
    %2207 = vdwg.mxu0
    %2208 = vmatprep.subr.mxu0 %v1791
    %2209 = vmatpush1.msra.mxu0 %v1790
    %2210 = vmatprep.subr.mxu0 %v1795
    %2211 = vmatpush1.msra.mxu0 %v1794
    %2212 = vmatprep.subr.mxu0 %v1799
    %2213 = vmatpush1.msra.mxu0 %v1798
    %2214 = vmatprep.subr.mxu0 %v1803
    %2215 = vmatpush1.msra.mxu0 %v1802
    %2216 = vmatprep.subr.mxu0 %v1807
    %2217 = vmatpush1.msra.mxu0 %v1806
    %2218 = vmatprep.subr.mxu0 %v1811
    %2219 = vmatpush1.msra.mxu0 %v1810
    %2220 = vmatprep.subr.mxu0 %v1815
    %2221 = vmatpush1.msra.mxu0 %v1814
    %2222 = vmatprep.subr.mxu0 %v1819
    %2223 = vmatpush1.msra.mxu0 %v1818
    %2224 = vmatprep.subr.mxu0 %v1823
    %2225 = vmatpush1.msra.mxu0 %v1822
    %2226 = vmatprep.subr.mxu0 %v1827
    %2227 = vmatpush1.msra.mxu0 %v1826
    %2228 = vmatprep.subr.mxu0 %v1831
    %2229 = vmatpush1.msra.mxu0 %v1830
    %2230 = vmatprep.subr.mxu0 %v1835
    %2231 = vmatpush1.msra.mxu0 %v1834
    %2232 = vmatprep.subr.mxu0 %v1839
    %2233 = vmatpush1.msra.mxu0 %v1838
    %2234 = vmatprep.subr.mxu0 %v1843
    %2235 = vmatpush1.msra.mxu0 %v1842
    %2236 = vmatprep.subr.mxu0 %v1847
    %2237 = vmatpush1.msra.mxu0 %v1846
    %2238 = vmatprep.subr.mxu0 %v1851
    %2239 = vmatpush1.msra.mxu0 %v1850
    %2240 = vmatprep.subr.mxu0 %v1855
    %2241 = vmatpush1.msra.mxu0 %v1854
    %2242 = vmatprep.subr.mxu0 %v1859
    %2243 = vmatpush1.msra.mxu0 %v1858
    %2244 = vmatprep.subr.mxu0 %v1863
    %2245 = vmatpush1.msra.mxu0 %v1862
    %2246 = vmatprep.subr.mxu0 %v1867
    %2247 = vmatpush1.msra.mxu0 %v1866
    %2248 = vmatprep.subr.mxu0 %v1871
    %2249 = vmatpush1.msra.mxu0 %v1870
    %2250 = vmatprep.subr.mxu0 %v1875
    %2251 = vmatpush1.msra.mxu0 %v1874
    %2252 = vmatprep.subr.mxu0 %v1879
    %2253 = vmatpush1.msra.mxu0 %v1878
    %2254 = vmatprep.subr.mxu0 %v1883
    %2255 = vmatpush1.msra.mxu0 %v1882
    %2256 = vmatprep.subr.mxu0 %v1887
    %2257 = vmatpush1.msra.mxu0 %v1886
    %2258 = vmatprep.subr.mxu0 %v1891
    %2259 = vmatpush1.msra.mxu0 %v1890
    %2260 = vmatprep.subr.mxu0 %v1895
    %2261 = vmatpush1.msra.mxu0 %v1894
    %2262 = vmatprep.subr.mxu0 %v1899
    %2263 = vmatpush1.msra.mxu0 %v1898
    %2264 = vmatprep.subr.mxu0 %v1903
    %2265 = vmatpush1.msra.mxu0 %v1902
    %2266 = vmatprep.subr.mxu0 %v1907
    %2267 = vmatpush1.msra.mxu0 %v1906
    %2268 = vmatprep.subr.mxu0 %v1911
    %2269 = vmatpush1.msra.mxu0 %v1910
    %2270 = vmatprep.subr.mxu0 %v1915
    %2271 = vmatpush1.msra.mxu0 %v1914
    %2272 = vmatprep.mubr.f32.mxu0 %v1785
    %2273 = vmatmul.mubr.f32.gmra.mrb[0].mxu0 %v1784
    %v2274 = vpop.f32.mrb[0].mxu0
    %v2275 = vadd.f32 %v2057, %v2274
    %v2276 = vpop.f32.mrb[0].mxu0
    %v2277 = vadd.f32 %v2061, %v2276
    %2278 = vdwg.mxu0
    %2279 = vmatprep.subr.mxu0 %v1919
    %2280 = vmatpush1.msra.mxu0 %v1918
    %2281 = vmatprep.subr.mxu0 %v1923
    %2282 = vmatpush1.msra.mxu0 %v1922
    %2283 = vmatprep.subr.mxu0 %v1927
    %2284 = vmatpush1.msra.mxu0 %v1926
    %2285 = vmatprep.subr.mxu0 %v1931
    %2286 = vmatpush1.msra.mxu0 %v1930
    %2287 = vmatprep.subr.mxu0 %v1935
    %2288 = vmatpush1.msra.mxu0 %v1934
    %2289 = vmatprep.subr.mxu0 %v1939
    %2290 = vmatpush1.msra.mxu0 %v1938
    %2291 = vmatprep.subr.mxu0 %v1943
    %2292 = vmatpush1.msra.mxu0 %v1942
    %2293 = vmatprep.subr.mxu0 %v1947
    %2294 = vmatpush1.msra.mxu0 %v1946
    %2295 = vmatprep.subr.mxu0 %v1951
    %2296 = vmatpush1.msra.mxu0 %v1950
    %2297 = vmatprep.subr.mxu0 %v1955
    %2298 = vmatpush1.msra.mxu0 %v1954
    %2299 = vmatprep.subr.mxu0 %v1959
    %2300 = vmatpush1.msra.mxu0 %v1958
    %2301 = vmatprep.subr.mxu0 %v1963
    %2302 = vmatpush1.msra.mxu0 %v1962
    %2303 = vmatprep.subr.mxu0 %v1967
    %2304 = vmatpush1.msra.mxu0 %v1966
    %2305 = vmatprep.subr.mxu0 %v1971
    %2306 = vmatpush1.msra.mxu0 %v1970
    %2307 = vmatprep.subr.mxu0 %v1975
    %2308 = vmatpush1.msra.mxu0 %v1974
    %2309 = vmatprep.subr.mxu0 %v1979
    %2310 = vmatpush1.msra.mxu0 %v1978
    %2311 = vmatprep.subr.mxu0 %v1983
    %2312 = vmatpush1.msra.mxu0 %v1982
    %2313 = vmatprep.subr.mxu0 %v1987
    %2314 = vmatpush1.msra.mxu0 %v1986
    %2315 = vmatprep.subr.mxu0 %v1991
    %2316 = vmatpush1.msra.mxu0 %v1990
    %2317 = vmatprep.subr.mxu0 %v1995
    %2318 = vmatpush1.msra.mxu0 %v1994
    %2319 = vmatprep.subr.mxu0 %v1999
    %2320 = vmatpush1.msra.mxu0 %v1998
    %2321 = vmatprep.subr.mxu0 %v2003
    %2322 = vmatpush1.msra.mxu0 %v2002
    %2323 = vmatprep.subr.mxu0 %v2007
    %2324 = vmatpush1.msra.mxu0 %v2006
    %2325 = vmatprep.subr.mxu0 %v2011
    %2326 = vmatpush1.msra.mxu0 %v2010
    %2327 = vmatprep.subr.mxu0 %v2015
    %2328 = vmatpush1.msra.mxu0 %v2014
    %2329 = vmatprep.subr.mxu0 %v2019
    %2330 = vmatpush1.msra.mxu0 %v2018
    %2331 = vmatprep.subr.mxu0 %v2023
    %2332 = vmatpush1.msra.mxu0 %v2022
    %2333 = vmatprep.subr.mxu0 %v2027
    %2334 = vmatpush1.msra.mxu0 %v2026
    %2335 = vmatprep.subr.mxu0 %v2031
    %2336 = vmatpush1.msra.mxu0 %v2030
    %2337 = vmatprep.subr.mxu0 %v2035
    %2338 = vmatpush1.msra.mxu0 %v2034
    %2339 = vmatprep.subr.mxu0 %v2039
    %2340 = vmatpush1.msra.mxu0 %v2038
    %2341 = vmatprep.subr.mxu0 %v2043
    %2342 = vmatpush1.msra.mxu0 %v2042
    %2343 = vmatprep.mubr.f32.mxu0 %v1787
    %2344 = vmatmul.mubr.f32.gmra.mrb[0].mxu0 %v1786
    %v2345 = vpop.f32.mrb[0].mxu0
    %v2346 = vadd.f32 %v2275, %v2345
    %v2347 = vpop.f32.mrb[0].mxu0
    %v2348 = vadd.f32 %v2277, %v2347
    %2349 = vdwg.mxu0
    %v2350 = vmul.f32 %v2204, 0.5
    %v2351 = vmul.f32 %v2206, 0.5
    %v2352 = vmul.f32 %v2346, 0.5
    %v2353 = vmul.f32 %v2348, 0.5
    %v2354 = vmul.f32 %v2204, 0.70710677
    %v2355 = vmul.f32 %v2206, 0.70710677
    %v2356 = vmul.f32 %v2346, 0.70710677
    %v2357 = vmul.f32 %v2348, 0.70710677
    %v2358 = vand.u32 2147483647, %v2354
    %v2359 = vand.u32 2147483647, %v2355
    %v2360 = vand.u32 2147483647, %v2356
    %v2361 = vand.u32 2147483647, %v2357
    %v2362 = vmul.f32 %v2358, 0.3275911
    %v2363 = vmul.f32 %v2359, 0.3275911
    %v2364 = vmul.f32 %v2360, 0.3275911
    %v2365 = vmul.f32 %v2361, 0.3275911
    %v2366 = vadd.f32 %v2362, 1.0
    %v2367 = vadd.f32 %v2363, 1.0
    %v2368 = vadd.f32 %v2364, 1.0
    %v2369 = vadd.f32 %v2365, 1.0
    %v2370 = vrcp.pop %v2366
    %v2371 = vmul.f32 1.0, %v2370
    %v2372 = vrcp.pop %v2367
    %v2373 = vmul.f32 1.0, %v2372
    %v2374 = vrcp.pop %v2368
    %v2375 = vmul.f32 1.0, %v2374
    %v2376 = vrcp.pop %v2369
    %v2377 = vmul.f32 1.0, %v2376
    %v2378 = vmul.f32 %v2371, 1.0614054
    %v2379 = vmul.f32 %v2373, 1.0614054
    %v2380 = vmul.f32 %v2375, 1.0614054
    %v2381 = vmul.f32 %v2377, 1.0614054
    %v2382 = vadd.f32 %v2378, -1.4531521
    %v2383 = vadd.f32 %v2379, -1.4531521
    %v2384 = vadd.f32 %v2380, -1.4531521
    %v2385 = vadd.f32 %v2381, -1.4531521
    %v2386 = vmul.f32 %v2382, %v2371
    %v2387 = vmul.f32 %v2383, %v2373
    %v2388 = vmul.f32 %v2384, %v2375
    %v2389 = vmul.f32 %v2385, %v2377
    %v2390 = vadd.f32 %v2386, 1.4214138
    %v2391 = vadd.f32 %v2387, 1.4214138
    %v2392 = vadd.f32 %v2388, 1.4214138
    %v2393 = vadd.f32 %v2389, 1.4214138
    %v2394 = vmul.f32 %v2390, %v2371
    %v2395 = vmul.f32 %v2391, %v2373
    %v2396 = vmul.f32 %v2392, %v2375
    %v2397 = vmul.f32 %v2393, %v2377
    %v2398 = vadd.f32 %v2394, -0.28449672
    %v2399 = vadd.f32 %v2395, -0.28449672
    %v2400 = vadd.f32 %v2396, -0.28449672
    %v2401 = vadd.f32 %v2397, -0.28449672
    %v2402 = vmul.f32 %v2398, %v2371
    %v2403 = vmul.f32 %v2399, %v2373
    %v2404 = vmul.f32 %v2400, %v2375
    %v2405 = vmul.f32 %v2401, %v2377
    %v2406 = vadd.f32 %v2402, 0.2548296
    %v2407 = vadd.f32 %v2403, 0.2548296
    %v2408 = vadd.f32 %v2404, 0.2548296
    %v2409 = vadd.f32 %v2405, 0.2548296
    %v2410 = vmul.f32 %v2406, %v2371
    %v2411 = vmul.f32 %v2407, %v2373
    %v2412 = vmul.f32 %v2408, %v2375
    %v2413 = vmul.f32 %v2409, %v2377
    %v2414 = vsub.f32 0.0, %v2358
    %v2415 = vsub.f32 0.0, %v2359
    %v2416 = vsub.f32 0.0, %v2360
    %v2417 = vsub.f32 0.0, %v2361
    %v2418 = vmul.f32 %v2414, %v2358
    %v2419 = vmul.f32 %v2415, %v2359
    %v2420 = vmul.f32 %v2416, %v2360
    %v2421 = vmul.f32 %v2417, %v2361
    %v2422 = vmul.f32 %v2418, 1.442695
    %v2423 = vpow.pop %v2422
    %v2424 = vmul.f32 %v2419, 1.442695
    %v2425 = vpow.pop %v2424
    %v2426 = vmul.f32 %v2420, 1.442695
    %v2427 = vpow.pop %v2426
    %v2428 = vmul.f32 %v2421, 1.442695
    %v2429 = vpow.pop %v2428
    %v2430 = vmul.f32 %v2410, %v2423
    %v2431 = vmul.f32 %v2411, %v2425
    %v2432 = vmul.f32 %v2412, %v2427
    %v2433 = vmul.f32 %v2413, %v2429
    %v2434 = vsub.f32 1.0, %v2430
    %v2435 = vsub.f32 1.0, %v2431
    %v2436 = vsub.f32 1.0, %v2432
    %v2437 = vsub.f32 1.0, %v2433
    %vm2438 = vcmp.ge.f32.partialorder %v2354, 0.0
    %vm2439 = vcmp.ge.f32.partialorder %v2355, 0.0
    %vm2440 = vcmp.ge.f32.partialorder %v2356, 0.0
    %vm2441 = vcmp.ge.f32.partialorder %v2357, 0.0
    %v2442 = vsub.f32 0.0, %v2434
    %v2443 = vsub.f32 0.0, %v2435
    %v2444 = vsub.f32 0.0, %v2436
    %v2445 = vsub.f32 0.0, %v2437
    %v2446 = vsel %vm2438, %v2434, %v2442
    %v2447 = vsel %vm2439, %v2435, %v2443
    %v2448 = vsel %vm2440, %v2436, %v2444
    %v2449 = vsel %vm2441, %v2437, %v2445
    %v2450 = vadd.f32 %v2446, 1.0
    %v2451 = vadd.f32 %v2447, 1.0
    %v2452 = vadd.f32 %v2448, 1.0
    %v2453 = vadd.f32 %v2449, 1.0
    %v2454 = vmul.f32 %v2350, %v2450
    %v2455 = vmul.f32 %v2351, %v2451
    %v2456 = vmul.f32 %v2352, %v2452
    %v2457 = vmul.f32 %v2353, %v2453
    %v2458 = vld [vmem:[#allocation8] sm:$0xff]
    %v2459 = vld [vmem:[#allocation8 + $0x8] sm:$0xff]
    %v2460 = vld [vmem:[#allocation8 + $0x10] sm:$0xff]
    %v2461 = vld [vmem:[#allocation8 + $0x18] sm:$0xff]
    %v2462 = vld [vmem:[#allocation8 + $0x20] sm:$0xff]
    %v2463 = vld [vmem:[#allocation8 + $0x28] sm:$0xff]
    %v2464 = vld [vmem:[#allocation8 + $0x30] sm:$0xff]
    %v2465 = vld [vmem:[#allocation8 + $0x38] sm:$0xff]
    %v2466 = vld [vmem:[#allocation8 + $0x40] sm:$0xff]
    %v2467 = vld [vmem:[#allocation8 + $0x48] sm:$0xff]
    %v2468 = vld [vmem:[#allocation8 + $0x50] sm:$0xff]
    %v2469 = vld [vmem:[#allocation8 + $0x58] sm:$0xff]
    %v2470 = vld [vmem:[#allocation8 + $0x60] sm:$0xff]
    %v2471 = vld [vmem:[#allocation8 + $0x68] sm:$0xff]
    %v2472 = vld [vmem:[#allocation8 + $0x70] sm:$0xff]
    %v2473 = vld [vmem:[#allocation8 + $0x78] sm:$0xff]
    %v2474 = vld [vmem:[#allocation8 + $0x80] sm:$0xff]
    %v2475 = vld [vmem:[#allocation8 + $0x88] sm:$0xff]
    %v2476 = vld [vmem:[#allocation8 + $0x90] sm:$0xff]
    %v2477 = vld [vmem:[#allocation8 + $0x98] sm:$0xff]
    %v2478 = vld [vmem:[#allocation8 + $0xa0] sm:$0xff]
    %v2479 = vld [vmem:[#allocation8 + $0xa8] sm:$0xff]
    %v2480 = vld [vmem:[#allocation8 + $0xb0] sm:$0xff]
    %v2481 = vld [vmem:[#allocation8 + $0xb8] sm:$0xff]
    %v2482 = vld [vmem:[#allocation8 + $0xc0] sm:$0xff]
    %v2483 = vld [vmem:[#allocation8 + $0xc8] sm:$0xff]
    %v2484 = vld [vmem:[#allocation8 + $0xd0] sm:$0xff]
    %v2485 = vld [vmem:[#allocation8 + $0xd8] sm:$0xff]
    %v2486 = vld [vmem:[#allocation8 + $0xe0] sm:$0xff]
    %v2487 = vld [vmem:[#allocation8 + $0xe8] sm:$0xff]
    %v2488 = vld [vmem:[#allocation8 + $0xf0] sm:$0xff]
    %v2489 = vld [vmem:[#allocation8 + $0xf8] sm:$0xff]
    %v2490 = vld [vmem:[#allocation8 + $0x100] sm:$0xff]
    %v2491 = vld [vmem:[#allocation8 + $0x108] sm:$0xff]
    %v2492 = vld [vmem:[#allocation8 + $0x110] sm:$0xff]
    %v2493 = vld [vmem:[#allocation8 + $0x118] sm:$0xff]
    %v2494 = vld [vmem:[#allocation8 + $0x120] sm:$0xff]
    %v2495 = vld [vmem:[#allocation8 + $0x128] sm:$0xff]
    %v2496 = vld [vmem:[#allocation8 + $0x130] sm:$0xff]
    %v2497 = vld [vmem:[#allocation8 + $0x138] sm:$0xff]
    %v2498 = vld [vmem:[#allocation8 + $0x140] sm:$0xff]
    %v2499 = vld [vmem:[#allocation8 + $0x148] sm:$0xff]
    %v2500 = vld [vmem:[#allocation8 + $0x150] sm:$0xff]
    %v2501 = vld [vmem:[#allocation8 + $0x158] sm:$0xff]
    %v2502 = vld [vmem:[#allocation8 + $0x160] sm:$0xff]
    %v2503 = vld [vmem:[#allocation8 + $0x168] sm:$0xff]
    %v2504 = vld [vmem:[#allocation8 + $0x170] sm:$0xff]
    %v2505 = vld [vmem:[#allocation8 + $0x178] sm:$0xff]
    %v2506 = vld [vmem:[#allocation8 + $0x180] sm:$0xff]
    %v2507 = vld [vmem:[#allocation8 + $0x188] sm:$0xff]
    %v2508 = vld [vmem:[#allocation8 + $0x190] sm:$0xff]
    %v2509 = vld [vmem:[#allocation8 + $0x198] sm:$0xff]
    %v2510 = vld [vmem:[#allocation8 + $0x1a0] sm:$0xff]
    %v2511 = vld [vmem:[#allocation8 + $0x1a8] sm:$0xff]
    %v2512 = vld [vmem:[#allocation8 + $0x1b0] sm:$0xff]
    %v2513 = vld [vmem:[#allocation8 + $0x1b8] sm:$0xff]
    %v2514 = vld [vmem:[#allocation8 + $0x1c0] sm:$0xff]
    %v2515 = vld [vmem:[#allocation8 + $0x1c8] sm:$0xff]
    %v2516 = vld [vmem:[#allocation8 + $0x1d0] sm:$0xff]
    %v2517 = vld [vmem:[#allocation8 + $0x1d8] sm:$0xff]
    %v2518 = vld [vmem:[#allocation8 + $0x1e0] sm:$0xff]
    %v2519 = vld [vmem:[#allocation8 + $0x1e8] sm:$0xff]
    %v2520 = vld [vmem:[#allocation8 + $0x1f0] sm:$0xff]
    %v2521 = vld [vmem:[#allocation8 + $0x1f8] sm:$0xff]
    %v2522 = vld [vmem:[#allocation8 + $0x200] sm:$0xff]
    %v2523 = vld [vmem:[#allocation8 + $0x208] sm:$0xff]
    %v2524 = vld [vmem:[#allocation8 + $0x210] sm:$0xff]
    %v2525 = vld [vmem:[#allocation8 + $0x218] sm:$0xff]
    %v2526 = vld [vmem:[#allocation8 + $0x220] sm:$0xff]
    %v2527 = vld [vmem:[#allocation8 + $0x228] sm:$0xff]
    %v2528 = vld [vmem:[#allocation8 + $0x230] sm:$0xff]
    %v2529 = vld [vmem:[#allocation8 + $0x238] sm:$0xff]
    %v2530 = vld [vmem:[#allocation8 + $0x240] sm:$0xff]
    %v2531 = vld [vmem:[#allocation8 + $0x248] sm:$0xff]
    %v2532 = vld [vmem:[#allocation8 + $0x250] sm:$0xff]
    %v2533 = vld [vmem:[#allocation8 + $0x258] sm:$0xff]
    %v2534 = vld [vmem:[#allocation8 + $0x260] sm:$0xff]
    %v2535 = vld [vmem:[#allocation8 + $0x268] sm:$0xff]
    %v2536 = vld [vmem:[#allocation8 + $0x270] sm:$0xff]
    %v2537 = vld [vmem:[#allocation8 + $0x278] sm:$0xff]
    %v2538 = vld [vmem:[#allocation8 + $0x280] sm:$0xff]
    %v2539 = vld [vmem:[#allocation8 + $0x288] sm:$0xff]
    %v2540 = vld [vmem:[#allocation8 + $0x290] sm:$0xff]
    %v2541 = vld [vmem:[#allocation8 + $0x298] sm:$0xff]
    %v2542 = vld [vmem:[#allocation8 + $0x2a0] sm:$0xff]
    %v2543 = vld [vmem:[#allocation8 + $0x2a8] sm:$0xff]
    %v2544 = vld [vmem:[#allocation8 + $0x2b0] sm:$0xff]
    %v2545 = vld [vmem:[#allocation8 + $0x2b8] sm:$0xff]
    %v2546 = vld [vmem:[#allocation8 + $0x2c0] sm:$0xff]
    %v2547 = vld [vmem:[#allocation8 + $0x2c8] sm:$0xff]
    %v2548 = vld [vmem:[#allocation8 + $0x2d0] sm:$0xff]
    %v2549 = vld [vmem:[#allocation8 + $0x2d8] sm:$0xff]
    %v2550 = vld [vmem:[#allocation8 + $0x2e0] sm:$0xff]
    %v2551 = vld [vmem:[#allocation8 + $0x2e8] sm:$0xff]
    %v2552 = vld [vmem:[#allocation8 + $0x2f0] sm:$0xff]
    %v2553 = vld [vmem:[#allocation8 + $0x2f8] sm:$0xff]
    %v2554 = vld [vmem:[#allocation8 + $0x300] sm:$0xff]
    %v2555 = vld [vmem:[#allocation8 + $0x308] sm:$0xff]
    %v2556 = vld [vmem:[#allocation8 + $0x310] sm:$0xff]
    %v2557 = vld [vmem:[#allocation8 + $0x318] sm:$0xff]
    %v2558 = vld [vmem:[#allocation8 + $0x320] sm:$0xff]
    %v2559 = vld [vmem:[#allocation8 + $0x328] sm:$0xff]
    %v2560 = vld [vmem:[#allocation8 + $0x330] sm:$0xff]
    %v2561 = vld [vmem:[#allocation8 + $0x338] sm:$0xff]
    %v2562 = vld [vmem:[#allocation8 + $0x340] sm:$0xff]
    %v2563 = vld [vmem:[#allocation8 + $0x348] sm:$0xff]
    %v2564 = vld [vmem:[#allocation8 + $0x350] sm:$0xff]
    %v2565 = vld [vmem:[#allocation8 + $0x358] sm:$0xff]
    %v2566 = vld [vmem:[#allocation8 + $0x360] sm:$0xff]
    %v2567 = vld [vmem:[#allocation8 + $0x368] sm:$0xff]
    %v2568 = vld [vmem:[#allocation8 + $0x370] sm:$0xff]
    %v2569 = vld [vmem:[#allocation8 + $0x378] sm:$0xff]
    %v2570 = vld [vmem:[#allocation8 + $0x380] sm:$0xff]
    %v2571 = vld [vmem:[#allocation8 + $0x388] sm:$0xff]
    %v2572 = vld [vmem:[#allocation8 + $0x390] sm:$0xff]
    %v2573 = vld [vmem:[#allocation8 + $0x398] sm:$0xff]
    %v2574 = vld [vmem:[#allocation8 + $0x3a0] sm:$0xff]
    %v2575 = vld [vmem:[#allocation8 + $0x3a8] sm:$0xff]
    %v2576 = vld [vmem:[#allocation8 + $0x3b0] sm:$0xff]
    %v2577 = vld [vmem:[#allocation8 + $0x3b8] sm:$0xff]
    %v2578 = vld [vmem:[#allocation8 + $0x3c0] sm:$0xff]
    %v2579 = vld [vmem:[#allocation8 + $0x3c8] sm:$0xff]
    %v2580 = vld [vmem:[#allocation8 + $0x3d0] sm:$0xff]
    %v2581 = vld [vmem:[#allocation8 + $0x3d8] sm:$0xff]
    %v2582 = vld [vmem:[#allocation8 + $0x3e0] sm:$0xff]
    %v2583 = vld [vmem:[#allocation8 + $0x3e8] sm:$0xff]
    %v2584 = vld [vmem:[#allocation8 + $0x3f0] sm:$0xff]
    %v2585 = vld [vmem:[#allocation8 + $0x3f8] sm:$0xff]
    %v2586 = vld [vmem:[#allocation8 + $0x400] sm:$0xff]
    %v2587 = vld [vmem:[#allocation8 + $0x408] sm:$0xff]
    %v2588 = vld [vmem:[#allocation8 + $0x410] sm:$0xff]
    %v2589 = vld [vmem:[#allocation8 + $0x418] sm:$0xff]
    %v2590 = vld [vmem:[#allocation8 + $0x420] sm:$0xff]
    %v2591 = vld [vmem:[#allocation8 + $0x428] sm:$0xff]
    %v2592 = vld [vmem:[#allocation8 + $0x430] sm:$0xff]
    %v2593 = vld [vmem:[#allocation8 + $0x438] sm:$0xff]
    %v2594 = vld [vmem:[#allocation8 + $0x440] sm:$0xff]
    %v2595 = vld [vmem:[#allocation8 + $0x448] sm:$0xff]
    %v2596 = vld [vmem:[#allocation8 + $0x450] sm:$0xff]
    %v2597 = vld [vmem:[#allocation8 + $0x458] sm:$0xff]
    %v2598 = vld [vmem:[#allocation8 + $0x460] sm:$0xff]
    %v2599 = vld [vmem:[#allocation8 + $0x468] sm:$0xff]
    %v2600 = vld [vmem:[#allocation8 + $0x470] sm:$0xff]
    %v2601 = vld [vmem:[#allocation8 + $0x478] sm:$0xff]
    %v2602 = vld [vmem:[#allocation8 + $0x480] sm:$0xff]
    %v2603 = vld [vmem:[#allocation8 + $0x488] sm:$0xff]
    %v2604 = vld [vmem:[#allocation8 + $0x490] sm:$0xff]
    %v2605 = vld [vmem:[#allocation8 + $0x498] sm:$0xff]
    %v2606 = vld [vmem:[#allocation8 + $0x4a0] sm:$0xff]
    %v2607 = vld [vmem:[#allocation8 + $0x4a8] sm:$0xff]
    %v2608 = vld [vmem:[#allocation8 + $0x4b0] sm:$0xff]
    %v2609 = vld [vmem:[#allocation8 + $0x4b8] sm:$0xff]
    %v2610 = vld [vmem:[#allocation8 + $0x4c0] sm:$0xff]
    %v2611 = vld [vmem:[#allocation8 + $0x4c8] sm:$0xff]
    %v2612 = vld [vmem:[#allocation8 + $0x4d0] sm:$0xff]
    %v2613 = vld [vmem:[#allocation8 + $0x4d8] sm:$0xff]
    %v2614 = vld [vmem:[#allocation8 + $0x4e0] sm:$0xff]
    %v2615 = vld [vmem:[#allocation8 + $0x4e8] sm:$0xff]
    %v2616 = vld [vmem:[#allocation8 + $0x4f0] sm:$0xff]
    %v2617 = vld [vmem:[#allocation8 + $0x4f8] sm:$0xff]
    %v2618 = vld [vmem:[#allocation8 + $0x500] sm:$0xff]
    %v2619 = vld [vmem:[#allocation8 + $0x508] sm:$0xff]
    %v2620 = vld [vmem:[#allocation8 + $0x510] sm:$0xff]
    %v2621 = vld [vmem:[#allocation8 + $0x518] sm:$0xff]
    %v2622 = vld [vmem:[#allocation8 + $0x520] sm:$0xff]
    %v2623 = vld [vmem:[#allocation8 + $0x528] sm:$0xff]
    %v2624 = vld [vmem:[#allocation8 + $0x530] sm:$0xff]
    %v2625 = vld [vmem:[#allocation8 + $0x538] sm:$0xff]
    %v2626 = vld [vmem:[#allocation8 + $0x540] sm:$0xff]
    %v2627 = vld [vmem:[#allocation8 + $0x548] sm:$0xff]
    %v2628 = vld [vmem:[#allocation8 + $0x550] sm:$0xff]
    %v2629 = vld [vmem:[#allocation8 + $0x558] sm:$0xff]
    %v2630 = vld [vmem:[#allocation8 + $0x560] sm:$0xff]
    %v2631 = vld [vmem:[#allocation8 + $0x568] sm:$0xff]
    %v2632 = vld [vmem:[#allocation8 + $0x570] sm:$0xff]
    %v2633 = vld [vmem:[#allocation8 + $0x578] sm:$0xff]
    %v2634 = vld [vmem:[#allocation8 + $0x580] sm:$0xff]
    %v2635 = vld [vmem:[#allocation8 + $0x588] sm:$0xff]
    %v2636 = vld [vmem:[#allocation8 + $0x590] sm:$0xff]
    %v2637 = vld [vmem:[#allocation8 + $0x598] sm:$0xff]
    %v2638 = vld [vmem:[#allocation8 + $0x5a0] sm:$0xff]
    %v2639 = vld [vmem:[#allocation8 + $0x5a8] sm:$0xff]
    %v2640 = vld [vmem:[#allocation8 + $0x5b0] sm:$0xff]
    %v2641 = vld [vmem:[#allocation8 + $0x5b8] sm:$0xff]
    %v2642 = vld [vmem:[#allocation8 + $0x5c0] sm:$0xff]
    %v2643 = vld [vmem:[#allocation8 + $0x5c8] sm:$0xff]
    %v2644 = vld [vmem:[#allocation8 + $0x5d0] sm:$0xff]
    %v2645 = vld [vmem:[#allocation8 + $0x5d8] sm:$0xff]
    %v2646 = vld [vmem:[#allocation8 + $0x5e0] sm:$0xff]
    %v2647 = vld [vmem:[#allocation8 + $0x5e8] sm:$0xff]
    %v2648 = vld [vmem:[#allocation8 + $0x5f0] sm:$0xff]
    %v2649 = vld [vmem:[#allocation8 + $0x5f8] sm:$0xff]
    %v2650 = vld [vmem:[#allocation8 + $0x600] sm:$0xff]
    %v2651 = vld [vmem:[#allocation8 + $0x608] sm:$0xff]
    %v2652 = vld [vmem:[#allocation8 + $0x610] sm:$0xff]
    %v2653 = vld [vmem:[#allocation8 + $0x618] sm:$0xff]
    %v2654 = vld [vmem:[#allocation8 + $0x620] sm:$0xff]
    %v2655 = vld [vmem:[#allocation8 + $0x628] sm:$0xff]
    %v2656 = vld [vmem:[#allocation8 + $0x630] sm:$0xff]
    %v2657 = vld [vmem:[#allocation8 + $0x638] sm:$0xff]
    %v2658 = vld [vmem:[#allocation8 + $0x640] sm:$0xff]
    %v2659 = vld [vmem:[#allocation8 + $0x648] sm:$0xff]
    %v2660 = vld [vmem:[#allocation8 + $0x650] sm:$0xff]
    %v2661 = vld [vmem:[#allocation8 + $0x658] sm:$0xff]
    %v2662 = vld [vmem:[#allocation8 + $0x660] sm:$0xff]
    %v2663 = vld [vmem:[#allocation8 + $0x668] sm:$0xff]
    %v2664 = vld [vmem:[#allocation8 + $0x670] sm:$0xff]
    %v2665 = vld [vmem:[#allocation8 + $0x678] sm:$0xff]
    %v2666 = vld [vmem:[#allocation8 + $0x680] sm:$0xff]
    %v2667 = vld [vmem:[#allocation8 + $0x688] sm:$0xff]
    %v2668 = vld [vmem:[#allocation8 + $0x690] sm:$0xff]
    %v2669 = vld [vmem:[#allocation8 + $0x698] sm:$0xff]
    %v2670 = vld [vmem:[#allocation8 + $0x6a0] sm:$0xff]
    %v2671 = vld [vmem:[#allocation8 + $0x6a8] sm:$0xff]
    %v2672 = vld [vmem:[#allocation8 + $0x6b0] sm:$0xff]
    %v2673 = vld [vmem:[#allocation8 + $0x6b8] sm:$0xff]
    %v2674 = vld [vmem:[#allocation8 + $0x6c0] sm:$0xff]
    %v2675 = vld [vmem:[#allocation8 + $0x6c8] sm:$0xff]
    %v2676 = vld [vmem:[#allocation8 + $0x6d0] sm:$0xff]
    %v2677 = vld [vmem:[#allocation8 + $0x6d8] sm:$0xff]
    %v2678 = vld [vmem:[#allocation8 + $0x6e0] sm:$0xff]
    %v2679 = vld [vmem:[#allocation8 + $0x6e8] sm:$0xff]
    %v2680 = vld [vmem:[#allocation8 + $0x6f0] sm:$0xff]
    %v2681 = vld [vmem:[#allocation8 + $0x6f8] sm:$0xff]
    %v2682 = vld [vmem:[#allocation8 + $0x700] sm:$0xff]
    %v2683 = vld [vmem:[#allocation8 + $0x708] sm:$0xff]
    %v2684 = vld [vmem:[#allocation8 + $0x710] sm:$0xff]
    %v2685 = vld [vmem:[#allocation8 + $0x718] sm:$0xff]
    %v2686 = vld [vmem:[#allocation8 + $0x720] sm:$0xff]
    %v2687 = vld [vmem:[#allocation8 + $0x728] sm:$0xff]
    %v2688 = vld [vmem:[#allocation8 + $0x730] sm:$0xff]
    %v2689 = vld [vmem:[#allocation8 + $0x738] sm:$0xff]
    %v2690 = vld [vmem:[#allocation8 + $0x740] sm:$0xff]
    %v2691 = vld [vmem:[#allocation8 + $0x748] sm:$0xff]
    %v2692 = vld [vmem:[#allocation8 + $0x750] sm:$0xff]
    %v2693 = vld [vmem:[#allocation8 + $0x758] sm:$0xff]
    %v2694 = vld [vmem:[#allocation8 + $0x760] sm:$0xff]
    %v2695 = vld [vmem:[#allocation8 + $0x768] sm:$0xff]
    %v2696 = vld [vmem:[#allocation8 + $0x770] sm:$0xff]
    %v2697 = vld [vmem:[#allocation8 + $0x778] sm:$0xff]
    %v2698 = vld [vmem:[#allocation8 + $0x780] sm:$0xff]
    %v2699 = vld [vmem:[#allocation8 + $0x788] sm:$0xff]
    %v2700 = vld [vmem:[#allocation8 + $0x790] sm:$0xff]
    %v2701 = vld [vmem:[#allocation8 + $0x798] sm:$0xff]
    %v2702 = vld [vmem:[#allocation8 + $0x7a0] sm:$0xff]
    %v2703 = vld [vmem:[#allocation8 + $0x7a8] sm:$0xff]
    %v2704 = vld [vmem:[#allocation8 + $0x7b0] sm:$0xff]
    %v2705 = vld [vmem:[#allocation8 + $0x7b8] sm:$0xff]
    %v2706 = vld [vmem:[#allocation8 + $0x7c0] sm:$0xff]
    %v2707 = vld [vmem:[#allocation8 + $0x7c8] sm:$0xff]
    %v2708 = vld [vmem:[#allocation8 + $0x7d0] sm:$0xff]
    %v2709 = vld [vmem:[#allocation8 + $0x7d8] sm:$0xff]
    %v2710 = vld [vmem:[#allocation8 + $0x7e0] sm:$0xff]
    %v2711 = vld [vmem:[#allocation8 + $0x7e8] sm:$0xff]
    %v2712 = vld [vmem:[#allocation8 + $0x7f0] sm:$0xff]
    %v2713 = vld [vmem:[#allocation8 + $0x7f8] sm:$0xff]
    %v2714 = vld [vmem:[%s13] sm:$0xf]
    %v2716 = vlaneseq
    %v2717 = vshrl.u32 %v2716, 7
    %v2718 = vsub.s32 0, %v2717
    %v2719 = vrot.slane %v2714, %v2718
    %v2720 = vlaneseq
    %v2721 = vshrl.u32 %v2720, 7
    %v2722 = vsub.s32 1, %v2721
    %v2723 = vrot.slane %v2714, %v2722
    %v2724 = vlaneseq
    %v2725 = vshrl.u32 %v2724, 7
    %v2726 = vsub.s32 2, %v2725
    %v2727 = vrot.slane %v2714, %v2726
    %v2728 = vlaneseq
    %v2729 = vshrl.u32 %v2728, 7
    %v2730 = vsub.s32 3, %v2729
    %v2731 = vrot.slane %v2714, %v2730
    %2736 = vmatprep.subr.mxu0 %v2459
    %2737 = vmatpush1.msra.mxu0 %v2458
    %2738 = vmatprep.subr.mxu0 %v2463
    %2739 = vmatpush1.msra.mxu0 %v2462
    %2740 = vmatprep.subr.mxu0 %v2467
    %2741 = vmatpush1.msra.mxu0 %v2466
    %2742 = vmatprep.subr.mxu0 %v2471
    %2743 = vmatpush1.msra.mxu0 %v2470
    %2744 = vmatprep.subr.mxu0 %v2475
    %2745 = vmatpush1.msra.mxu0 %v2474
    %2746 = vmatprep.subr.mxu0 %v2479
    %2747 = vmatpush1.msra.mxu0 %v2478
    %2748 = vmatprep.subr.mxu0 %v2483
    %2749 = vmatpush1.msra.mxu0 %v2482
    %2750 = vmatprep.subr.mxu0 %v2487
    %2751 = vmatpush1.msra.mxu0 %v2486
    %2752 = vmatprep.subr.mxu0 %v2491
    %2753 = vmatpush1.msra.mxu0 %v2490
    %2754 = vmatprep.subr.mxu0 %v2495
    %2755 = vmatpush1.msra.mxu0 %v2494
    %2756 = vmatprep.subr.mxu0 %v2499
    %2757 = vmatpush1.msra.mxu0 %v2498
    %2758 = vmatprep.subr.mxu0 %v2503
    %2759 = vmatpush1.msra.mxu0 %v2502
    %2760 = vmatprep.subr.mxu0 %v2507
    %2761 = vmatpush1.msra.mxu0 %v2506
    %2762 = vmatprep.subr.mxu0 %v2511
    %2763 = vmatpush1.msra.mxu0 %v2510
    %2764 = vmatprep.subr.mxu0 %v2515
    %2765 = vmatpush1.msra.mxu0 %v2514
    %2766 = vmatprep.subr.mxu0 %v2519
    %2767 = vmatpush1.msra.mxu0 %v2518
    %2768 = vmatprep.subr.mxu0 %v2523
    %2769 = vmatpush1.msra.mxu0 %v2522
    %2770 = vmatprep.subr.mxu0 %v2527
    %2771 = vmatpush1.msra.mxu0 %v2526
    %2772 = vmatprep.subr.mxu0 %v2531
    %2773 = vmatpush1.msra.mxu0 %v2530
    %2774 = vmatprep.subr.mxu0 %v2535
    %2775 = vmatpush1.msra.mxu0 %v2534
    %2776 = vmatprep.subr.mxu0 %v2539
    %2777 = vmatpush1.msra.mxu0 %v2538
    %2778 = vmatprep.subr.mxu0 %v2543
    %2779 = vmatpush1.msra.mxu0 %v2542
    %2780 = vmatprep.subr.mxu0 %v2547
    %2781 = vmatpush1.msra.mxu0 %v2546
    %2782 = vmatprep.subr.mxu0 %v2551
    %2783 = vmatpush1.msra.mxu0 %v2550
    %2784 = vmatprep.subr.mxu0 %v2555
    %2785 = vmatpush1.msra.mxu0 %v2554
    %2786 = vmatprep.subr.mxu0 %v2559
    %2787 = vmatpush1.msra.mxu0 %v2558
    %2788 = vmatprep.subr.mxu0 %v2563
    %2789 = vmatpush1.msra.mxu0 %v2562
    %2790 = vmatprep.subr.mxu0 %v2567
    %2791 = vmatpush1.msra.mxu0 %v2566
    %2792 = vmatprep.subr.mxu0 %v2571
    %2793 = vmatpush1.msra.mxu0 %v2570
    %2794 = vmatprep.subr.mxu0 %v2575
    %2795 = vmatpush1.msra.mxu0 %v2574
    %2796 = vmatprep.subr.mxu0 %v2579
    %2797 = vmatpush1.msra.mxu0 %v2578
    %2798 = vmatprep.subr.mxu0 %v2583
    %2799 = vmatpush1.msra.mxu0 %v2582
    %2800 = vmatprep.mubr.f32.mxu0 %v2455
    %2801 = vmatmul.mubr.f32.gmra.mrb[0].mxu0 %v2454
    %v2802 = vpop.f32.mrb[0].mxu0
    %v2803 = vadd.f32 %v2719, %v2802
    %v2804 = vpop.f32.mrb[0].mxu0
    %v2805 = vadd.f32 %v2723, %v2804
    %2806 = vdwg.mxu0
    %2807 = vmatprep.subr.mxu0 %v2587
    %2808 = vmatpush1.msra.mxu0 %v2586
    %2809 = vmatprep.subr.mxu0 %v2591
    %2810 = vmatpush1.msra.mxu0 %v2590
    %2811 = vmatprep.subr.mxu0 %v2595
    %2812 = vmatpush1.msra.mxu0 %v2594
    %2813 = vmatprep.subr.mxu0 %v2599
    %2814 = vmatpush1.msra.mxu0 %v2598
    %2815 = vmatprep.subr.mxu0 %v2603
    %2816 = vmatpush1.msra.mxu0 %v2602
    %2817 = vmatprep.subr.mxu0 %v2607
    %2818 = vmatpush1.msra.mxu0 %v2606
    %2819 = vmatprep.subr.mxu0 %v2611
    %2820 = vmatpush1.msra.mxu0 %v2610
    %2821 = vmatprep.subr.mxu0 %v2615
    %2822 = vmatpush1.msra.mxu0 %v2614
    %2823 = vmatprep.subr.mxu0 %v2619
    %2824 = vmatpush1.msra.mxu0 %v2618
    %2825 = vmatprep.subr.mxu0 %v2623
    %2826 = vmatpush1.msra.mxu0 %v2622
    %2827 = vmatprep.subr.mxu0 %v2627
    %2828 = vmatpush1.msra.mxu0 %v2626
    %2829 = vmatprep.subr.mxu0 %v2631
    %2830 = vmatpush1.msra.mxu0 %v2630
    %2831 = vmatprep.subr.mxu0 %v2635
    %2832 = vmatpush1.msra.mxu0 %v2634
    %2833 = vmatprep.subr.mxu0 %v2639
    %2834 = vmatpush1.msra.mxu0 %v2638
    %2835 = vmatprep.subr.mxu0 %v2643
    %2836 = vmatpush1.msra.mxu0 %v2642
    %2837 = vmatprep.subr.mxu0 %v2647
    %2838 = vmatpush1.msra.mxu0 %v2646
    %2839 = vmatprep.subr.mxu0 %v2651
    %2840 = vmatpush1.msra.mxu0 %v2650
    %2841 = vmatprep.subr.mxu0 %v2655
    %2842 = vmatpush1.msra.mxu0 %v2654
    %2843 = vmatprep.subr.mxu0 %v2659
    %2844 = vmatpush1.msra.mxu0 %v2658
    %2845 = vmatprep.subr.mxu0 %v2663
    %2846 = vmatpush1.msra.mxu0 %v2662
    %2847 = vmatprep.subr.mxu0 %v2667
    %2848 = vmatpush1.msra.mxu0 %v2666
    %2849 = vmatprep.subr.mxu0 %v2671
    %2850 = vmatpush1.msra.mxu0 %v2670
    %2851 = vmatprep.subr.mxu0 %v2675
    %2852 = vmatpush1.msra.mxu0 %v2674
    %2853 = vmatprep.subr.mxu0 %v2679
    %2854 = vmatpush1.msra.mxu0 %v2678
    %2855 = vmatprep.subr.mxu0 %v2683
    %2856 = vmatpush1.msra.mxu0 %v2682
    %2857 = vmatprep.subr.mxu0 %v2687
    %2858 = vmatpush1.msra.mxu0 %v2686
    %2859 = vmatprep.subr.mxu0 %v2691
    %2860 = vmatpush1.msra.mxu0 %v2690
    %2861 = vmatprep.subr.mxu0 %v2695
    %2862 = vmatpush1.msra.mxu0 %v2694
    %2863 = vmatprep.subr.mxu0 %v2699
    %2864 = vmatpush1.msra.mxu0 %v2698
    %2865 = vmatprep.subr.mxu0 %v2703
    %2866 = vmatpush1.msra.mxu0 %v2702
    %2867 = vmatprep.subr.mxu0 %v2707
    %2868 = vmatpush1.msra.mxu0 %v2706
    %2869 = vmatprep.subr.mxu0 %v2711
    %2870 = vmatpush1.msra.mxu0 %v2710
    %2871 = vmatprep.mubr.f32.mxu0 %v2457
    %2872 = vmatmul.mubr.f32.gmra.mrb[0].mxu0 %v2456
    %v2873 = vpop.f32.mrb[0].mxu0
    %v2874 = vadd.f32 %v2803, %v2873
    %v2875 = vpop.f32.mrb[0].mxu0
    %v2876 = vadd.f32 %v2805, %v2875
    %2877 = vdwg.mxu0
    %2878 = vmatprep.subr.mxu0 %v2461
    %2879 = vmatpush1.msra.mxu0 %v2460
    %2880 = vmatprep.subr.mxu0 %v2465
    %2881 = vmatpush1.msra.mxu0 %v2464
    %2882 = vmatprep.subr.mxu0 %v2469
    %2883 = vmatpush1.msra.mxu0 %v2468
    %2884 = vmatprep.subr.mxu0 %v2473
    %2885 = vmatpush1.msra.mxu0 %v2472
    %2886 = vmatprep.subr.mxu0 %v2477
    %2887 = vmatpush1.msra.mxu0 %v2476
    %2888 = vmatprep.subr.mxu0 %v2481
    %2889 = vmatpush1.msra.mxu0 %v2480
    %2890 = vmatprep.subr.mxu0 %v2485
    %2891 = vmatpush1.msra.mxu0 %v2484
    %2892 = vmatprep.subr.mxu0 %v2489
    %2893 = vmatpush1.msra.mxu0 %v2488
    %2894 = vmatprep.subr.mxu0 %v2493
    %2895 = vmatpush1.msra.mxu0 %v2492
    %2896 = vmatprep.subr.mxu0 %v2497
    %2897 = vmatpush1.msra.mxu0 %v2496
    %2898 = vmatprep.subr.mxu0 %v2501
    %2899 = vmatpush1.msra.mxu0 %v2500
    %2900 = vmatprep.subr.mxu0 %v2505
    %2901 = vmatpush1.msra.mxu0 %v2504
    %2902 = vmatprep.subr.mxu0 %v2509
    %2903 = vmatpush1.msra.mxu0 %v2508
    %2904 = vmatprep.subr.mxu0 %v2513
    %2905 = vmatpush1.msra.mxu0 %v2512
    %2906 = vmatprep.subr.mxu0 %v2517
    %2907 = vmatpush1.msra.mxu0 %v2516
    %2908 = vmatprep.subr.mxu0 %v2521
    %2909 = vmatpush1.msra.mxu0 %v2520
    %2910 = vmatprep.subr.mxu0 %v2525
    %2911 = vmatpush1.msra.mxu0 %v2524
    %2912 = vmatprep.subr.mxu0 %v2529
    %2913 = vmatpush1.msra.mxu0 %v2528
    %2914 = vmatprep.subr.mxu0 %v2533
    %2915 = vmatpush1.msra.mxu0 %v2532
    %2916 = vmatprep.subr.mxu0 %v2537
    %2917 = vmatpush1.msra.mxu0 %v2536
    %2918 = vmatprep.subr.mxu0 %v2541
    %2919 = vmatpush1.msra.mxu0 %v2540
    %2920 = vmatprep.subr.mxu0 %v2545
    %2921 = vmatpush1.msra.mxu0 %v2544
    %2922 = vmatprep.subr.mxu0 %v2549
    %2923 = vmatpush1.msra.mxu0 %v2548
    %2924 = vmatprep.subr.mxu0 %v2553
    %2925 = vmatpush1.msra.mxu0 %v2552
    %2926 = vmatprep.subr.mxu0 %v2557
    %2927 = vmatpush1.msra.mxu0 %v2556
    %2928 = vmatprep.subr.mxu0 %v2561
    %2929 = vmatpush1.msra.mxu0 %v2560
    %2930 = vmatprep.subr.mxu0 %v2565
    %2931 = vmatpush1.msra.mxu0 %v2564
    %2932 = vmatprep.subr.mxu0 %v2569
    %2933 = vmatpush1.msra.mxu0 %v2568
    %2934 = vmatprep.subr.mxu0 %v2573
    %2935 = vmatpush1.msra.mxu0 %v2572
    %2936 = vmatprep.subr.mxu0 %v2577
    %2937 = vmatpush1.msra.mxu0 %v2576
    %2938 = vmatprep.subr.mxu0 %v2581
    %2939 = vmatpush1.msra.mxu0 %v2580
    %2940 = vmatprep.subr.mxu0 %v2585
    %2941 = vmatpush1.msra.mxu0 %v2584
    %2942 = vmatprep.mubr.f32.mxu0 %v2455
    %2943 = vmatmul.mubr.f32.gmra.mrb[0].mxu0 %v2454
    %v2944 = vpop.f32.mrb[0].mxu0
    %v2945 = vadd.f32 %v2727, %v2944
    %v2946 = vpop.f32.mrb[0].mxu0
    %v2947 = vadd.f32 %v2731, %v2946
    %2948 = vdwg.mxu0
    %2949 = vmatprep.subr.mxu0 %v2589
    %2950 = vmatpush1.msra.mxu0 %v2588
    %2951 = vmatprep.subr.mxu0 %v2593
    %2952 = vmatpush1.msra.mxu0 %v2592
    %2953 = vmatprep.subr.mxu0 %v2597
    %2954 = vmatpush1.msra.mxu0 %v2596
    %2955 = vmatprep.subr.mxu0 %v2601
    %2956 = vmatpush1.msra.mxu0 %v2600
    %2957 = vmatprep.subr.mxu0 %v2605
    %2958 = vmatpush1.msra.mxu0 %v2604
    %2959 = vmatprep.subr.mxu0 %v2609
    %2960 = vmatpush1.msra.mxu0 %v2608
    %2961 = vmatprep.subr.mxu0 %v2613
    %2962 = vmatpush1.msra.mxu0 %v2612
    %2963 = vmatprep.subr.mxu0 %v2617
    %2964 = vmatpush1.msra.mxu0 %v2616
    %2965 = vmatprep.subr.mxu0 %v2621
    %2966 = vmatpush1.msra.mxu0 %v2620
    %2967 = vmatprep.subr.mxu0 %v2625
    %2968 = vmatpush1.msra.mxu0 %v2624
    %2969 = vmatprep.subr.mxu0 %v2629
    %2970 = vmatpush1.msra.mxu0 %v2628
    %2971 = vmatprep.subr.mxu0 %v2633
    %2972 = vmatpush1.msra.mxu0 %v2632
    %2973 = vmatprep.subr.mxu0 %v2637
    %2974 = vmatpush1.msra.mxu0 %v2636
    %2975 = vmatprep.subr.mxu0 %v2641
    %2976 = vmatpush1.msra.mxu0 %v2640
    %2977 = vmatprep.subr.mxu0 %v2645
    %2978 = vmatpush1.msra.mxu0 %v2644
    %2979 = vmatprep.subr.mxu0 %v2649
    %2980 = vmatpush1.msra.mxu0 %v2648
    %2981 = vmatprep.subr.mxu0 %v2653
    %2982 = vmatpush1.msra.mxu0 %v2652
    %2983 = vmatprep.subr.mxu0 %v2657
    %2984 = vmatpush1.msra.mxu0 %v2656
    %2985 = vmatprep.subr.mxu0 %v2661
    %2986 = vmatpush1.msra.mxu0 %v2660
    %2987 = vmatprep.subr.mxu0 %v2665
    %2988 = vmatpush1.msra.mxu0 %v2664
    %2989 = vmatprep.subr.mxu0 %v2669
    %2990 = vmatpush1.msra.mxu0 %v2668
    %2991 = vmatprep.subr.mxu0 %v2673
    %2992 = vmatpush1.msra.mxu0 %v2672
    %2993 = vmatprep.subr.mxu0 %v2677
    %2994 = vmatpush1.msra.mxu0 %v2676
    %2995 = vmatprep.subr.mxu0 %v2681
    %2996 = vmatpush1.msra.mxu0 %v2680
    %2997 = vmatprep.subr.mxu0 %v2685
    %2998 = vmatpush1.msra.mxu0 %v2684
    %2999 = vmatprep.subr.mxu0 %v2689
    %3000 = vmatpush1.msra.mxu0 %v2688
    %3001 = vmatprep.subr.mxu0 %v2693
    %3002 = vmatpush1.msra.mxu0 %v2692
    %3003 = vmatprep.subr.mxu0 %v2697
    %3004 = vmatpush1.msra.mxu0 %v2696
    %3005 = vmatprep.subr.mxu0 %v2701
    %3006 = vmatpush1.msra.mxu0 %v2700
    %3007 = vmatprep.subr.mxu0 %v2705
    %3008 = vmatpush1.msra.mxu0 %v2704
    %3009 = vmatprep.subr.mxu0 %v2709
    %3010 = vmatpush1.msra.mxu0 %v2708
    %3011 = vmatprep.subr.mxu0 %v2713
    %3012 = vmatpush1.msra.mxu0 %v2712
    %3013 = vmatprep.mubr.f32.mxu0 %v2457
    %3014 = vmatmul.mubr.f32.gmra.mrb[0].mxu0 %v2456
    %v3015 = vpop.f32.mrb[0].mxu0
    %v3016 = vadd.f32 %v2945, %v3015
    %v3017 = vpop.f32.mrb[0].mxu0
    %v3018 = vadd.f32 %v2947, %v3017
    %3019 = vdwg.mxu0
    %v3020 = vmul.f32 %v2874, 0.5
    %v3021 = vmul.f32 %v2876, 0.5
    %v3022 = vmul.f32 %v3016, 0.5
    %v3023 = vmul.f32 %v3018, 0.5
    %v3024 = vmul.f32 %v2874, 0.70710677
    %v3025 = vmul.f32 %v2876, 0.70710677
    %v3026 = vmul.f32 %v3016, 0.70710677
    %v3027 = vmul.f32 %v3018, 0.70710677
    %v3028 = vand.u32 2147483647, %v3024
    %v3029 = vand.u32 2147483647, %v3025
    %v3030 = vand.u32 2147483647, %v3026
    %v3031 = vand.u32 2147483647, %v3027
    %v3032 = vmul.f32 %v3028, 0.3275911
    %v3033 = vmul.f32 %v3029, 0.3275911
    %v3034 = vmul.f32 %v3030, 0.3275911
    %v3035 = vmul.f32 %v3031, 0.3275911
    %v3036 = vadd.f32 %v3032, 1.0
    %v3037 = vadd.f32 %v3033, 1.0
    %v3038 = vadd.f32 %v3034, 1.0
    %v3039 = vadd.f32 %v3035, 1.0
    %v3040 = vrcp.pop %v3036
    %v3041 = vmul.f32 1.0, %v3040
    %v3042 = vrcp.pop %v3037
    %v3043 = vmul.f32 1.0, %v3042
    %v3044 = vrcp.pop %v3038
    %v3045 = vmul.f32 1.0, %v3044
    %v3046 = vrcp.pop %v3039
    %v3047 = vmul.f32 1.0, %v3046
    %v3048 = vmul.f32 %v3041, 1.0614054
    %v3049 = vmul.f32 %v3043, 1.0614054
    %v3050 = vmul.f32 %v3045, 1.0614054
    %v3051 = vmul.f32 %v3047, 1.0614054
    %v3052 = vadd.f32 %v3048, -1.4531521
    %v3053 = vadd.f32 %v3049, -1.4531521
    %v3054 = vadd.f32 %v3050, -1.4531521
    %v3055 = vadd.f32 %v3051, -1.4531521
    %v3056 = vmul.f32 %v3052, %v3041
    %v3057 = vmul.f32 %v3053, %v3043
    %v3058 = vmul.f32 %v3054, %v3045
    %v3059 = vmul.f32 %v3055, %v3047
    %v3060 = vadd.f32 %v3056, 1.4214138
    %v3061 = vadd.f32 %v3057, 1.4214138
    %v3062 = vadd.f32 %v3058, 1.4214138
    %v3063 = vadd.f32 %v3059, 1.4214138
    %v3064 = vmul.f32 %v3060, %v3041
    %v3065 = vmul.f32 %v3061, %v3043
    %v3066 = vmul.f32 %v3062, %v3045
    %v3067 = vmul.f32 %v3063, %v3047
    %v3068 = vadd.f32 %v3064, -0.28449672
    %v3069 = vadd.f32 %v3065, -0.28449672
    %v3070 = vadd.f32 %v3066, -0.28449672
    %v3071 = vadd.f32 %v3067, -0.28449672
    %v3072 = vmul.f32 %v3068, %v3041
    %v3073 = vmul.f32 %v3069, %v3043
    %v3074 = vmul.f32 %v3070, %v3045
    %v3075 = vmul.f32 %v3071, %v3047
    %v3076 = vadd.f32 %v3072, 0.2548296
    %v3077 = vadd.f32 %v3073, 0.2548296
    %v3078 = vadd.f32 %v3074, 0.2548296
    %v3079 = vadd.f32 %v3075, 0.2548296
    %v3080 = vmul.f32 %v3076, %v3041
    %v3081 = vmul.f32 %v3077, %v3043
    %v3082 = vmul.f32 %v3078, %v3045
    %v3083 = vmul.f32 %v3079, %v3047
    %v3084 = vsub.f32 0.0, %v3028
    %v3085 = vsub.f32 0.0, %v3029
    %v3086 = vsub.f32 0.0, %v3030
    %v3087 = vsub.f32 0.0, %v3031
    %v3088 = vmul.f32 %v3084, %v3028
    %v3089 = vmul.f32 %v3085, %v3029
    %v3090 = vmul.f32 %v3086, %v3030
    %v3091 = vmul.f32 %v3087, %v3031
    %v3092 = vmul.f32 %v3088, 1.442695
    %v3093 = vpow.pop %v3092
    %v3094 = vmul.f32 %v3089, 1.442695
    %v3095 = vpow.pop %v3094
    %v3096 = vmul.f32 %v3090, 1.442695
    %v3097 = vpow.pop %v3096
    %v3098 = vmul.f32 %v3091, 1.442695
    %v3099 = vpow.pop %v3098
    %v3100 = vmul.f32 %v3080, %v3093
    %v3101 = vmul.f32 %v3081, %v3095
    %v3102 = vmul.f32 %v3082, %v3097
    %v3103 = vmul.f32 %v3083, %v3099
    %v3104 = vsub.f32 1.0, %v3100
    %v3105 = vsub.f32 1.0, %v3101
    %v3106 = vsub.f32 1.0, %v3102
    %v3107 = vsub.f32 1.0, %v3103
    %vm3108 = vcmp.ge.f32.partialorder %v3024, 0.0
    %vm3109 = vcmp.ge.f32.partialorder %v3025, 0.0
    %vm3110 = vcmp.ge.f32.partialorder %v3026, 0.0
    %vm3111 = vcmp.ge.f32.partialorder %v3027, 0.0
    %v3112 = vsub.f32 0.0, %v3104
    %v3113 = vsub.f32 0.0, %v3105
    %v3114 = vsub.f32 0.0, %v3106
    %v3115 = vsub.f32 0.0, %v3107
    %v3116 = vsel %vm3108, %v3104, %v3112
    %v3117 = vsel %vm3109, %v3105, %v3113
    %v3118 = vsel %vm3110, %v3106, %v3114
    %v3119 = vsel %vm3111, %v3107, %v3115
    %v3120 = vadd.f32 %v3116, 1.0
    %v3121 = vadd.f32 %v3117, 1.0
    %v3122 = vadd.f32 %v3118, 1.0
    %v3123 = vadd.f32 %v3119, 1.0
    %v3124 = vmul.f32 %v3020, %v3120
    %v3125 = vmul.f32 %v3021, %v3121
    %v3126 = vmul.f32 %v3022, %v3122
    %v3127 = vmul.f32 %v3023, %v3123
    %v3128 = vld [vmem:[#allocation10] sm:$0xff]
    %v3129 = vld [vmem:[#allocation10 + $0x8] sm:$0xff]
    %v3130 = vld [vmem:[#allocation10 + $0x10] sm:$0xff]
    %v3131 = vld [vmem:[#allocation10 + $0x18] sm:$0xff]
    %v3132 = vld [vmem:[#allocation10 + $0x20] sm:$0xff]
    %v3133 = vld [vmem:[#allocation10 + $0x28] sm:$0xff]
    %v3134 = vld [vmem:[#allocation10 + $0x30] sm:$0xff]
    %v3135 = vld [vmem:[#allocation10 + $0x38] sm:$0xff]
    %v3136 = vld [vmem:[#allocation10 + $0x40] sm:$0xff]
    %v3137 = vld [vmem:[#allocation10 + $0x48] sm:$0xff]
    %v3138 = vld [vmem:[#allocation10 + $0x50] sm:$0xff]
    %v3139 = vld [vmem:[#allocation10 + $0x58] sm:$0xff]
    %v3140 = vld [vmem:[#allocation10 + $0x60] sm:$0xff]
    %v3141 = vld [vmem:[#allocation10 + $0x68] sm:$0xff]
    %v3142 = vld [vmem:[#allocation10 + $0x70] sm:$0xff]
    %v3143 = vld [vmem:[#allocation10 + $0x78] sm:$0xff]
    %v3144 = vld [vmem:[#allocation10 + $0x80] sm:$0xff]
    %v3145 = vld [vmem:[#allocation10 + $0x88] sm:$0xff]
    %v3146 = vld [vmem:[#allocation10 + $0x90] sm:$0xff]
    %v3147 = vld [vmem:[#allocation10 + $0x98] sm:$0xff]
    %v3148 = vld [vmem:[#allocation10 + $0xa0] sm:$0xff]
    %v3149 = vld [vmem:[#allocation10 + $0xa8] sm:$0xff]
    %v3150 = vld [vmem:[#allocation10 + $0xb0] sm:$0xff]
    %v3151 = vld [vmem:[#allocation10 + $0xb8] sm:$0xff]
    %v3152 = vld [vmem:[#allocation10 + $0xc0] sm:$0xff]
    %v3153 = vld [vmem:[#allocation10 + $0xc8] sm:$0xff]
    %v3154 = vld [vmem:[#allocation10 + $0xd0] sm:$0xff]
    %v3155 = vld [vmem:[#allocation10 + $0xd8] sm:$0xff]
    %v3156 = vld [vmem:[#allocation10 + $0xe0] sm:$0xff]
    %v3157 = vld [vmem:[#allocation10 + $0xe8] sm:$0xff]
    %v3158 = vld [vmem:[#allocation10 + $0xf0] sm:$0xff]
    %v3159 = vld [vmem:[#allocation10 + $0xf8] sm:$0xff]
    %v3160 = vld [vmem:[#allocation10 + $0x100] sm:$0xff]
    %v3161 = vld [vmem:[#allocation10 + $0x108] sm:$0xff]
    %v3162 = vld [vmem:[#allocation10 + $0x110] sm:$0xff]
    %v3163 = vld [vmem:[#allocation10 + $0x118] sm:$0xff]
    %v3164 = vld [vmem:[#allocation10 + $0x120] sm:$0xff]
    %v3165 = vld [vmem:[#allocation10 + $0x128] sm:$0xff]
    %v3166 = vld [vmem:[#allocation10 + $0x130] sm:$0xff]
    %v3167 = vld [vmem:[#allocation10 + $0x138] sm:$0xff]
    %v3168 = vld [vmem:[#allocation10 + $0x140] sm:$0xff]
    %v3169 = vld [vmem:[#allocation10 + $0x148] sm:$0xff]
    %v3170 = vld [vmem:[#allocation10 + $0x150] sm:$0xff]
    %v3171 = vld [vmem:[#allocation10 + $0x158] sm:$0xff]
    %v3172 = vld [vmem:[#allocation10 + $0x160] sm:$0xff]
    %v3173 = vld [vmem:[#allocation10 + $0x168] sm:$0xff]
    %v3174 = vld [vmem:[#allocation10 + $0x170] sm:$0xff]
    %v3175 = vld [vmem:[#allocation10 + $0x178] sm:$0xff]
    %v3176 = vld [vmem:[#allocation10 + $0x180] sm:$0xff]
    %v3177 = vld [vmem:[#allocation10 + $0x188] sm:$0xff]
    %v3178 = vld [vmem:[#allocation10 + $0x190] sm:$0xff]
    %v3179 = vld [vmem:[#allocation10 + $0x198] sm:$0xff]
    %v3180 = vld [vmem:[#allocation10 + $0x1a0] sm:$0xff]
    %v3181 = vld [vmem:[#allocation10 + $0x1a8] sm:$0xff]
    %v3182 = vld [vmem:[#allocation10 + $0x1b0] sm:$0xff]
    %v3183 = vld [vmem:[#allocation10 + $0x1b8] sm:$0xff]
    %v3184 = vld [vmem:[#allocation10 + $0x1c0] sm:$0xff]
    %v3185 = vld [vmem:[#allocation10 + $0x1c8] sm:$0xff]
    %v3186 = vld [vmem:[#allocation10 + $0x1d0] sm:$0xff]
    %v3187 = vld [vmem:[#allocation10 + $0x1d8] sm:$0xff]
    %v3188 = vld [vmem:[#allocation10 + $0x1e0] sm:$0xff]
    %v3189 = vld [vmem:[#allocation10 + $0x1e8] sm:$0xff]
    %v3190 = vld [vmem:[#allocation10 + $0x1f0] sm:$0xff]
    %v3191 = vld [vmem:[#allocation10 + $0x1f8] sm:$0xff]
    %v3192 = vld [vmem:[#allocation10 + $0x200] sm:$0xff]
    %v3193 = vld [vmem:[#allocation10 + $0x208] sm:$0xff]
    %v3194 = vld [vmem:[#allocation10 + $0x210] sm:$0xff]
    %v3195 = vld [vmem:[#allocation10 + $0x218] sm:$0xff]
    %v3196 = vld [vmem:[#allocation10 + $0x220] sm:$0xff]
    %v3197 = vld [vmem:[#allocation10 + $0x228] sm:$0xff]
    %v3198 = vld [vmem:[#allocation10 + $0x230] sm:$0xff]
    %v3199 = vld [vmem:[#allocation10 + $0x238] sm:$0xff]
    %v3200 = vld [vmem:[#allocation10 + $0x240] sm:$0xff]
    %v3201 = vld [vmem:[#allocation10 + $0x248] sm:$0xff]
    %v3202 = vld [vmem:[#allocation10 + $0x250] sm:$0xff]
    %v3203 = vld [vmem:[#allocation10 + $0x258] sm:$0xff]
    %v3204 = vld [vmem:[#allocation10 + $0x260] sm:$0xff]
    %v3205 = vld [vmem:[#allocation10 + $0x268] sm:$0xff]
    %v3206 = vld [vmem:[#allocation10 + $0x270] sm:$0xff]
    %v3207 = vld [vmem:[#allocation10 + $0x278] sm:$0xff]
    %v3208 = vld [vmem:[#allocation10 + $0x280] sm:$0xff]
    %v3209 = vld [vmem:[#allocation10 + $0x288] sm:$0xff]
    %v3210 = vld [vmem:[#allocation10 + $0x290] sm:$0xff]
    %v3211 = vld [vmem:[#allocation10 + $0x298] sm:$0xff]
    %v3212 = vld [vmem:[#allocation10 + $0x2a0] sm:$0xff]
    %v3213 = vld [vmem:[#allocation10 + $0x2a8] sm:$0xff]
    %v3214 = vld [vmem:[#allocation10 + $0x2b0] sm:$0xff]
    %v3215 = vld [vmem:[#allocation10 + $0x2b8] sm:$0xff]
    %v3216 = vld [vmem:[#allocation10 + $0x2c0] sm:$0xff]
    %v3217 = vld [vmem:[#allocation10 + $0x2c8] sm:$0xff]
    %v3218 = vld [vmem:[#allocation10 + $0x2d0] sm:$0xff]
    %v3219 = vld [vmem:[#allocation10 + $0x2d8] sm:$0xff]
    %v3220 = vld [vmem:[#allocation10 + $0x2e0] sm:$0xff]
    %v3221 = vld [vmem:[#allocation10 + $0x2e8] sm:$0xff]
    %v3222 = vld [vmem:[#allocation10 + $0x2f0] sm:$0xff]
    %v3223 = vld [vmem:[#allocation10 + $0x2f8] sm:$0xff]
    %v3224 = vld [vmem:[#allocation10 + $0x300] sm:$0xff]
    %v3225 = vld [vmem:[#allocation10 + $0x308] sm:$0xff]
    %v3226 = vld [vmem:[#allocation10 + $0x310] sm:$0xff]
    %v3227 = vld [vmem:[#allocation10 + $0x318] sm:$0xff]
    %v3228 = vld [vmem:[#allocation10 + $0x320] sm:$0xff]
    %v3229 = vld [vmem:[#allocation10 + $0x328] sm:$0xff]
    %v3230 = vld [vmem:[#allocation10 + $0x330] sm:$0xff]
    %v3231 = vld [vmem:[#allocation10 + $0x338] sm:$0xff]
    %v3232 = vld [vmem:[#allocation10 + $0x340] sm:$0xff]
    %v3233 = vld [vmem:[#allocation10 + $0x348] sm:$0xff]
    %v3234 = vld [vmem:[#allocation10 + $0x350] sm:$0xff]
    %v3235 = vld [vmem:[#allocation10 + $0x358] sm:$0xff]
    %v3236 = vld [vmem:[#allocation10 + $0x360] sm:$0xff]
    %v3237 = vld [vmem:[#allocation10 + $0x368] sm:$0xff]
    %v3238 = vld [vmem:[#allocation10 + $0x370] sm:$0xff]
    %v3239 = vld [vmem:[#allocation10 + $0x378] sm:$0xff]
    %v3240 = vld [vmem:[#allocation10 + $0x380] sm:$0xff]
    %v3241 = vld [vmem:[#allocation10 + $0x388] sm:$0xff]
    %v3242 = vld [vmem:[#allocation10 + $0x390] sm:$0xff]
    %v3243 = vld [vmem:[#allocation10 + $0x398] sm:$0xff]
    %v3244 = vld [vmem:[#allocation10 + $0x3a0] sm:$0xff]
    %v3245 = vld [vmem:[#allocation10 + $0x3a8] sm:$0xff]
    %v3246 = vld [vmem:[#allocation10 + $0x3b0] sm:$0xff]
    %v3247 = vld [vmem:[#allocation10 + $0x3b8] sm:$0xff]
    %v3248 = vld [vmem:[#allocation10 + $0x3c0] sm:$0xff]
    %v3249 = vld [vmem:[#allocation10 + $0x3c8] sm:$0xff]
    %v3250 = vld [vmem:[#allocation10 + $0x3d0] sm:$0xff]
    %v3251 = vld [vmem:[#allocation10 + $0x3d8] sm:$0xff]
    %v3252 = vld [vmem:[#allocation10 + $0x3e0] sm:$0xff]
    %v3253 = vld [vmem:[#allocation10 + $0x3e8] sm:$0xff]
    %v3254 = vld [vmem:[#allocation10 + $0x3f0] sm:$0xff]
    %v3255 = vld [vmem:[#allocation10 + $0x3f8] sm:$0xff]
    %v3256 = vld [vmem:[#allocation10 + $0x400] sm:$0xff]
    %v3257 = vld [vmem:[#allocation10 + $0x408] sm:$0xff]
    %v3258 = vld [vmem:[#allocation10 + $0x410] sm:$0xff]
    %v3259 = vld [vmem:[#allocation10 + $0x418] sm:$0xff]
    %v3260 = vld [vmem:[#allocation10 + $0x420] sm:$0xff]
    %v3261 = vld [vmem:[#allocation10 + $0x428] sm:$0xff]
    %v3262 = vld [vmem:[#allocation10 + $0x430] sm:$0xff]
    %v3263 = vld [vmem:[#allocation10 + $0x438] sm:$0xff]
    %v3264 = vld [vmem:[#allocation10 + $0x440] sm:$0xff]
    %v3265 = vld [vmem:[#allocation10 + $0x448] sm:$0xff]
    %v3266 = vld [vmem:[#allocation10 + $0x450] sm:$0xff]
    %v3267 = vld [vmem:[#allocation10 + $0x458] sm:$0xff]
    %v3268 = vld [vmem:[#allocation10 + $0x460] sm:$0xff]
    %v3269 = vld [vmem:[#allocation10 + $0x468] sm:$0xff]
    %v3270 = vld [vmem:[#allocation10 + $0x470] sm:$0xff]
    %v3271 = vld [vmem:[#allocation10 + $0x478] sm:$0xff]
    %v3272 = vld [vmem:[#allocation10 + $0x480] sm:$0xff]
    %v3273 = vld [vmem:[#allocation10 + $0x488] sm:$0xff]
    %v3274 = vld [vmem:[#allocation10 + $0x490] sm:$0xff]
    %v3275 = vld [vmem:[#allocation10 + $0x498] sm:$0xff]
    %v3276 = vld [vmem:[#allocation10 + $0x4a0] sm:$0xff]
    %v3277 = vld [vmem:[#allocation10 + $0x4a8] sm:$0xff]
    %v3278 = vld [vmem:[#allocation10 + $0x4b0] sm:$0xff]
    %v3279 = vld [vmem:[#allocation10 + $0x4b8] sm:$0xff]
    %v3280 = vld [vmem:[#allocation10 + $0x4c0] sm:$0xff]
    %v3281 = vld [vmem:[#allocation10 + $0x4c8] sm:$0xff]
    %v3282 = vld [vmem:[#allocation10 + $0x4d0] sm:$0xff]
    %v3283 = vld [vmem:[#allocation10 + $0x4d8] sm:$0xff]
    %v3284 = vld [vmem:[#allocation10 + $0x4e0] sm:$0xff]
    %v3285 = vld [vmem:[#allocation10 + $0x4e8] sm:$0xff]
    %v3286 = vld [vmem:[#allocation10 + $0x4f0] sm:$0xff]
    %v3287 = vld [vmem:[#allocation10 + $0x4f8] sm:$0xff]
    %v3288 = vld [vmem:[#allocation10 + $0x500] sm:$0xff]
    %v3289 = vld [vmem:[#allocation10 + $0x508] sm:$0xff]
    %v3290 = vld [vmem:[#allocation10 + $0x510] sm:$0xff]
    %v3291 = vld [vmem:[#allocation10 + $0x518] sm:$0xff]
    %v3292 = vld [vmem:[#allocation10 + $0x520] sm:$0xff]
    %v3293 = vld [vmem:[#allocation10 + $0x528] sm:$0xff]
    %v3294 = vld [vmem:[#allocation10 + $0x530] sm:$0xff]
    %v3295 = vld [vmem:[#allocation10 + $0x538] sm:$0xff]
    %v3296 = vld [vmem:[#allocation10 + $0x540] sm:$0xff]
    %v3297 = vld [vmem:[#allocation10 + $0x548] sm:$0xff]
    %v3298 = vld [vmem:[#allocation10 + $0x550] sm:$0xff]
    %v3299 = vld [vmem:[#allocation10 + $0x558] sm:$0xff]
    %v3300 = vld [vmem:[#allocation10 + $0x560] sm:$0xff]
    %v3301 = vld [vmem:[#allocation10 + $0x568] sm:$0xff]
    %v3302 = vld [vmem:[#allocation10 + $0x570] sm:$0xff]
    %v3303 = vld [vmem:[#allocation10 + $0x578] sm:$0xff]
    %v3304 = vld [vmem:[#allocation10 + $0x580] sm:$0xff]
    %v3305 = vld [vmem:[#allocation10 + $0x588] sm:$0xff]
    %v3306 = vld [vmem:[#allocation10 + $0x590] sm:$0xff]
    %v3307 = vld [vmem:[#allocation10 + $0x598] sm:$0xff]
    %v3308 = vld [vmem:[#allocation10 + $0x5a0] sm:$0xff]
    %v3309 = vld [vmem:[#allocation10 + $0x5a8] sm:$0xff]
    %v3310 = vld [vmem:[#allocation10 + $0x5b0] sm:$0xff]
    %v3311 = vld [vmem:[#allocation10 + $0x5b8] sm:$0xff]
    %v3312 = vld [vmem:[#allocation10 + $0x5c0] sm:$0xff]
    %v3313 = vld [vmem:[#allocation10 + $0x5c8] sm:$0xff]
    %v3314 = vld [vmem:[#allocation10 + $0x5d0] sm:$0xff]
    %v3315 = vld [vmem:[#allocation10 + $0x5d8] sm:$0xff]
    %v3316 = vld [vmem:[#allocation10 + $0x5e0] sm:$0xff]
    %v3317 = vld [vmem:[#allocation10 + $0x5e8] sm:$0xff]
    %v3318 = vld [vmem:[#allocation10 + $0x5f0] sm:$0xff]
    %v3319 = vld [vmem:[#allocation10 + $0x5f8] sm:$0xff]
    %v3320 = vld [vmem:[#allocation10 + $0x600] sm:$0xff]
    %v3321 = vld [vmem:[#allocation10 + $0x608] sm:$0xff]
    %v3322 = vld [vmem:[#allocation10 + $0x610] sm:$0xff]
    %v3323 = vld [vmem:[#allocation10 + $0x618] sm:$0xff]
    %v3324 = vld [vmem:[#allocation10 + $0x620] sm:$0xff]
    %v3325 = vld [vmem:[#allocation10 + $0x628] sm:$0xff]
    %v3326 = vld [vmem:[#allocation10 + $0x630] sm:$0xff]
    %v3327 = vld [vmem:[#allocation10 + $0x638] sm:$0xff]
    %v3328 = vld [vmem:[#allocation10 + $0x640] sm:$0xff]
    %v3329 = vld [vmem:[#allocation10 + $0x648] sm:$0xff]
    %v3330 = vld [vmem:[#allocation10 + $0x650] sm:$0xff]
    %v3331 = vld [vmem:[#allocation10 + $0x658] sm:$0xff]
    %v3332 = vld [vmem:[#allocation10 + $0x660] sm:$0xff]
    %v3333 = vld [vmem:[#allocation10 + $0x668] sm:$0xff]
    %v3334 = vld [vmem:[#allocation10 + $0x670] sm:$0xff]
    %v3335 = vld [vmem:[#allocation10 + $0x678] sm:$0xff]
    %v3336 = vld [vmem:[#allocation10 + $0x680] sm:$0xff]
    %v3337 = vld [vmem:[#allocation10 + $0x688] sm:$0xff]
    %v3338 = vld [vmem:[#allocation10 + $0x690] sm:$0xff]
    %v3339 = vld [vmem:[#allocation10 + $0x698] sm:$0xff]
    %v3340 = vld [vmem:[#allocation10 + $0x6a0] sm:$0xff]
    %v3341 = vld [vmem:[#allocation10 + $0x6a8] sm:$0xff]
    %v3342 = vld [vmem:[#allocation10 + $0x6b0] sm:$0xff]
    %v3343 = vld [vmem:[#allocation10 + $0x6b8] sm:$0xff]
    %v3344 = vld [vmem:[#allocation10 + $0x6c0] sm:$0xff]
    %v3345 = vld [vmem:[#allocation10 + $0x6c8] sm:$0xff]
    %v3346 = vld [vmem:[#allocation10 + $0x6d0] sm:$0xff]
    %v3347 = vld [vmem:[#allocation10 + $0x6d8] sm:$0xff]
    %v3348 = vld [vmem:[#allocation10 + $0x6e0] sm:$0xff]
    %v3349 = vld [vmem:[#allocation10 + $0x6e8] sm:$0xff]
    %v3350 = vld [vmem:[#allocation10 + $0x6f0] sm:$0xff]
    %v3351 = vld [vmem:[#allocation10 + $0x6f8] sm:$0xff]
    %v3352 = vld [vmem:[#allocation10 + $0x700] sm:$0xff]
    %v3353 = vld [vmem:[#allocation10 + $0x708] sm:$0xff]
    %v3354 = vld [vmem:[#allocation10 + $0x710] sm:$0xff]
    %v3355 = vld [vmem:[#allocation10 + $0x718] sm:$0xff]
    %v3356 = vld [vmem:[#allocation10 + $0x720] sm:$0xff]
    %v3357 = vld [vmem:[#allocation10 + $0x728] sm:$0xff]
    %v3358 = vld [vmem:[#allocation10 + $0x730] sm:$0xff]
    %v3359 = vld [vmem:[#allocation10 + $0x738] sm:$0xff]
    %v3360 = vld [vmem:[#allocation10 + $0x740] sm:$0xff]
    %v3361 = vld [vmem:[#allocation10 + $0x748] sm:$0xff]
    %v3362 = vld [vmem:[#allocation10 + $0x750] sm:$0xff]
    %v3363 = vld [vmem:[#allocation10 + $0x758] sm:$0xff]
    %v3364 = vld [vmem:[#allocation10 + $0x760] sm:$0xff]
    %v3365 = vld [vmem:[#allocation10 + $0x768] sm:$0xff]
    %v3366 = vld [vmem:[#allocation10 + $0x770] sm:$0xff]
    %v3367 = vld [vmem:[#allocation10 + $0x778] sm:$0xff]
    %v3368 = vld [vmem:[#allocation10 + $0x780] sm:$0xff]
    %v3369 = vld [vmem:[#allocation10 + $0x788] sm:$0xff]
    %v3370 = vld [vmem:[#allocation10 + $0x790] sm:$0xff]
    %v3371 = vld [vmem:[#allocation10 + $0x798] sm:$0xff]
    %v3372 = vld [vmem:[#allocation10 + $0x7a0] sm:$0xff]
    %v3373 = vld [vmem:[#allocation10 + $0x7a8] sm:$0xff]
    %v3374 = vld [vmem:[#allocation10 + $0x7b0] sm:$0xff]
    %v3375 = vld [vmem:[#allocation10 + $0x7b8] sm:$0xff]
    %v3376 = vld [vmem:[#allocation10 + $0x7c0] sm:$0xff]
    %v3377 = vld [vmem:[#allocation10 + $0x7c8] sm:$0xff]
    %v3378 = vld [vmem:[#allocation10 + $0x7d0] sm:$0xff]
    %v3379 = vld [vmem:[#allocation10 + $0x7d8] sm:$0xff]
    %v3380 = vld [vmem:[#allocation10 + $0x7e0] sm:$0xff]
    %v3381 = vld [vmem:[#allocation10 + $0x7e8] sm:$0xff]
    %v3382 = vld [vmem:[#allocation10 + $0x7f0] sm:$0xff]
    %v3383 = vld [vmem:[#allocation10 + $0x7f8] sm:$0xff]
    %v3384 = vld [vmem:[%s14] sm:$0xf]
    %v3386 = vlaneseq
    %v3387 = vshrl.u32 %v3386, 7
    %v3388 = vsub.s32 0, %v3387
    %v3389 = vrot.slane %v3384, %v3388
    %v3390 = vlaneseq
    %v3391 = vshrl.u32 %v3390, 7
    %v3392 = vsub.s32 1, %v3391
    %v3393 = vrot.slane %v3384, %v3392
    %v3394 = vlaneseq
    %v3395 = vshrl.u32 %v3394, 7
    %v3396 = vsub.s32 2, %v3395
    %v3397 = vrot.slane %v3384, %v3396
    %v3398 = vlaneseq
    %v3399 = vshrl.u32 %v3398, 7
    %v3400 = vsub.s32 3, %v3399
    %v3401 = vrot.slane %v3384, %v3400
    %3406 = vmatprep.subr.mxu0 %v3129
    %3407 = vmatpush1.msra.mxu0 %v3128
    %3408 = vmatprep.subr.mxu0 %v3133
    %3409 = vmatpush1.msra.mxu0 %v3132
    %3410 = vmatprep.subr.mxu0 %v3137
    %3411 = vmatpush1.msra.mxu0 %v3136
    %3412 = vmatprep.subr.mxu0 %v3141
    %3413 = vmatpush1.msra.mxu0 %v3140
    %3414 = vmatprep.subr.mxu0 %v3145
    %3415 = vmatpush1.msra.mxu0 %v3144
    %3416 = vmatprep.subr.mxu0 %v3149
    %3417 = vmatpush1.msra.mxu0 %v3148
    %3418 = vmatprep.subr.mxu0 %v3153
    %3419 = vmatpush1.msra.mxu0 %v3152
    %3420 = vmatprep.subr.mxu0 %v3157
    %3421 = vmatpush1.msra.mxu0 %v3156
    %3422 = vmatprep.subr.mxu0 %v3161
    %3423 = vmatpush1.msra.mxu0 %v3160
    %3424 = vmatprep.subr.mxu0 %v3165
    %3425 = vmatpush1.msra.mxu0 %v3164
    %3426 = vmatprep.subr.mxu0 %v3169
    %3427 = vmatpush1.msra.mxu0 %v3168
    %3428 = vmatprep.subr.mxu0 %v3173
    %3429 = vmatpush1.msra.mxu0 %v3172
    %3430 = vmatprep.subr.mxu0 %v3177
    %3431 = vmatpush1.msra.mxu0 %v3176
    %3432 = vmatprep.subr.mxu0 %v3181
    %3433 = vmatpush1.msra.mxu0 %v3180
    %3434 = vmatprep.subr.mxu0 %v3185
    %3435 = vmatpush1.msra.mxu0 %v3184
    %3436 = vmatprep.subr.mxu0 %v3189
    %3437 = vmatpush1.msra.mxu0 %v3188
    %3438 = vmatprep.subr.mxu0 %v3193
    %3439 = vmatpush1.msra.mxu0 %v3192
    %3440 = vmatprep.subr.mxu0 %v3197
    %3441 = vmatpush1.msra.mxu0 %v3196
    %3442 = vmatprep.subr.mxu0 %v3201
    %3443 = vmatpush1.msra.mxu0 %v3200
    %3444 = vmatprep.subr.mxu0 %v3205
    %3445 = vmatpush1.msra.mxu0 %v3204
    %3446 = vmatprep.subr.mxu0 %v3209
    %3447 = vmatpush1.msra.mxu0 %v3208
    %3448 = vmatprep.subr.mxu0 %v3213
    %3449 = vmatpush1.msra.mxu0 %v3212
    %3450 = vmatprep.subr.mxu0 %v3217
    %3451 = vmatpush1.msra.mxu0 %v3216
    %3452 = vmatprep.subr.mxu0 %v3221
    %3453 = vmatpush1.msra.mxu0 %v3220
    %3454 = vmatprep.subr.mxu0 %v3225
    %3455 = vmatpush1.msra.mxu0 %v3224
    %3456 = vmatprep.subr.mxu0 %v3229
    %3457 = vmatpush1.msra.mxu0 %v3228
    %3458 = vmatprep.subr.mxu0 %v3233
    %3459 = vmatpush1.msra.mxu0 %v3232
    %3460 = vmatprep.subr.mxu0 %v3237
    %3461 = vmatpush1.msra.mxu0 %v3236
    %3462 = vmatprep.subr.mxu0 %v3241
    %3463 = vmatpush1.msra.mxu0 %v3240
    %3464 = vmatprep.subr.mxu0 %v3245
    %3465 = vmatpush1.msra.mxu0 %v3244
    %3466 = vmatprep.subr.mxu0 %v3249
    %3467 = vmatpush1.msra.mxu0 %v3248
    %3468 = vmatprep.subr.mxu0 %v3253
    %3469 = vmatpush1.msra.mxu0 %v3252
    %3470 = vmatprep.mubr.f32.mxu0 %v3125
    %3471 = vmatmul.mubr.f32.gmra.mrb[0].mxu0 %v3124
    %v3472 = vpop.f32.mrb[0].mxu0
    %v3473 = vadd.f32 %v3389, %v3472
    %v3474 = vpop.f32.mrb[0].mxu0
    %v3475 = vadd.f32 %v3393, %v3474
    %3476 = vdwg.mxu0
    %3477 = vmatprep.subr.mxu0 %v3257
    %3478 = vmatpush1.msra.mxu0 %v3256
    %3479 = vmatprep.subr.mxu0 %v3261
    %3480 = vmatpush1.msra.mxu0 %v3260
    %3481 = vmatprep.subr.mxu0 %v3265
    %3482 = vmatpush1.msra.mxu0 %v3264
    %3483 = vmatprep.subr.mxu0 %v3269
    %3484 = vmatpush1.msra.mxu0 %v3268
    %3485 = vmatprep.subr.mxu0 %v3273
    %3486 = vmatpush1.msra.mxu0 %v3272
    %3487 = vmatprep.subr.mxu0 %v3277
    %3488 = vmatpush1.msra.mxu0 %v3276
    %3489 = vmatprep.subr.mxu0 %v3281
    %3490 = vmatpush1.msra.mxu0 %v3280
    %3491 = vmatprep.subr.mxu0 %v3285
    %3492 = vmatpush1.msra.mxu0 %v3284
    %3493 = vmatprep.subr.mxu0 %v3289
    %3494 = vmatpush1.msra.mxu0 %v3288
    %3495 = vmatprep.subr.mxu0 %v3293
    %3496 = vmatpush1.msra.mxu0 %v3292
    %3497 = vmatprep.subr.mxu0 %v3297
    %3498 = vmatpush1.msra.mxu0 %v3296
    %3499 = vmatprep.subr.mxu0 %v3301
    %3500 = vmatpush1.msra.mxu0 %v3300
    %3501 = vmatprep.subr.mxu0 %v3305
    %3502 = vmatpush1.msra.mxu0 %v3304
    %3503 = vmatprep.subr.mxu0 %v3309
    %3504 = vmatpush1.msra.mxu0 %v3308
    %3505 = vmatprep.subr.mxu0 %v3313
    %3506 = vmatpush1.msra.mxu0 %v3312
    %3507 = vmatprep.subr.mxu0 %v3317
    %3508 = vmatpush1.msra.mxu0 %v3316
    %3509 = vmatprep.subr.mxu0 %v3321
    %3510 = vmatpush1.msra.mxu0 %v3320
    %3511 = vmatprep.subr.mxu0 %v3325
    %3512 = vmatpush1.msra.mxu0 %v3324
    %3513 = vmatprep.subr.mxu0 %v3329
    %3514 = vmatpush1.msra.mxu0 %v3328
    %3515 = vmatprep.subr.mxu0 %v3333
    %3516 = vmatpush1.msra.mxu0 %v3332
    %3517 = vmatprep.subr.mxu0 %v3337
    %3518 = vmatpush1.msra.mxu0 %v3336
    %3519 = vmatprep.subr.mxu0 %v3341
    %3520 = vmatpush1.msra.mxu0 %v3340
    %3521 = vmatprep.subr.mxu0 %v3345
    %3522 = vmatpush1.msra.mxu0 %v3344
    %3523 = vmatprep.subr.mxu0 %v3349
    %3524 = vmatpush1.msra.mxu0 %v3348
    %3525 = vmatprep.subr.mxu0 %v3353
    %3526 = vmatpush1.msra.mxu0 %v3352
    %3527 = vmatprep.subr.mxu0 %v3357
    %3528 = vmatpush1.msra.mxu0 %v3356
    %3529 = vmatprep.subr.mxu0 %v3361
    %3530 = vmatpush1.msra.mxu0 %v3360
    %3531 = vmatprep.subr.mxu0 %v3365
    %3532 = vmatpush1.msra.mxu0 %v3364
    %3533 = vmatprep.subr.mxu0 %v3369
    %3534 = vmatpush1.msra.mxu0 %v3368
    %3535 = vmatprep.subr.mxu0 %v3373
    %3536 = vmatpush1.msra.mxu0 %v3372
    %3537 = vmatprep.subr.mxu0 %v3377
    %3538 = vmatpush1.msra.mxu0 %v3376
    %3539 = vmatprep.subr.mxu0 %v3381
    %3540 = vmatpush1.msra.mxu0 %v3380
    %3541 = vmatprep.mubr.f32.mxu0 %v3127
    %3542 = vmatmul.mubr.f32.gmra.mrb[0].mxu0 %v3126
    %v3543 = vpop.f32.mrb[0].mxu0
    %v3544 = vadd.f32 %v3473, %v3543
    %v3545 = vpop.f32.mrb[0].mxu0
    %v3546 = vadd.f32 %v3475, %v3545
    %3547 = vdwg.mxu0
    %3548 = vmatprep.subr.mxu0 %v3131
    %3549 = vmatpush1.msra.mxu0 %v3130
    %3550 = vmatprep.subr.mxu0 %v3135
    %3551 = vmatpush1.msra.mxu0 %v3134
    %3552 = vmatprep.subr.mxu0 %v3139
    %3553 = vmatpush1.msra.mxu0 %v3138
    %3554 = vmatprep.subr.mxu0 %v3143
    %3555 = vmatpush1.msra.mxu0 %v3142
    %3556 = vmatprep.subr.mxu0 %v3147
    %3557 = vmatpush1.msra.mxu0 %v3146
    %3558 = vmatprep.subr.mxu0 %v3151
    %3559 = vmatpush1.msra.mxu0 %v3150
    %3560 = vmatprep.subr.mxu0 %v3155
    %3561 = vmatpush1.msra.mxu0 %v3154
    %3562 = vmatprep.subr.mxu0 %v3159
    %3563 = vmatpush1.msra.mxu0 %v3158
    %3564 = vmatprep.subr.mxu0 %v3163
    %3565 = vmatpush1.msra.mxu0 %v3162
    %3566 = vmatprep.subr.mxu0 %v3167
    %3567 = vmatpush1.msra.mxu0 %v3166
    %3568 = vmatprep.subr.mxu0 %v3171
    %3569 = vmatpush1.msra.mxu0 %v3170
    %3570 = vmatprep.subr.mxu0 %v3175
    %3571 = vmatpush1.msra.mxu0 %v3174
    %3572 = vmatprep.subr.mxu0 %v3179
    %3573 = vmatpush1.msra.mxu0 %v3178
    %3574 = vmatprep.subr.mxu0 %v3183
    %3575 = vmatpush1.msra.mxu0 %v3182
    %3576 = vmatprep.subr.mxu0 %v3187
    %3577 = vmatpush1.msra.mxu0 %v3186
    %3578 = vmatprep.subr.mxu0 %v3191
    %3579 = vmatpush1.msra.mxu0 %v3190
    %3580 = vmatprep.subr.mxu0 %v3195
    %3581 = vmatpush1.msra.mxu0 %v3194
    %3582 = vmatprep.subr.mxu0 %v3199
    %3583 = vmatpush1.msra.mxu0 %v3198
    %3584 = vmatprep.subr.mxu0 %v3203
    %3585 = vmatpush1.msra.mxu0 %v3202
    %3586 = vmatprep.subr.mxu0 %v3207
    %3587 = vmatpush1.msra.mxu0 %v3206
    %3588 = vmatprep.subr.mxu0 %v3211
    %3589 = vmatpush1.msra.mxu0 %v3210
    %3590 = vmatprep.subr.mxu0 %v3215
    %3591 = vmatpush1.msra.mxu0 %v3214
    %3592 = vmatprep.subr.mxu0 %v3219
    %3593 = vmatpush1.msra.mxu0 %v3218
    %3594 = vmatprep.subr.mxu0 %v3223
    %3595 = vmatpush1.msra.mxu0 %v3222
    %3596 = vmatprep.subr.mxu0 %v3227
    %3597 = vmatpush1.msra.mxu0 %v3226
    %3598 = vmatprep.subr.mxu0 %v3231
    %3599 = vmatpush1.msra.mxu0 %v3230
    %3600 = vmatprep.subr.mxu0 %v3235
    %3601 = vmatpush1.msra.mxu0 %v3234
    %3602 = vmatprep.subr.mxu0 %v3239
    %3603 = vmatpush1.msra.mxu0 %v3238
    %3604 = vmatprep.subr.mxu0 %v3243
    %3605 = vmatpush1.msra.mxu0 %v3242
    %3606 = vmatprep.subr.mxu0 %v3247
    %3607 = vmatpush1.msra.mxu0 %v3246
    %3608 = vmatprep.subr.mxu0 %v3251
    %3609 = vmatpush1.msra.mxu0 %v3250
    %3610 = vmatprep.subr.mxu0 %v3255
    %3611 = vmatpush1.msra.mxu0 %v3254
    %3612 = vmatprep.mubr.f32.mxu0 %v3125
    %3613 = vmatmul.mubr.f32.gmra.mrb[0].mxu0 %v3124
    %v3614 = vpop.f32.mrb[0].mxu0
    %v3615 = vadd.f32 %v3397, %v3614
    %v3616 = vpop.f32.mrb[0].mxu0
    %v3617 = vadd.f32 %v3401, %v3616
    %3618 = vdwg.mxu0
    %3619 = vmatprep.subr.mxu0 %v3259
    %3620 = vmatpush1.msra.mxu0 %v3258
    %3621 = vmatprep.subr.mxu0 %v3263
    %3622 = vmatpush1.msra.mxu0 %v3262
    %3623 = vmatprep.subr.mxu0 %v3267
    %3624 = vmatpush1.msra.mxu0 %v3266
    %3625 = vmatprep.subr.mxu0 %v3271
    %3626 = vmatpush1.msra.mxu0 %v3270
    %3627 = vmatprep.subr.mxu0 %v3275
    %3628 = vmatpush1.msra.mxu0 %v3274
    %3629 = vmatprep.subr.mxu0 %v3279
    %3630 = vmatpush1.msra.mxu0 %v3278
    %3631 = vmatprep.subr.mxu0 %v3283
    %3632 = vmatpush1.msra.mxu0 %v3282
    %3633 = vmatprep.subr.mxu0 %v3287
    %3634 = vmatpush1.msra.mxu0 %v3286
    %3635 = vmatprep.subr.mxu0 %v3291
    %3636 = vmatpush1.msra.mxu0 %v3290
    %3637 = vmatprep.subr.mxu0 %v3295
    %3638 = vmatpush1.msra.mxu0 %v3294
    %3639 = vmatprep.subr.mxu0 %v3299
    %3640 = vmatpush1.msra.mxu0 %v3298
    %3641 = vmatprep.subr.mxu0 %v3303
    %3642 = vmatpush1.msra.mxu0 %v3302
    %3643 = vmatprep.subr.mxu0 %v3307
    %3644 = vmatpush1.msra.mxu0 %v3306
    %3645 = vmatprep.subr.mxu0 %v3311
    %3646 = vmatpush1.msra.mxu0 %v3310
    %3647 = vmatprep.subr.mxu0 %v3315
    %3648 = vmatpush1.msra.mxu0 %v3314
    %3649 = vmatprep.subr.mxu0 %v3319
    %3650 = vmatpush1.msra.mxu0 %v3318
    %3651 = vmatprep.subr.mxu0 %v3323
    %3652 = vmatpush1.msra.mxu0 %v3322
    %3653 = vmatprep.subr.mxu0 %v3327
    %3654 = vmatpush1.msra.mxu0 %v3326
    %3655 = vmatprep.subr.mxu0 %v3331
    %3656 = vmatpush1.msra.mxu0 %v3330
    %3657 = vmatprep.subr.mxu0 %v3335
    %3658 = vmatpush1.msra.mxu0 %v3334
    %3659 = vmatprep.subr.mxu0 %v3339
    %3660 = vmatpush1.msra.mxu0 %v3338
    %3661 = vmatprep.subr.mxu0 %v3343
    %3662 = vmatpush1.msra.mxu0 %v3342
    %3663 = vmatprep.subr.mxu0 %v3347
    %3664 = vmatpush1.msra.mxu0 %v3346
    %3665 = vmatprep.subr.mxu0 %v3351
    %3666 = vmatpush1.msra.mxu0 %v3350
    %3667 = vmatprep.subr.mxu0 %v3355
    %3668 = vmatpush1.msra.mxu0 %v3354
    %3669 = vmatprep.subr.mxu0 %v3359
    %3670 = vmatpush1.msra.mxu0 %v3358
    %3671 = vmatprep.subr.mxu0 %v3363
    %3672 = vmatpush1.msra.mxu0 %v3362
    %3673 = vmatprep.subr.mxu0 %v3367
    %3674 = vmatpush1.msra.mxu0 %v3366
    %3675 = vmatprep.subr.mxu0 %v3371
    %3676 = vmatpush1.msra.mxu0 %v3370
    %3677 = vmatprep.subr.mxu0 %v3375
    %3678 = vmatpush1.msra.mxu0 %v3374
    %3679 = vmatprep.subr.mxu0 %v3379
    %3680 = vmatpush1.msra.mxu0 %v3378
    %3681 = vmatprep.subr.mxu0 %v3383
    %3682 = vmatpush1.msra.mxu0 %v3382
    %3683 = vmatprep.mubr.f32.mxu0 %v3127
    %3684 = vmatmul.mubr.f32.gmra.mrb[0].mxu0 %v3126
    %v3685 = vpop.f32.mrb[0].mxu0
    %v3686 = vadd.f32 %v3615, %v3685
    %v3687 = vpop.f32.mrb[0].mxu0
    %v3688 = vadd.f32 %v3617, %v3687
    %3689 = vdwg.mxu0
    %v3690 = vmul.f32 %v3544, 0.5
    %v3691 = vmul.f32 %v3546, 0.5
    %v3692 = vmul.f32 %v3686, 0.5
    %v3693 = vmul.f32 %v3688, 0.5
    %v3694 = vmul.f32 %v3544, 0.70710677
    %v3695 = vmul.f32 %v3546, 0.70710677
    %v3696 = vmul.f32 %v3686, 0.70710677
    %v3697 = vmul.f32 %v3688, 0.70710677
    %v3698 = vand.u32 2147483647, %v3694
    %v3699 = vand.u32 2147483647, %v3695
    %v3700 = vand.u32 2147483647, %v3696
    %v3701 = vand.u32 2147483647, %v3697
    %v3702 = vmul.f32 %v3698, 0.3275911
    %v3703 = vmul.f32 %v3699, 0.3275911
    %v3704 = vmul.f32 %v3700, 0.3275911
    %v3705 = vmul.f32 %v3701, 0.3275911
    %v3706 = vadd.f32 %v3702, 1.0
    %v3707 = vadd.f32 %v3703, 1.0
    %v3708 = vadd.f32 %v3704, 1.0
    %v3709 = vadd.f32 %v3705, 1.0
    %v3710 = vrcp.pop %v3706
    %v3711 = vmul.f32 1.0, %v3710
    %v3712 = vrcp.pop %v3707
    %v3713 = vmul.f32 1.0, %v3712
    %v3714 = vrcp.pop %v3708
    %v3715 = vmul.f32 1.0, %v3714
    %v3716 = vrcp.pop %v3709
    %v3717 = vmul.f32 1.0, %v3716
    %v3718 = vmul.f32 %v3711, 1.0614054
    %v3719 = vmul.f32 %v3713, 1.0614054
    %v3720 = vmul.f32 %v3715, 1.0614054
    %v3721 = vmul.f32 %v3717, 1.0614054
    %v3722 = vadd.f32 %v3718, -1.4531521
    %v3723 = vadd.f32 %v3719, -1.4531521
    %v3724 = vadd.f32 %v3720, -1.4531521
    %v3725 = vadd.f32 %v3721, -1.4531521
    %v3726 = vmul.f32 %v3722, %v3711
    %v3727 = vmul.f32 %v3723, %v3713
    %v3728 = vmul.f32 %v3724, %v3715
    %v3729 = vmul.f32 %v3725, %v3717
    %v3730 = vadd.f32 %v3726, 1.4214138
    %v3731 = vadd.f32 %v3727, 1.4214138
    %v3732 = vadd.f32 %v3728, 1.4214138
    %v3733 = vadd.f32 %v3729, 1.4214138
    %v3734 = vmul.f32 %v3730, %v3711
    %v3735 = vmul.f32 %v3731, %v3713
    %v3736 = vmul.f32 %v3732, %v3715
    %v3737 = vmul.f32 %v3733, %v3717
    %v3738 = vadd.f32 %v3734, -0.28449672
    %v3739 = vadd.f32 %v3735, -0.28449672
    %v3740 = vadd.f32 %v3736, -0.28449672
    %v3741 = vadd.f32 %v3737, -0.28449672
    %v3742 = vmul.f32 %v3738, %v3711
    %v3743 = vmul.f32 %v3739, %v3713
    %v3744 = vmul.f32 %v3740, %v3715
    %v3745 = vmul.f32 %v3741, %v3717
    %v3746 = vadd.f32 %v3742, 0.2548296
    %v3747 = vadd.f32 %v3743, 0.2548296
    %v3748 = vadd.f32 %v3744, 0.2548296
    %v3749 = vadd.f32 %v3745, 0.2548296
    %v3750 = vmul.f32 %v3746, %v3711
    %v3751 = vmul.f32 %v3747, %v3713
    %v3752 = vmul.f32 %v3748, %v3715
    %v3753 = vmul.f32 %v3749, %v3717
    %v3754 = vsub.f32 0.0, %v3698
    %v3755 = vsub.f32 0.0, %v3699
    %v3756 = vsub.f32 0.0, %v3700
    %v3757 = vsub.f32 0.0, %v3701
    %v3758 = vmul.f32 %v3754, %v3698
    %v3759 = vmul.f32 %v3755, %v3699
    %v3760 = vmul.f32 %v3756, %v3700
    %v3761 = vmul.f32 %v3757, %v3701
    %v3762 = vmul.f32 %v3758, 1.442695
    %v3763 = vpow.pop %v3762
    %v3764 = vmul.f32 %v3759, 1.442695
    %v3765 = vpow.pop %v3764
    %v3766 = vmul.f32 %v3760, 1.442695
    %v3767 = vpow.pop %v3766
    %v3768 = vmul.f32 %v3761, 1.442695
    %v3769 = vpow.pop %v3768
    %v3770 = vmul.f32 %v3750, %v3763
    %v3771 = vmul.f32 %v3751, %v3765
    %v3772 = vmul.f32 %v3752, %v3767
    %v3773 = vmul.f32 %v3753, %v3769
    %v3774 = vsub.f32 1.0, %v3770
    %v3775 = vsub.f32 1.0, %v3771
    %v3776 = vsub.f32 1.0, %v3772
    %v3777 = vsub.f32 1.0, %v3773
    %vm3778 = vcmp.ge.f32.partialorder %v3694, 0.0
    %vm3779 = vcmp.ge.f32.partialorder %v3695, 0.0
    %vm3780 = vcmp.ge.f32.partialorder %v3696, 0.0
    %vm3781 = vcmp.ge.f32.partialorder %v3697, 0.0
    %v3782 = vsub.f32 0.0, %v3774
    %v3783 = vsub.f32 0.0, %v3775
    %v3784 = vsub.f32 0.0, %v3776
    %v3785 = vsub.f32 0.0, %v3777
    %v3786 = vsel %vm3778, %v3774, %v3782
    %v3787 = vsel %vm3779, %v3775, %v3783
    %v3788 = vsel %vm3780, %v3776, %v3784
    %v3789 = vsel %vm3781, %v3777, %v3785
    %v3790 = vadd.f32 %v3786, 1.0
    %v3791 = vadd.f32 %v3787, 1.0
    %v3792 = vadd.f32 %v3788, 1.0
    %v3793 = vadd.f32 %v3789, 1.0
    %v3794 = vmul.f32 %v3690, %v3790
    %v3795 = vmul.f32 %v3691, %v3791
    %v3796 = vmul.f32 %v3692, %v3792
    %v3797 = vmul.f32 %v3693, %v3793
    %v3798 = vld [vmem:[#allocation11] sm:$0xff]
    %v3799 = vld [vmem:[#allocation11 + $0x8] sm:$0xff]
    %v3800 = vld [vmem:[#allocation11 + $0x10] sm:$0xff]
    %v3801 = vld [vmem:[#allocation11 + $0x18] sm:$0xff]
    %v3802 = vld [vmem:[#allocation11 + $0x20] sm:$0xff]
    %v3803 = vld [vmem:[#allocation11 + $0x28] sm:$0xff]
    %v3804 = vld [vmem:[#allocation11 + $0x30] sm:$0xff]
    %v3805 = vld [vmem:[#allocation11 + $0x38] sm:$0xff]
    %v3806 = vld [vmem:[#allocation11 + $0x40] sm:$0xff]
    %v3807 = vld [vmem:[#allocation11 + $0x48] sm:$0xff]
    %v3808 = vld [vmem:[#allocation11 + $0x50] sm:$0xff]
    %v3809 = vld [vmem:[#allocation11 + $0x58] sm:$0xff]
    %v3810 = vld [vmem:[#allocation11 + $0x60] sm:$0xff]
    %v3811 = vld [vmem:[#allocation11 + $0x68] sm:$0xff]
    %v3812 = vld [vmem:[#allocation11 + $0x70] sm:$0xff]
    %v3813 = vld [vmem:[#allocation11 + $0x78] sm:$0xff]
    %v3814 = vld [vmem:[#allocation11 + $0x80] sm:$0xff]
    %v3815 = vld [vmem:[#allocation11 + $0x88] sm:$0xff]
    %v3816 = vld [vmem:[#allocation11 + $0x90] sm:$0xff]
    %v3817 = vld [vmem:[#allocation11 + $0x98] sm:$0xff]
    %v3818 = vld [vmem:[#allocation11 + $0xa0] sm:$0xff]
    %v3819 = vld [vmem:[#allocation11 + $0xa8] sm:$0xff]
    %v3820 = vld [vmem:[#allocation11 + $0xb0] sm:$0xff]
    %v3821 = vld [vmem:[#allocation11 + $0xb8] sm:$0xff]
    %v3822 = vld [vmem:[#allocation11 + $0xc0] sm:$0xff]
    %v3823 = vld [vmem:[#allocation11 + $0xc8] sm:$0xff]
    %v3824 = vld [vmem:[#allocation11 + $0xd0] sm:$0xff]
    %v3825 = vld [vmem:[#allocation11 + $0xd8] sm:$0xff]
    %v3826 = vld [vmem:[#allocation11 + $0xe0] sm:$0xff]
    %v3827 = vld [vmem:[#allocation11 + $0xe8] sm:$0xff]
    %v3828 = vld [vmem:[#allocation11 + $0xf0] sm:$0xff]
    %v3829 = vld [vmem:[#allocation11 + $0xf8] sm:$0xff]
    %v3830 = vld [vmem:[#allocation11 + $0x100] sm:$0xff]
    %v3831 = vld [vmem:[#allocation11 + $0x108] sm:$0xff]
    %v3832 = vld [vmem:[#allocation11 + $0x110] sm:$0xff]
    %v3833 = vld [vmem:[#allocation11 + $0x118] sm:$0xff]
    %v3834 = vld [vmem:[#allocation11 + $0x120] sm:$0xff]
    %v3835 = vld [vmem:[#allocation11 + $0x128] sm:$0xff]
    %v3836 = vld [vmem:[#allocation11 + $0x130] sm:$0xff]
    %v3837 = vld [vmem:[#allocation11 + $0x138] sm:$0xff]
    %v3838 = vld [vmem:[#allocation11 + $0x140] sm:$0xff]
    %v3839 = vld [vmem:[#allocation11 + $0x148] sm:$0xff]
    %v3840 = vld [vmem:[#allocation11 + $0x150] sm:$0xff]
    %v3841 = vld [vmem:[#allocation11 + $0x158] sm:$0xff]
    %v3842 = vld [vmem:[#allocation11 + $0x160] sm:$0xff]
    %v3843 = vld [vmem:[#allocation11 + $0x168] sm:$0xff]
    %v3844 = vld [vmem:[#allocation11 + $0x170] sm:$0xff]
    %v3845 = vld [vmem:[#allocation11 + $0x178] sm:$0xff]
    %v3846 = vld [vmem:[#allocation11 + $0x180] sm:$0xff]
    %v3847 = vld [vmem:[#allocation11 + $0x188] sm:$0xff]
    %v3848 = vld [vmem:[#allocation11 + $0x190] sm:$0xff]
    %v3849 = vld [vmem:[#allocation11 + $0x198] sm:$0xff]
    %v3850 = vld [vmem:[#allocation11 + $0x1a0] sm:$0xff]
    %v3851 = vld [vmem:[#allocation11 + $0x1a8] sm:$0xff]
    %v3852 = vld [vmem:[#allocation11 + $0x1b0] sm:$0xff]
    %v3853 = vld [vmem:[#allocation11 + $0x1b8] sm:$0xff]
    %v3854 = vld [vmem:[#allocation11 + $0x1c0] sm:$0xff]
    %v3855 = vld [vmem:[#allocation11 + $0x1c8] sm:$0xff]
    %v3856 = vld [vmem:[#allocation11 + $0x1d0] sm:$0xff]
    %v3857 = vld [vmem:[#allocation11 + $0x1d8] sm:$0xff]
    %v3858 = vld [vmem:[#allocation11 + $0x1e0] sm:$0xff]
    %v3859 = vld [vmem:[#allocation11 + $0x1e8] sm:$0xff]
    %v3860 = vld [vmem:[#allocation11 + $0x1f0] sm:$0xff]
    %v3861 = vld [vmem:[#allocation11 + $0x1f8] sm:$0xff]
    %v3862 = vld [vmem:[#allocation11 + $0x200] sm:$0xff]
    %v3863 = vld [vmem:[#allocation11 + $0x208] sm:$0xff]
    %v3864 = vld [vmem:[#allocation11 + $0x210] sm:$0xff]
    %v3865 = vld [vmem:[#allocation11 + $0x218] sm:$0xff]
    %v3866 = vld [vmem:[#allocation11 + $0x220] sm:$0xff]
    %v3867 = vld [vmem:[#allocation11 + $0x228] sm:$0xff]
    %v3868 = vld [vmem:[#allocation11 + $0x230] sm:$0xff]
    %v3869 = vld [vmem:[#allocation11 + $0x238] sm:$0xff]
    %v3870 = vld [vmem:[#allocation11 + $0x240] sm:$0xff]
    %v3871 = vld [vmem:[#allocation11 + $0x248] sm:$0xff]
    %v3872 = vld [vmem:[#allocation11 + $0x250] sm:$0xff]
    %v3873 = vld [vmem:[#allocation11 + $0x258] sm:$0xff]
    %v3874 = vld [vmem:[#allocation11 + $0x260] sm:$0xff]
    %v3875 = vld [vmem:[#allocation11 + $0x268] sm:$0xff]
    %v3876 = vld [vmem:[#allocation11 + $0x270] sm:$0xff]
    %v3877 = vld [vmem:[#allocation11 + $0x278] sm:$0xff]
    %v3878 = vld [vmem:[#allocation11 + $0x280] sm:$0xff]
    %v3879 = vld [vmem:[#allocation11 + $0x288] sm:$0xff]
    %v3880 = vld [vmem:[#allocation11 + $0x290] sm:$0xff]
    %v3881 = vld [vmem:[#allocation11 + $0x298] sm:$0xff]
    %v3882 = vld [vmem:[#allocation11 + $0x2a0] sm:$0xff]
    %v3883 = vld [vmem:[#allocation11 + $0x2a8] sm:$0xff]
    %v3884 = vld [vmem:[#allocation11 + $0x2b0] sm:$0xff]
    %v3885 = vld [vmem:[#allocation11 + $0x2b8] sm:$0xff]
    %v3886 = vld [vmem:[#allocation11 + $0x2c0] sm:$0xff]
    %v3887 = vld [vmem:[#allocation11 + $0x2c8] sm:$0xff]
    %v3888 = vld [vmem:[#allocation11 + $0x2d0] sm:$0xff]
    %v3889 = vld [vmem:[#allocation11 + $0x2d8] sm:$0xff]
    %v3890 = vld [vmem:[#allocation11 + $0x2e0] sm:$0xff]
    %v3891 = vld [vmem:[#allocation11 + $0x2e8] sm:$0xff]
    %v3892 = vld [vmem:[#allocation11 + $0x2f0] sm:$0xff]
    %v3893 = vld [vmem:[#allocation11 + $0x2f8] sm:$0xff]
    %v3894 = vld [vmem:[#allocation11 + $0x300] sm:$0xff]
    %v3895 = vld [vmem:[#allocation11 + $0x308] sm:$0xff]
    %v3896 = vld [vmem:[#allocation11 + $0x310] sm:$0xff]
    %v3897 = vld [vmem:[#allocation11 + $0x318] sm:$0xff]
    %v3898 = vld [vmem:[#allocation11 + $0x320] sm:$0xff]
    %v3899 = vld [vmem:[#allocation11 + $0x328] sm:$0xff]
    %v3900 = vld [vmem:[#allocation11 + $0x330] sm:$0xff]
    %v3901 = vld [vmem:[#allocation11 + $0x338] sm:$0xff]
    %v3902 = vld [vmem:[#allocation11 + $0x340] sm:$0xff]
    %v3903 = vld [vmem:[#allocation11 + $0x348] sm:$0xff]
    %v3904 = vld [vmem:[#allocation11 + $0x350] sm:$0xff]
    %v3905 = vld [vmem:[#allocation11 + $0x358] sm:$0xff]
    %v3906 = vld [vmem:[#allocation11 + $0x360] sm:$0xff]
    %v3907 = vld [vmem:[#allocation11 + $0x368] sm:$0xff]
    %v3908 = vld [vmem:[#allocation11 + $0x370] sm:$0xff]
    %v3909 = vld [vmem:[#allocation11 + $0x378] sm:$0xff]
    %v3910 = vld [vmem:[#allocation11 + $0x380] sm:$0xff]
    %v3911 = vld [vmem:[#allocation11 + $0x388] sm:$0xff]
    %v3912 = vld [vmem:[#allocation11 + $0x390] sm:$0xff]
    %v3913 = vld [vmem:[#allocation11 + $0x398] sm:$0xff]
    %v3914 = vld [vmem:[#allocation11 + $0x3a0] sm:$0xff]
    %v3915 = vld [vmem:[#allocation11 + $0x3a8] sm:$0xff]
    %v3916 = vld [vmem:[#allocation11 + $0x3b0] sm:$0xff]
    %v3917 = vld [vmem:[#allocation11 + $0x3b8] sm:$0xff]
    %v3918 = vld [vmem:[#allocation11 + $0x3c0] sm:$0xff]
    %v3919 = vld [vmem:[#allocation11 + $0x3c8] sm:$0xff]
    %v3920 = vld [vmem:[#allocation11 + $0x3d0] sm:$0xff]
    %v3921 = vld [vmem:[#allocation11 + $0x3d8] sm:$0xff]
    %v3922 = vld [vmem:[#allocation11 + $0x3e0] sm:$0xff]
    %v3923 = vld [vmem:[#allocation11 + $0x3e8] sm:$0xff]
    %v3924 = vld [vmem:[#allocation11 + $0x3f0] sm:$0xff]
    %v3925 = vld [vmem:[#allocation11 + $0x3f8] sm:$0xff]
    %v3926 = vld [vmem:[#allocation11 + $0x400] sm:$0xff]
    %v3927 = vld [vmem:[#allocation11 + $0x408] sm:$0xff]
    %v3928 = vld [vmem:[#allocation11 + $0x410] sm:$0xff]
    %v3929 = vld [vmem:[#allocation11 + $0x418] sm:$0xff]
    %v3930 = vld [vmem:[#allocation11 + $0x420] sm:$0xff]
    %v3931 = vld [vmem:[#allocation11 + $0x428] sm:$0xff]
    %v3932 = vld [vmem:[#allocation11 + $0x430] sm:$0xff]
    %v3933 = vld [vmem:[#allocation11 + $0x438] sm:$0xff]
    %v3934 = vld [vmem:[#allocation11 + $0x440] sm:$0xff]
    %v3935 = vld [vmem:[#allocation11 + $0x448] sm:$0xff]
    %v3936 = vld [vmem:[#allocation11 + $0x450] sm:$0xff]
    %v3937 = vld [vmem:[#allocation11 + $0x458] sm:$0xff]
    %v3938 = vld [vmem:[#allocation11 + $0x460] sm:$0xff]
    %v3939 = vld [vmem:[#allocation11 + $0x468] sm:$0xff]
    %v3940 = vld [vmem:[#allocation11 + $0x470] sm:$0xff]
    %v3941 = vld [vmem:[#allocation11 + $0x478] sm:$0xff]
    %v3942 = vld [vmem:[#allocation11 + $0x480] sm:$0xff]
    %v3943 = vld [vmem:[#allocation11 + $0x488] sm:$0xff]
    %v3944 = vld [vmem:[#allocation11 + $0x490] sm:$0xff]
    %v3945 = vld [vmem:[#allocation11 + $0x498] sm:$0xff]
    %v3946 = vld [vmem:[#allocation11 + $0x4a0] sm:$0xff]
    %v3947 = vld [vmem:[#allocation11 + $0x4a8] sm:$0xff]
    %v3948 = vld [vmem:[#allocation11 + $0x4b0] sm:$0xff]
    %v3949 = vld [vmem:[#allocation11 + $0x4b8] sm:$0xff]
    %v3950 = vld [vmem:[#allocation11 + $0x4c0] sm:$0xff]
    %v3951 = vld [vmem:[#allocation11 + $0x4c8] sm:$0xff]
    %v3952 = vld [vmem:[#allocation11 + $0x4d0] sm:$0xff]
    %v3953 = vld [vmem:[#allocation11 + $0x4d8] sm:$0xff]
    %v3954 = vld [vmem:[#allocation11 + $0x4e0] sm:$0xff]
    %v3955 = vld [vmem:[#allocation11 + $0x4e8] sm:$0xff]
    %v3956 = vld [vmem:[#allocation11 + $0x4f0] sm:$0xff]
    %v3957 = vld [vmem:[#allocation11 + $0x4f8] sm:$0xff]
    %v3958 = vld [vmem:[#allocation11 + $0x500] sm:$0xff]
    %v3959 = vld [vmem:[#allocation11 + $0x508] sm:$0xff]
    %v3960 = vld [vmem:[#allocation11 + $0x510] sm:$0xff]
    %v3961 = vld [vmem:[#allocation11 + $0x518] sm:$0xff]
    %v3962 = vld [vmem:[#allocation11 + $0x520] sm:$0xff]
    %v3963 = vld [vmem:[#allocation11 + $0x528] sm:$0xff]
    %v3964 = vld [vmem:[#allocation11 + $0x530] sm:$0xff]
    %v3965 = vld [vmem:[#allocation11 + $0x538] sm:$0xff]
    %v3966 = vld [vmem:[#allocation11 + $0x540] sm:$0xff]
    %v3967 = vld [vmem:[#allocation11 + $0x548] sm:$0xff]
    %v3968 = vld [vmem:[#allocation11 + $0x550] sm:$0xff]
    %v3969 = vld [vmem:[#allocation11 + $0x558] sm:$0xff]
    %v3970 = vld [vmem:[#allocation11 + $0x560] sm:$0xff]
    %v3971 = vld [vmem:[#allocation11 + $0x568] sm:$0xff]
    %v3972 = vld [vmem:[#allocation11 + $0x570] sm:$0xff]
    %v3973 = vld [vmem:[#allocation11 + $0x578] sm:$0xff]
    %v3974 = vld [vmem:[#allocation11 + $0x580] sm:$0xff]
    %v3975 = vld [vmem:[#allocation11 + $0x588] sm:$0xff]
    %v3976 = vld [vmem:[#allocation11 + $0x590] sm:$0xff]
    %v3977 = vld [vmem:[#allocation11 + $0x598] sm:$0xff]
    %v3978 = vld [vmem:[#allocation11 + $0x5a0] sm:$0xff]
    %v3979 = vld [vmem:[#allocation11 + $0x5a8] sm:$0xff]
    %v3980 = vld [vmem:[#allocation11 + $0x5b0] sm:$0xff]
    %v3981 = vld [vmem:[#allocation11 + $0x5b8] sm:$0xff]
    %v3982 = vld [vmem:[#allocation11 + $0x5c0] sm:$0xff]
    %v3983 = vld [vmem:[#allocation11 + $0x5c8] sm:$0xff]
    %v3984 = vld [vmem:[#allocation11 + $0x5d0] sm:$0xff]
    %v3985 = vld [vmem:[#allocation11 + $0x5d8] sm:$0xff]
    %v3986 = vld [vmem:[#allocation11 + $0x5e0] sm:$0xff]
    %v3987 = vld [vmem:[#allocation11 + $0x5e8] sm:$0xff]
    %v3988 = vld [vmem:[#allocation11 + $0x5f0] sm:$0xff]
    %v3989 = vld [vmem:[#allocation11 + $0x5f8] sm:$0xff]
    %v3990 = vld [vmem:[#allocation11 + $0x600] sm:$0xff]
    %v3991 = vld [vmem:[#allocation11 + $0x608] sm:$0xff]
    %v3992 = vld [vmem:[#allocation11 + $0x610] sm:$0xff]
    %v3993 = vld [vmem:[#allocation11 + $0x618] sm:$0xff]
    %v3994 = vld [vmem:[#allocation11 + $0x620] sm:$0xff]
    %v3995 = vld [vmem:[#allocation11 + $0x628] sm:$0xff]
    %v3996 = vld [vmem:[#allocation11 + $0x630] sm:$0xff]
    %v3997 = vld [vmem:[#allocation11 + $0x638] sm:$0xff]
    %v3998 = vld [vmem:[#allocation11 + $0x640] sm:$0xff]
    %v3999 = vld [vmem:[#allocation11 + $0x648] sm:$0xff]
    %v4000 = vld [vmem:[#allocation11 + $0x650] sm:$0xff]
    %v4001 = vld [vmem:[#allocation11 + $0x658] sm:$0xff]
    %v4002 = vld [vmem:[#allocation11 + $0x660] sm:$0xff]
    %v4003 = vld [vmem:[#allocation11 + $0x668] sm:$0xff]
    %v4004 = vld [vmem:[#allocation11 + $0x670] sm:$0xff]
    %v4005 = vld [vmem:[#allocation11 + $0x678] sm:$0xff]
    %v4006 = vld [vmem:[#allocation11 + $0x680] sm:$0xff]
    %v4007 = vld [vmem:[#allocation11 + $0x688] sm:$0xff]
    %v4008 = vld [vmem:[#allocation11 + $0x690] sm:$0xff]
    %v4009 = vld [vmem:[#allocation11 + $0x698] sm:$0xff]
    %v4010 = vld [vmem:[#allocation11 + $0x6a0] sm:$0xff]
    %v4011 = vld [vmem:[#allocation11 + $0x6a8] sm:$0xff]
    %v4012 = vld [vmem:[#allocation11 + $0x6b0] sm:$0xff]
    %v4013 = vld [vmem:[#allocation11 + $0x6b8] sm:$0xff]
    %v4014 = vld [vmem:[#allocation11 + $0x6c0] sm:$0xff]
    %v4015 = vld [vmem:[#allocation11 + $0x6c8] sm:$0xff]
    %v4016 = vld [vmem:[#allocation11 + $0x6d0] sm:$0xff]
    %v4017 = vld [vmem:[#allocation11 + $0x6d8] sm:$0xff]
    %v4018 = vld [vmem:[#allocation11 + $0x6e0] sm:$0xff]
    %v4019 = vld [vmem:[#allocation11 + $0x6e8] sm:$0xff]
    %v4020 = vld [vmem:[#allocation11 + $0x6f0] sm:$0xff]
    %v4021 = vld [vmem:[#allocation11 + $0x6f8] sm:$0xff]
    %v4022 = vld [vmem:[#allocation11 + $0x700] sm:$0xff]
    %v4023 = vld [vmem:[#allocation11 + $0x708] sm:$0xff]
    %v4024 = vld [vmem:[#allocation11 + $0x710] sm:$0xff]
    %v4025 = vld [vmem:[#allocation11 + $0x718] sm:$0xff]
    %v4026 = vld [vmem:[#allocation11 + $0x720] sm:$0xff]
    %v4027 = vld [vmem:[#allocation11 + $0x728] sm:$0xff]
    %v4028 = vld [vmem:[#allocation11 + $0x730] sm:$0xff]
    %v4029 = vld [vmem:[#allocation11 + $0x738] sm:$0xff]
    %v4030 = vld [vmem:[#allocation11 + $0x740] sm:$0xff]
    %v4031 = vld [vmem:[#allocation11 + $0x748] sm:$0xff]
    %v4032 = vld [vmem:[#allocation11 + $0x750] sm:$0xff]
    %v4033 = vld [vmem:[#allocation11 + $0x758] sm:$0xff]
    %v4034 = vld [vmem:[#allocation11 + $0x760] sm:$0xff]
    %v4035 = vld [vmem:[#allocation11 + $0x768] sm:$0xff]
    %v4036 = vld [vmem:[#allocation11 + $0x770] sm:$0xff]
    %v4037 = vld [vmem:[#allocation11 + $0x778] sm:$0xff]
    %v4038 = vld [vmem:[#allocation11 + $0x780] sm:$0xff]
    %v4039 = vld [vmem:[#allocation11 + $0x788] sm:$0xff]
    %v4040 = vld [vmem:[#allocation11 + $0x790] sm:$0xff]
    %v4041 = vld [vmem:[#allocation11 + $0x798] sm:$0xff]
    %v4042 = vld [vmem:[#allocation11 + $0x7a0] sm:$0xff]
    %v4043 = vld [vmem:[#allocation11 + $0x7a8] sm:$0xff]
    %v4044 = vld [vmem:[#allocation11 + $0x7b0] sm:$0xff]
    %v4045 = vld [vmem:[#allocation11 + $0x7b8] sm:$0xff]
    %v4046 = vld [vmem:[#allocation11 + $0x7c0] sm:$0xff]
    %v4047 = vld [vmem:[#allocation11 + $0x7c8] sm:$0xff]
    %v4048 = vld [vmem:[#allocation11 + $0x7d0] sm:$0xff]
    %v4049 = vld [vmem:[#allocation11 + $0x7d8] sm:$0xff]
    %v4050 = vld [vmem:[#allocation11 + $0x7e0] sm:$0xff]
    %v4051 = vld [vmem:[#allocation11 + $0x7e8] sm:$0xff]
    %v4052 = vld [vmem:[#allocation11 + $0x7f0] sm:$0xff]
    %v4053 = vld [vmem:[#allocation11 + $0x7f8] sm:$0xff]
    %v4054 = vld [vmem:[%s15] sm:$0xf]
    %v4056 = vlaneseq
    %v4057 = vshrl.u32 %v4056, 7
    %v4058 = vsub.s32 0, %v4057
    %v4059 = vrot.slane %v4054, %v4058
    %v4060 = vlaneseq
    %v4061 = vshrl.u32 %v4060, 7
    %v4062 = vsub.s32 1, %v4061
    %v4063 = vrot.slane %v4054, %v4062
    %v4064 = vlaneseq
    %v4065 = vshrl.u32 %v4064, 7
    %v4066 = vsub.s32 2, %v4065
    %v4067 = vrot.slane %v4054, %v4066
    %v4068 = vlaneseq
    %v4069 = vshrl.u32 %v4068, 7
    %v4070 = vsub.s32 3, %v4069
    %v4071 = vrot.slane %v4054, %v4070
    %4076 = vmatprep.subr.mxu0 %v3799
    %4077 = vmatpush1.msra.mxu0 %v3798
    %4078 = vmatprep.subr.mxu0 %v3803
    %4079 = vmatpush1.msra.mxu0 %v3802
    %4080 = vmatprep.subr.mxu0 %v3807
    %4081 = vmatpush1.msra.mxu0 %v3806
    %4082 = vmatprep.subr.mxu0 %v3811
    %4083 = vmatpush1.msra.mxu0 %v3810
    %4084 = vmatprep.subr.mxu0 %v3815
    %4085 = vmatpush1.msra.mxu0 %v3814
    %4086 = vmatprep.subr.mxu0 %v3819
    %4087 = vmatpush1.msra.mxu0 %v3818
    %4088 = vmatprep.subr.mxu0 %v3823
    %4089 = vmatpush1.msra.mxu0 %v3822
    %4090 = vmatprep.subr.mxu0 %v3827
    %4091 = vmatpush1.msra.mxu0 %v3826
    %4092 = vmatprep.subr.mxu0 %v3831
    %4093 = vmatpush1.msra.mxu0 %v3830
    %4094 = vmatprep.subr.mxu0 %v3835
    %4095 = vmatpush1.msra.mxu0 %v3834
    %4096 = vmatprep.subr.mxu0 %v3839
    %4097 = vmatpush1.msra.mxu0 %v3838
    %4098 = vmatprep.subr.mxu0 %v3843
    %4099 = vmatpush1.msra.mxu0 %v3842
    %4100 = vmatprep.subr.mxu0 %v3847
    %4101 = vmatpush1.msra.mxu0 %v3846
    %4102 = vmatprep.subr.mxu0 %v3851
    %4103 = vmatpush1.msra.mxu0 %v3850
    %4104 = vmatprep.subr.mxu0 %v3855
    %4105 = vmatpush1.msra.mxu0 %v3854
    %4106 = vmatprep.subr.mxu0 %v3859
    %4107 = vmatpush1.msra.mxu0 %v3858
    %4108 = vmatprep.subr.mxu0 %v3863
    %4109 = vmatpush1.msra.mxu0 %v3862
    %4110 = vmatprep.subr.mxu0 %v3867
    %4111 = vmatpush1.msra.mxu0 %v3866
    %4112 = vmatprep.subr.mxu0 %v3871
    %4113 = vmatpush1.msra.mxu0 %v3870
    %4114 = vmatprep.subr.mxu0 %v3875
    %4115 = vmatpush1.msra.mxu0 %v3874
    %4116 = vmatprep.subr.mxu0 %v3879
    %4117 = vmatpush1.msra.mxu0 %v3878
    %4118 = vmatprep.subr.mxu0 %v3883
    %4119 = vmatpush1.msra.mxu0 %v3882
    %4120 = vmatprep.subr.mxu0 %v3887
    %4121 = vmatpush1.msra.mxu0 %v3886
    %4122 = vmatprep.subr.mxu0 %v3891
    %4123 = vmatpush1.msra.mxu0 %v3890
    %4124 = vmatprep.subr.mxu0 %v3895
    %4125 = vmatpush1.msra.mxu0 %v3894
    %4126 = vmatprep.subr.mxu0 %v3899
    %4127 = vmatpush1.msra.mxu0 %v3898
    %4128 = vmatprep.subr.mxu0 %v3903
    %4129 = vmatpush1.msra.mxu0 %v3902
    %4130 = vmatprep.subr.mxu0 %v3907
    %4131 = vmatpush1.msra.mxu0 %v3906
    %4132 = vmatprep.subr.mxu0 %v3911
    %4133 = vmatpush1.msra.mxu0 %v3910
    %4134 = vmatprep.subr.mxu0 %v3915
    %4135 = vmatpush1.msra.mxu0 %v3914
    %4136 = vmatprep.subr.mxu0 %v3919
    %4137 = vmatpush1.msra.mxu0 %v3918
    %4138 = vmatprep.subr.mxu0 %v3923
    %4139 = vmatpush1.msra.mxu0 %v3922
    %4140 = vmatprep.mubr.f32.mxu0 %v3795
    %4141 = vmatmul.mubr.f32.gmra.mrb[0].mxu0 %v3794
    %v4142 = vpop.f32.mrb[0].mxu0
    %v4143 = vadd.f32 %v4059, %v4142
    %v4144 = vpop.f32.mrb[0].mxu0
    %v4145 = vadd.f32 %v4063, %v4144
    %4146 = vdwg.mxu0
    %4147 = vmatprep.subr.mxu0 %v3927
    %4148 = vmatpush1.msra.mxu0 %v3926
    %4149 = vmatprep.subr.mxu0 %v3931
    %4150 = vmatpush1.msra.mxu0 %v3930
    %4151 = vmatprep.subr.mxu0 %v3935
    %4152 = vmatpush1.msra.mxu0 %v3934
    %4153 = vmatprep.subr.mxu0 %v3939
    %4154 = vmatpush1.msra.mxu0 %v3938
    %4155 = vmatprep.subr.mxu0 %v3943
    %4156 = vmatpush1.msra.mxu0 %v3942
    %4157 = vmatprep.subr.mxu0 %v3947
    %4158 = vmatpush1.msra.mxu0 %v3946
    %4159 = vmatprep.subr.mxu0 %v3951
    %4160 = vmatpush1.msra.mxu0 %v3950
    %4161 = vmatprep.subr.mxu0 %v3955
    %4162 = vmatpush1.msra.mxu0 %v3954
    %4163 = vmatprep.subr.mxu0 %v3959
    %4164 = vmatpush1.msra.mxu0 %v3958
    %4165 = vmatprep.subr.mxu0 %v3963
    %4166 = vmatpush1.msra.mxu0 %v3962
    %4167 = vmatprep.subr.mxu0 %v3967
    %4168 = vmatpush1.msra.mxu0 %v3966
    %4169 = vmatprep.subr.mxu0 %v3971
    %4170 = vmatpush1.msra.mxu0 %v3970
    %4171 = vmatprep.subr.mxu0 %v3975
    %4172 = vmatpush1.msra.mxu0 %v3974
    %4173 = vmatprep.subr.mxu0 %v3979
    %4174 = vmatpush1.msra.mxu0 %v3978
    %4175 = vmatprep.subr.mxu0 %v3983
    %4176 = vmatpush1.msra.mxu0 %v3982
    %4177 = vmatprep.subr.mxu0 %v3987
    %4178 = vmatpush1.msra.mxu0 %v3986
    %4179 = vmatprep.subr.mxu0 %v3991
    %4180 = vmatpush1.msra.mxu0 %v3990
    %4181 = vmatprep.subr.mxu0 %v3995
    %4182 = vmatpush1.msra.mxu0 %v3994
    %4183 = vmatprep.subr.mxu0 %v3999
    %4184 = vmatpush1.msra.mxu0 %v3998
    %4185 = vmatprep.subr.mxu0 %v4003
    %4186 = vmatpush1.msra.mxu0 %v4002
    %4187 = vmatprep.subr.mxu0 %v4007
    %4188 = vmatpush1.msra.mxu0 %v4006
    %4189 = vmatprep.subr.mxu0 %v4011
    %4190 = vmatpush1.msra.mxu0 %v4010
    %4191 = vmatprep.subr.mxu0 %v4015
    %4192 = vmatpush1.msra.mxu0 %v4014
    %4193 = vmatprep.subr.mxu0 %v4019
    %4194 = vmatpush1.msra.mxu0 %v4018
    %4195 = vmatprep.subr.mxu0 %v4023
    %4196 = vmatpush1.msra.mxu0 %v4022
    %4197 = vmatprep.subr.mxu0 %v4027
    %4198 = vmatpush1.msra.mxu0 %v4026
    %4199 = vmatprep.subr.mxu0 %v4031
    %4200 = vmatpush1.msra.mxu0 %v4030
    %4201 = vmatprep.subr.mxu0 %v4035
    %4202 = vmatpush1.msra.mxu0 %v4034
    %4203 = vmatprep.subr.mxu0 %v4039
    %4204 = vmatpush1.msra.mxu0 %v4038
    %4205 = vmatprep.subr.mxu0 %v4043
    %4206 = vmatpush1.msra.mxu0 %v4042
    %4207 = vmatprep.subr.mxu0 %v4047
    %4208 = vmatpush1.msra.mxu0 %v4046
    %4209 = vmatprep.subr.mxu0 %v4051
    %4210 = vmatpush1.msra.mxu0 %v4050
    %4211 = vmatprep.mubr.f32.mxu0 %v3797
    %4212 = vmatmul.mubr.f32.gmra.mrb[0].mxu0 %v3796
    %v4213 = vpop.f32.mrb[0].mxu0
    %v4214 = vadd.f32 %v4143, %v4213
    %v4215 = vpop.f32.mrb[0].mxu0
    %v4216 = vadd.f32 %v4145, %v4215
    %4217 = vdwg.mxu0
    %4218 = vmatprep.subr.mxu0 %v3801
    %4219 = vmatpush1.msra.mxu0 %v3800
    %4220 = vmatprep.subr.mxu0 %v3805
    %4221 = vmatpush1.msra.mxu0 %v3804
    %4222 = vmatprep.subr.mxu0 %v3809
    %4223 = vmatpush1.msra.mxu0 %v3808
    %4224 = vmatprep.subr.mxu0 %v3813
    %4225 = vmatpush1.msra.mxu0 %v3812
    %4226 = vmatprep.subr.mxu0 %v3817
    %4227 = vmatpush1.msra.mxu0 %v3816
    %4228 = vmatprep.subr.mxu0 %v3821
    %4229 = vmatpush1.msra.mxu0 %v3820
    %4230 = vmatprep.subr.mxu0 %v3825
    %4231 = vmatpush1.msra.mxu0 %v3824
    %4232 = vmatprep.subr.mxu0 %v3829
    %4233 = vmatpush1.msra.mxu0 %v3828
    %4234 = vmatprep.subr.mxu0 %v3833
    %4235 = vmatpush1.msra.mxu0 %v3832
    %4236 = vmatprep.subr.mxu0 %v3837
    %4237 = vmatpush1.msra.mxu0 %v3836
    %4238 = vmatprep.subr.mxu0 %v3841
    %4239 = vmatpush1.msra.mxu0 %v3840
    %4240 = vmatprep.subr.mxu0 %v3845
    %4241 = vmatpush1.msra.mxu0 %v3844
    %4242 = vmatprep.subr.mxu0 %v3849
    %4243 = vmatpush1.msra.mxu0 %v3848
    %4244 = vmatprep.subr.mxu0 %v3853
    %4245 = vmatpush1.msra.mxu0 %v3852
    %4246 = vmatprep.subr.mxu0 %v3857
    %4247 = vmatpush1.msra.mxu0 %v3856
    %4248 = vmatprep.subr.mxu0 %v3861
    %4249 = vmatpush1.msra.mxu0 %v3860
    %4250 = vmatprep.subr.mxu0 %v3865
    %4251 = vmatpush1.msra.mxu0 %v3864
    %4252 = vmatprep.subr.mxu0 %v3869
    %4253 = vmatpush1.msra.mxu0 %v3868
    %4254 = vmatprep.subr.mxu0 %v3873
    %4255 = vmatpush1.msra.mxu0 %v3872
    %4256 = vmatprep.subr.mxu0 %v3877
    %4257 = vmatpush1.msra.mxu0 %v3876
    %4258 = vmatprep.subr.mxu0 %v3881
    %4259 = vmatpush1.msra.mxu0 %v3880
    %4260 = vmatprep.subr.mxu0 %v3885
    %4261 = vmatpush1.msra.mxu0 %v3884
    %4262 = vmatprep.subr.mxu0 %v3889
    %4263 = vmatpush1.msra.mxu0 %v3888
    %4264 = vmatprep.subr.mxu0 %v3893
    %4265 = vmatpush1.msra.mxu0 %v3892
    %4266 = vmatprep.subr.mxu0 %v3897
    %4267 = vmatpush1.msra.mxu0 %v3896
    %4268 = vmatprep.subr.mxu0 %v3901
    %4269 = vmatpush1.msra.mxu0 %v3900
    %4270 = vmatprep.subr.mxu0 %v3905
    %4271 = vmatpush1.msra.mxu0 %v3904
    %4272 = vmatprep.subr.mxu0 %v3909
    %4273 = vmatpush1.msra.mxu0 %v3908
    %4274 = vmatprep.subr.mxu0 %v3913
    %4275 = vmatpush1.msra.mxu0 %v3912
    %4276 = vmatprep.subr.mxu0 %v3917
    %4277 = vmatpush1.msra.mxu0 %v3916
    %4278 = vmatprep.subr.mxu0 %v3921
    %4279 = vmatpush1.msra.mxu0 %v3920
    %4280 = vmatprep.subr.mxu0 %v3925
    %4281 = vmatpush1.msra.mxu0 %v3924
    %4282 = vmatprep.mubr.f32.mxu0 %v3795
    %4283 = vmatmul.mubr.f32.gmra.mrb[0].mxu0 %v3794
    %v4284 = vpop.f32.mrb[0].mxu0
    %v4285 = vadd.f32 %v4067, %v4284
    %v4286 = vpop.f32.mrb[0].mxu0
    %v4287 = vadd.f32 %v4071, %v4286
    %4288 = vdwg.mxu0
    %4289 = vmatprep.subr.mxu0 %v3929
    %4290 = vmatpush1.msra.mxu0 %v3928
    %4291 = vmatprep.subr.mxu0 %v3933
    %4292 = vmatpush1.msra.mxu0 %v3932
    %4293 = vmatprep.subr.mxu0 %v3937
    %4294 = vmatpush1.msra.mxu0 %v3936
    %4295 = vmatprep.subr.mxu0 %v3941
    %4296 = vmatpush1.msra.mxu0 %v3940
    %4297 = vmatprep.subr.mxu0 %v3945
    %4298 = vmatpush1.msra.mxu0 %v3944
    %4299 = vmatprep.subr.mxu0 %v3949
    %4300 = vmatpush1.msra.mxu0 %v3948
    %4301 = vmatprep.subr.mxu0 %v3953
    %4302 = vmatpush1.msra.mxu0 %v3952
    %4303 = vmatprep.subr.mxu0 %v3957
    %4304 = vmatpush1.msra.mxu0 %v3956
    %4305 = vmatprep.subr.mxu0 %v3961
    %4306 = vmatpush1.msra.mxu0 %v3960
    %4307 = vmatprep.subr.mxu0 %v3965
    %4308 = vmatpush1.msra.mxu0 %v3964
    %4309 = vmatprep.subr.mxu0 %v3969
    %4310 = vmatpush1.msra.mxu0 %v3968
    %4311 = vmatprep.subr.mxu0 %v3973
    %4312 = vmatpush1.msra.mxu0 %v3972
    %4313 = vmatprep.subr.mxu0 %v3977
    %4314 = vmatpush1.msra.mxu0 %v3976
    %4315 = vmatprep.subr.mxu0 %v3981
    %4316 = vmatpush1.msra.mxu0 %v3980
    %4317 = vmatprep.subr.mxu0 %v3985
    %4318 = vmatpush1.msra.mxu0 %v3984
    %4319 = vmatprep.subr.mxu0 %v3989
    %4320 = vmatpush1.msra.mxu0 %v3988
    %4321 = vmatprep.subr.mxu0 %v3993
    %4322 = vmatpush1.msra.mxu0 %v3992
    %4323 = vmatprep.subr.mxu0 %v3997
    %4324 = vmatpush1.msra.mxu0 %v3996
    %4325 = vmatprep.subr.mxu0 %v4001
    %4326 = vmatpush1.msra.mxu0 %v4000
    %4327 = vmatprep.subr.mxu0 %v4005
    %4328 = vmatpush1.msra.mxu0 %v4004
    %4329 = vmatprep.subr.mxu0 %v4009
    %4330 = vmatpush1.msra.mxu0 %v4008
    %4331 = vmatprep.subr.mxu0 %v4013
    %4332 = vmatpush1.msra.mxu0 %v4012
    %4333 = vmatprep.subr.mxu0 %v4017
    %4334 = vmatpush1.msra.mxu0 %v4016
    %4335 = vmatprep.subr.mxu0 %v4021
    %4336 = vmatpush1.msra.mxu0 %v4020
    %4337 = vmatprep.subr.mxu0 %v4025
    %4338 = vmatpush1.msra.mxu0 %v4024
    %4339 = vmatprep.subr.mxu0 %v4029
    %4340 = vmatpush1.msra.mxu0 %v4028
    %4341 = vmatprep.subr.mxu0 %v4033
    %4342 = vmatpush1.msra.mxu0 %v4032
    %4343 = vmatprep.subr.mxu0 %v4037
    %4344 = vmatpush1.msra.mxu0 %v4036
    %4345 = vmatprep.subr.mxu0 %v4041
    %4346 = vmatpush1.msra.mxu0 %v4040
    %4347 = vmatprep.subr.mxu0 %v4045
    %4348 = vmatpush1.msra.mxu0 %v4044
    %4349 = vmatprep.subr.mxu0 %v4049
    %4350 = vmatpush1.msra.mxu0 %v4048
    %4351 = vmatprep.subr.mxu0 %v4053
    %4352 = vmatpush1.msra.mxu0 %v4052
    %4353 = vmatprep.mubr.f32.mxu0 %v3797
    %4354 = vmatmul.mubr.f32.gmra.mrb[0].mxu0 %v3796
    %v4355 = vpop.f32.mrb[0].mxu0
    %v4356 = vadd.f32 %v4285, %v4355
    %v4357 = vpop.f32.mrb[0].mxu0
    %v4358 = vadd.f32 %v4287, %v4357
    %4359 = vdwg.mxu0
    %v4360 = vmul.f32 %v4214, 0.5
    %v4361 = vmul.f32 %v4216, 0.5
    %v4362 = vmul.f32 %v4356, 0.5
    %v4363 = vmul.f32 %v4358, 0.5
    %v4364 = vmul.f32 %v4214, 0.70710677
    %v4365 = vmul.f32 %v4216, 0.70710677
    %v4366 = vmul.f32 %v4356, 0.70710677
    %v4367 = vmul.f32 %v4358, 0.70710677
    %v4368 = vand.u32 2147483647, %v4364
    %v4369 = vand.u32 2147483647, %v4365
    %v4370 = vand.u32 2147483647, %v4366
    %v4371 = vand.u32 2147483647, %v4367
    %v4372 = vmul.f32 %v4368, 0.3275911
    %v4373 = vmul.f32 %v4369, 0.3275911
    %v4374 = vmul.f32 %v4370, 0.3275911
    %v4375 = vmul.f32 %v4371, 0.3275911
    %v4376 = vadd.f32 %v4372, 1.0
    %v4377 = vadd.f32 %v4373, 1.0
    %v4378 = vadd.f32 %v4374, 1.0
    %v4379 = vadd.f32 %v4375, 1.0
    %v4380 = vrcp.pop %v4376
    %v4381 = vmul.f32 1.0, %v4380
    %v4382 = vrcp.pop %v4377
    %v4383 = vmul.f32 1.0, %v4382
    %v4384 = vrcp.pop %v4378
    %v4385 = vmul.f32 1.0, %v4384
    %v4386 = vrcp.pop %v4379
    %v4387 = vmul.f32 1.0, %v4386
    %v4388 = vmul.f32 %v4381, 1.0614054
    %v4389 = vmul.f32 %v4383, 1.0614054
    %v4390 = vmul.f32 %v4385, 1.0614054
    %v4391 = vmul.f32 %v4387, 1.0614054
    %v4392 = vadd.f32 %v4388, -1.4531521
    %v4393 = vadd.f32 %v4389, -1.4531521
    %v4394 = vadd.f32 %v4390, -1.4531521
    %v4395 = vadd.f32 %v4391, -1.4531521
    %v4396 = vmul.f32 %v4392, %v4381
    %v4397 = vmul.f32 %v4393, %v4383
    %v4398 = vmul.f32 %v4394, %v4385
    %v4399 = vmul.f32 %v4395, %v4387
    %v4400 = vadd.f32 %v4396, 1.4214138
    %v4401 = vadd.f32 %v4397, 1.4214138
    %v4402 = vadd.f32 %v4398, 1.4214138
    %v4403 = vadd.f32 %v4399, 1.4214138
    %v4404 = vmul.f32 %v4400, %v4381
    %v4405 = vmul.f32 %v4401, %v4383
    %v4406 = vmul.f32 %v4402, %v4385
    %v4407 = vmul.f32 %v4403, %v4387
    %v4408 = vadd.f32 %v4404, -0.28449672
    %v4409 = vadd.f32 %v4405, -0.28449672
    %v4410 = vadd.f32 %v4406, -0.28449672
    %v4411 = vadd.f32 %v4407, -0.28449672
    %v4412 = vmul.f32 %v4408, %v4381
    %v4413 = vmul.f32 %v4409, %v4383
    %v4414 = vmul.f32 %v4410, %v4385
    %v4415 = vmul.f32 %v4411, %v4387
    %v4416 = vadd.f32 %v4412, 0.2548296
    %v4417 = vadd.f32 %v4413, 0.2548296
    %v4418 = vadd.f32 %v4414, 0.2548296
    %v4419 = vadd.f32 %v4415, 0.2548296
    %v4420 = vmul.f32 %v4416, %v4381
    %v4421 = vmul.f32 %v4417, %v4383
    %v4422 = vmul.f32 %v4418, %v4385
    %v4423 = vmul.f32 %v4419, %v4387
    %v4424 = vsub.f32 0.0, %v4368
    %v4425 = vsub.f32 0.0, %v4369
    %v4426 = vsub.f32 0.0, %v4370
    %v4427 = vsub.f32 0.0, %v4371
    %v4428 = vmul.f32 %v4424, %v4368
    %v4429 = vmul.f32 %v4425, %v4369
    %v4430 = vmul.f32 %v4426, %v4370
    %v4431 = vmul.f32 %v4427, %v4371
    %v4432 = vmul.f32 %v4428, 1.442695
    %v4433 = vpow.pop %v4432
    %v4434 = vmul.f32 %v4429, 1.442695
    %v4435 = vpow.pop %v4434
    %v4436 = vmul.f32 %v4430, 1.442695
    %v4437 = vpow.pop %v4436
    %v4438 = vmul.f32 %v4431, 1.442695
    %v4439 = vpow.pop %v4438
    %v4440 = vmul.f32 %v4420, %v4433
    %v4441 = vmul.f32 %v4421, %v4435
    %v4442 = vmul.f32 %v4422, %v4437
    %v4443 = vmul.f32 %v4423, %v4439
    %v4444 = vsub.f32 1.0, %v4440
    %v4445 = vsub.f32 1.0, %v4441
    %v4446 = vsub.f32 1.0, %v4442
    %v4447 = vsub.f32 1.0, %v4443
    %vm4448 = vcmp.ge.f32.partialorder %v4364, 0.0
    %vm4449 = vcmp.ge.f32.partialorder %v4365, 0.0
    %vm4450 = vcmp.ge.f32.partialorder %v4366, 0.0
    %vm4451 = vcmp.ge.f32.partialorder %v4367, 0.0
    %v4452 = vsub.f32 0.0, %v4444
    %v4453 = vsub.f32 0.0, %v4445
    %v4454 = vsub.f32 0.0, %v4446
    %v4455 = vsub.f32 0.0, %v4447
    %v4456 = vsel %vm4448, %v4444, %v4452
    %v4457 = vsel %vm4449, %v4445, %v4453
    %v4458 = vsel %vm4450, %v4446, %v4454
    %v4459 = vsel %vm4451, %v4447, %v4455
    %v4460 = vadd.f32 %v4456, 1.0
    %v4461 = vadd.f32 %v4457, 1.0
    %v4462 = vadd.f32 %v4458, 1.0
    %v4463 = vadd.f32 %v4459, 1.0
    %v4464 = vmul.f32 %v4360, %v4460
    %v4465 = vmul.f32 %v4361, %v4461
    %v4466 = vmul.f32 %v4362, %v4462
    %v4467 = vmul.f32 %v4363, %v4463
    %v4468 = vld [vmem:[%s8] sm:$0xff]
    %v4469 = vld [vmem:[%s8 + $0x8] sm:$0xff]
    %v4470 = vld [vmem:[%s8 + $0x10] sm:$0xff]
    %v4471 = vld [vmem:[%s8 + $0x18] sm:$0xff]
    %v4472 = vld [vmem:[%s8 + $0x20] sm:$0xff]
    %v4473 = vld [vmem:[%s8 + $0x28] sm:$0xff]
    %v4474 = vld [vmem:[%s8 + $0x30] sm:$0xff]
    %v4475 = vld [vmem:[%s8 + $0x38] sm:$0xff]
    %v4476 = vld [vmem:[%s8 + $0x40] sm:$0xff]
    %v4477 = vld [vmem:[%s8 + $0x48] sm:$0xff]
    %v4478 = vld [vmem:[%s8 + $0x50] sm:$0xff]
    %v4479 = vld [vmem:[%s8 + $0x58] sm:$0xff]
    %v4480 = vld [vmem:[%s8 + $0x60] sm:$0xff]
    %v4481 = vld [vmem:[%s8 + $0x68] sm:$0xff]
    %v4482 = vld [vmem:[%s8 + $0x70] sm:$0xff]
    %v4483 = vld [vmem:[%s8 + $0x78] sm:$0xff]
    %v4484 = vld [vmem:[%s8 + $0x80] sm:$0xff]
    %v4485 = vld [vmem:[%s8 + $0x88] sm:$0xff]
    %v4486 = vld [vmem:[%s8 + $0x90] sm:$0xff]
    %v4487 = vld [vmem:[%s8 + $0x98] sm:$0xff]
    %v4488 = vld [vmem:[%s8 + $0xa0] sm:$0xff]
    %v4489 = vld [vmem:[%s8 + $0xa8] sm:$0xff]
    %v4490 = vld [vmem:[%s8 + $0xb0] sm:$0xff]
    %v4491 = vld [vmem:[%s8 + $0xb8] sm:$0xff]
    %v4492 = vld [vmem:[%s8 + $0xc0] sm:$0xff]
    %v4493 = vld [vmem:[%s8 + $0xc8] sm:$0xff]
    %v4494 = vld [vmem:[%s8 + $0xd0] sm:$0xff]
    %v4495 = vld [vmem:[%s8 + $0xd8] sm:$0xff]
    %v4496 = vld [vmem:[%s8 + $0xe0] sm:$0xff]
    %v4497 = vld [vmem:[%s8 + $0xe8] sm:$0xff]
    %v4498 = vld [vmem:[%s8 + $0xf0] sm:$0xff]
    %v4499 = vld [vmem:[%s8 + $0xf8] sm:$0xff]
    %v4500 = vld [vmem:[%s8 + $0x100] sm:$0xff]
    %v4501 = vld [vmem:[%s8 + $0x108] sm:$0xff]
    %v4502 = vld [vmem:[%s8 + $0x110] sm:$0xff]
    %v4503 = vld [vmem:[%s8 + $0x118] sm:$0xff]
    %v4504 = vld [vmem:[%s8 + $0x120] sm:$0xff]
    %v4505 = vld [vmem:[%s8 + $0x128] sm:$0xff]
    %v4506 = vld [vmem:[%s8 + $0x130] sm:$0xff]
    %v4507 = vld [vmem:[%s8 + $0x138] sm:$0xff]
    %v4508 = vld [vmem:[%s8 + $0x140] sm:$0xff]
    %v4509 = vld [vmem:[%s8 + $0x148] sm:$0xff]
    %v4510 = vld [vmem:[%s8 + $0x150] sm:$0xff]
    %v4511 = vld [vmem:[%s8 + $0x158] sm:$0xff]
    %v4512 = vld [vmem:[%s8 + $0x160] sm:$0xff]
    %v4513 = vld [vmem:[%s8 + $0x168] sm:$0xff]
    %v4514 = vld [vmem:[%s8 + $0x170] sm:$0xff]
    %v4515 = vld [vmem:[%s8 + $0x178] sm:$0xff]
    %v4516 = vld [vmem:[%s8 + $0x180] sm:$0xff]
    %v4517 = vld [vmem:[%s8 + $0x188] sm:$0xff]
    %v4518 = vld [vmem:[%s8 + $0x190] sm:$0xff]
    %v4519 = vld [vmem:[%s8 + $0x198] sm:$0xff]
    %v4520 = vld [vmem:[%s8 + $0x1a0] sm:$0xff]
    %v4521 = vld [vmem:[%s8 + $0x1a8] sm:$0xff]
    %v4522 = vld [vmem:[%s8 + $0x1b0] sm:$0xff]
    %v4523 = vld [vmem:[%s8 + $0x1b8] sm:$0xff]
    %v4524 = vld [vmem:[%s8 + $0x1c0] sm:$0xff]
    %v4525 = vld [vmem:[%s8 + $0x1c8] sm:$0xff]
    %v4526 = vld [vmem:[%s8 + $0x1d0] sm:$0xff]
    %v4527 = vld [vmem:[%s8 + $0x1d8] sm:$0xff]
    %v4528 = vld [vmem:[%s8 + $0x1e0] sm:$0xff]
    %v4529 = vld [vmem:[%s8 + $0x1e8] sm:$0xff]
    %v4530 = vld [vmem:[%s8 + $0x1f0] sm:$0xff]
    %v4531 = vld [vmem:[%s8 + $0x1f8] sm:$0xff]
    %v4532 = vld [vmem:[%s16] sm:$0x1]
    %v4534 = vlaneseq
    %v4535 = vshrl.u32 %v4534, 7
    %v4536 = vsub.s32 0, %v4535
    %v4537 = vrot.slane %v4532, %v4536
    %4539 = vmatprep.subr.mxu0 0.0
    %4540 = vmatpush1.msra.mxu0 %v4468
    %4541 = vmatprep.subr.mxu0 0.0
    %4542 = vmatpush1.msra.mxu0 %v4469
    %4543 = vmatprep.subr.mxu0 0.0
    %4544 = vmatpush1.msra.mxu0 %v4470
    %4545 = vmatprep.subr.mxu0 0.0
    %4546 = vmatpush1.msra.mxu0 %v4471
    %4547 = vmatprep.subr.mxu0 0.0
    %4548 = vmatpush1.msra.mxu0 %v4472
    %4549 = vmatprep.subr.mxu0 0.0
    %4550 = vmatpush1.msra.mxu0 %v4473
    %4551 = vmatprep.subr.mxu0 0.0
    %4552 = vmatpush1.msra.mxu0 %v4474
    %4553 = vmatprep.subr.mxu0 0.0
    %4554 = vmatpush1.msra.mxu0 %v4475
    %4555 = vmatprep.subr.mxu0 0.0
    %4556 = vmatpush1.msra.mxu0 %v4476
    %4557 = vmatprep.subr.mxu0 0.0
    %4558 = vmatpush1.msra.mxu0 %v4477
    %4559 = vmatprep.subr.mxu0 0.0
    %4560 = vmatpush1.msra.mxu0 %v4478
    %4561 = vmatprep.subr.mxu0 0.0
    %4562 = vmatpush1.msra.mxu0 %v4479
    %4563 = vmatprep.subr.mxu0 0.0
    %4564 = vmatpush1.msra.mxu0 %v4480
    %4565 = vmatprep.subr.mxu0 0.0
    %4566 = vmatpush1.msra.mxu0 %v4481
    %4567 = vmatprep.subr.mxu0 0.0
    %4568 = vmatpush1.msra.mxu0 %v4482
    %4569 = vmatprep.subr.mxu0 0.0
    %4570 = vmatpush1.msra.mxu0 %v4483
    %4571 = vmatprep.subr.mxu0 0.0
    %4572 = vmatpush1.msra.mxu0 %v4484
    %4573 = vmatprep.subr.mxu0 0.0
    %4574 = vmatpush1.msra.mxu0 %v4485
    %4575 = vmatprep.subr.mxu0 0.0
    %4576 = vmatpush1.msra.mxu0 %v4486
    %4577 = vmatprep.subr.mxu0 0.0
    %4578 = vmatpush1.msra.mxu0 %v4487
    %4579 = vmatprep.subr.mxu0 0.0
    %4580 = vmatpush1.msra.mxu0 %v4488
    %4581 = vmatprep.subr.mxu0 0.0
    %4582 = vmatpush1.msra.mxu0 %v4489
    %4583 = vmatprep.subr.mxu0 0.0
    %4584 = vmatpush1.msra.mxu0 %v4490
    %4585 = vmatprep.subr.mxu0 0.0
    %4586 = vmatpush1.msra.mxu0 %v4491
    %4587 = vmatprep.subr.mxu0 0.0
    %4588 = vmatpush1.msra.mxu0 %v4492
    %4589 = vmatprep.subr.mxu0 0.0
    %4590 = vmatpush1.msra.mxu0 %v4493
    %4591 = vmatprep.subr.mxu0 0.0
    %4592 = vmatpush1.msra.mxu0 %v4494
    %4593 = vmatprep.subr.mxu0 0.0
    %4594 = vmatpush1.msra.mxu0 %v4495
    %4595 = vmatprep.subr.mxu0 0.0
    %4596 = vmatpush1.msra.mxu0 %v4496
    %4597 = vmatprep.subr.mxu0 0.0
    %4598 = vmatpush1.msra.mxu0 %v4497
    %4599 = vmatprep.subr.mxu0 0.0
    %4600 = vmatpush1.msra.mxu0 %v4498
    %4601 = vmatprep.subr.mxu0 0.0
    %4602 = vmatpush1.msra.mxu0 %v4499
    %4603 = vmatprep.mubr.f32.mxu0 %v4465
    %4604 = vmatmul.mubr.f32.gmra.mrb[0].mxu0 %v4464
    %v4605 = vpop.f32.mrb[0].mxu0
    %v4606 = vadd.f32 %v4537, %v4605
    %v4607 = vpop.f32.mrb[0].mxu0
    %4608 = vdwg.mxu0
    %4609 = vmatprep.subr.mxu0 0.0
    %4610 = vmatpush1.msra.mxu0 %v4500
    %4611 = vmatprep.subr.mxu0 0.0
    %4612 = vmatpush1.msra.mxu0 %v4501
    %4613 = vmatprep.subr.mxu0 0.0
    %4614 = vmatpush1.msra.mxu0 %v4502
    %4615 = vmatprep.subr.mxu0 0.0
    %4616 = vmatpush1.msra.mxu0 %v4503
    %4617 = vmatprep.subr.mxu0 0.0
    %4618 = vmatpush1.msra.mxu0 %v4504
    %4619 = vmatprep.subr.mxu0 0.0
    %4620 = vmatpush1.msra.mxu0 %v4505
    %4621 = vmatprep.subr.mxu0 0.0
    %4622 = vmatpush1.msra.mxu0 %v4506
    %4623 = vmatprep.subr.mxu0 0.0
    %4624 = vmatpush1.msra.mxu0 %v4507
    %4625 = vmatprep.subr.mxu0 0.0
    %4626 = vmatpush1.msra.mxu0 %v4508
    %4627 = vmatprep.subr.mxu0 0.0
    %4628 = vmatpush1.msra.mxu0 %v4509
    %4629 = vmatprep.subr.mxu0 0.0
    %4630 = vmatpush1.msra.mxu0 %v4510
    %4631 = vmatprep.subr.mxu0 0.0
    %4632 = vmatpush1.msra.mxu0 %v4511
    %4633 = vmatprep.subr.mxu0 0.0
    %4634 = vmatpush1.msra.mxu0 %v4512
    %4635 = vmatprep.subr.mxu0 0.0
    %4636 = vmatpush1.msra.mxu0 %v4513
    %4637 = vmatprep.subr.mxu0 0.0
    %4638 = vmatpush1.msra.mxu0 %v4514
    %4639 = vmatprep.subr.mxu0 0.0
    %4640 = vmatpush1.msra.mxu0 %v4515
    %4641 = vmatprep.subr.mxu0 0.0
    %4642 = vmatpush1.msra.mxu0 %v4516
    %4643 = vmatprep.subr.mxu0 0.0
    %4644 = vmatpush1.msra.mxu0 %v4517
    %4645 = vmatprep.subr.mxu0 0.0
    %4646 = vmatpush1.msra.mxu0 %v4518
    %4647 = vmatprep.subr.mxu0 0.0
    %4648 = vmatpush1.msra.mxu0 %v4519
    %4649 = vmatprep.subr.mxu0 0.0
    %4650 = vmatpush1.msra.mxu0 %v4520
    %4651 = vmatprep.subr.mxu0 0.0
    %4652 = vmatpush1.msra.mxu0 %v4521
    %4653 = vmatprep.subr.mxu0 0.0
    %4654 = vmatpush1.msra.mxu0 %v4522
    %4655 = vmatprep.subr.mxu0 0.0
    %4656 = vmatpush1.msra.mxu0 %v4523
    %4657 = vmatprep.subr.mxu0 0.0
    %4658 = vmatpush1.msra.mxu0 %v4524
    %4659 = vmatprep.subr.mxu0 0.0
    %4660 = vmatpush1.msra.mxu0 %v4525
    %4661 = vmatprep.subr.mxu0 0.0
    %4662 = vmatpush1.msra.mxu0 %v4526
    %4663 = vmatprep.subr.mxu0 0.0
    %4664 = vmatpush1.msra.mxu0 %v4527
    %4665 = vmatprep.subr.mxu0 0.0
    %4666 = vmatpush1.msra.mxu0 %v4528
    %4667 = vmatprep.subr.mxu0 0.0
    %4668 = vmatpush1.msra.mxu0 %v4529
    %4669 = vmatprep.subr.mxu0 0.0
    %4670 = vmatpush1.msra.mxu0 %v4530
    %4671 = vmatprep.subr.mxu0 0.0
    %4672 = vmatpush1.msra.mxu0 %v4531
    %4673 = vmatprep.mubr.f32.mxu0 %v4467
    %4674 = vmatmul.mubr.f32.gmra.mrb[0].mxu0 %v4466
    %v4675 = vpop.f32.mrb[0].mxu0
    %v4676 = vadd.f32 %v4606, %v4675
    %v4677 = vpop.f32.mrb[0].mxu0
    %4678 = vdwg.mxu0
    %vm4679 = vcmask 517120
    %4680 = vst.msk [vmem:[#allocation13] sm:$0x3] %vm4679, %v4676
    // Predicated region
    $region94: #{tpu_custom_call.1} parent=1 // pred_check
      _
    $region95: #{tpu_custom_call.1} parent=1 // pred_check_branch
      %4682 = sbr.rel (0) target = $region97
    $region96: #{tpu_custom_call.1} parent=1 // pred_region
      %s4684 = ssub.s32 32, 32
      %4685 = vsyncadd [#allocation4], %s4684
      %s4687 = sshll.u32 [#allocation13], 4
      %s4688 = int_to_ptr.vmem [resolvable:$true] %s4687
      %4690 = dma.vmem_to_hbm [thread:$0]  %s4688, 32, %s17, [#allocation4]
    $region97: #{tpu_custom_call.1} parent=1 // pred_fallthru
      _
    // Predicated region
    $region98: #{tpu_custom_call.1} parent=1 // pred_check
      _
    $region99: #{tpu_custom_call.1} parent=1 // pred_check_branch
      %4692 = sbr.rel (0) target = $region101
    $region100: #{tpu_custom_call.1} parent=1 // pred_region
      %4693 = dma.done [#allocation4], 32
    $region101: #{tpu_custom_call.1} parent=1 // pred_fallthru
      _
    %4694 = vsyncpa [#allocation3], 1
    %4695 = vsyncpa [#allocation6], 1
    %4696 = vsyncpa [#allocation9], 1
    %4697 = vsyncpa [#allocation12], 1
    %4698 = vsyncpa [#allocation4], 1

</llo_original>
